<compile_context>
chip_gen: v5e
topology: v5e:2x2
jax: 0.10.0
libtpu: 0.0.40
codegen_flags: <defaults>
</compile_context>

<pallas_src>
import jax
import jax.numpy as jnp
import numpy as np
from jax.experimental import pallas as pl
from jax.experimental.pallas import tpu as pltpu

_LN_EPS = 1e-5          # torch.nn.LayerNorm default
_SQRT2 = np.sqrt(2.0)


def _layer_norm(x, gamma, beta):
    mu = jnp.mean(x, axis=-1, keepdims=True)
    xc = x - mu
    var = jnp.mean(xc * xc, axis=-1, keepdims=True)
    return xc * jax.lax.rsqrt(var + _LN_EPS) * gamma + beta


def _gelu_exact(x):
    # torch.nn.GELU() default (erf-based, not tanh approximation).
    return 0.5 * x * (1.0 + jax.lax.erf(x * (1.0 / _SQRT2)))


def _make_block_kernel(n_heads: int, compute_dtype):
    def kernel(x_ref, ln1_g, ln1_b, wqkv_ref, bqkv_ref, wo_ref, bo_ref,
               ln2_g, ln2_b, w1_ref, b1_ref, w2_ref, b2_ref, o_ref):
        bb, nx, d = x_ref.shape
        rows = bb * nx
        dk = d // n_heads
        scale = 1.0 / np.sqrt(dk)

        # Flatten the batch group into one (rows, d) token slab (leading-dim
        # merge only -> no lane relayout); all row-wise matmuls use the big M.
        x = x_ref[...].astype(jnp.float32).reshape(rows, d)

        # ---------------- x = x + SelfAttention(LayerNorm(x)) ----------------
        h1 = _layer_norm(x, ln1_g[...], ln1_b[...])

        # One fused (rows,d)@(d,3d) projection; bias add kept in f32.
        qkv = jnp.dot(h1.astype(compute_dtype), wqkv_ref[...],
                      preferred_element_type=jnp.float32) + bqkv_ref[...]
        q = (qkv[:, 0 * d:1 * d] * scale).astype(compute_dtype)  # fold 1/sqrt(dk)
        k = qkv[:, 1 * d:2 * d].astype(compute_dtype)
        v = qkv[:, 2 * d:3 * d].astype(compute_dtype)

        ctx_parts = []
        for b in range(bb):                  # static loop over the batch group
            r0 = b * nx
            # Head-major (n_heads, nx, dk) stacks from static lane slices.
            qh = jnp.stack([q[r0:r0 + nx, h * dk:(h + 1) * dk]
                            for h in range(n_heads)], axis=0)
            kh = jnp.stack([k[r0:r0 + nx, h * dk:(h + 1) * dk]
                            for h in range(n_heads)], axis=0)
            vh = jnp.stack([v[r0:r0 + nx, h * dk:(h + 1) * dk]
                            for h in range(n_heads)], axis=0)
            # One head-batched matmul for scores (no materialized k^T) and one
            # for the context, instead of 3*n_heads rank-dk matmuls.
            s = jnp.einsum('hqd,hkd->hqk', qh, kh,
                           preferred_element_type=jnp.float32)
            s = s - jnp.max(s, axis=-1, keepdims=True)
            p = jnp.exp(s)
            p = p * pl.reciprocal(jnp.sum(p, axis=-1, keepdims=True),
                                  approx=True)        # softmax denom on EUP
            ctx = jnp.einsum('hqk,hkd->hqd', p.astype(compute_dtype), vh,
                             preferred_element_type=jnp.float32)
            # Re-concat heads to (nx, d) for the single full-K Wo matmul.
            ctx_parts.append(jnp.concatenate(
                [ctx[h] for h in range(n_heads)], axis=-1))
        ctx_all = (ctx_parts[0] if bb == 1
                   else jnp.concatenate(ctx_parts, axis=0))       # (rows, d)

        sa = jnp.dot(ctx_all.astype(compute_dtype), wo_ref[...],
                     preferred_element_type=jnp.float32) + bo_ref[...]
        # attn_drop / resid_drop are identity in eval mode.
        x1 = x + sa

        # ---------------------- x = x + MLP(LayerNorm(x)) --------------------
        h2 = _layer_norm(x1, ln2_g[...], ln2_b[...])
        m = jnp.dot(h2.astype(compute_dtype), w1_ref[...],
                    preferred_element_type=jnp.float32) + b1_ref[...]
        m = _gelu_exact(m)
        m = jnp.dot(m.astype(compute_dtype), w2_ref[...],
                    preferred_element_type=jnp.float32) + b2_ref[...]
        # mlp Dropout is identity in eval mode.

        o_ref[...] = (x1 + m).reshape(bb, nx, d).astype(o_ref.dtype)

    return kernel


def transformer_block(x, params, n_heads, *, batch_block=None,
                      compute_dtype=jnp.bfloat16):
    """Fused myTransformerBlock forward (eval mode). x: (bs, nx, d_model)."""
    (ln1_g, ln1_b, wq, bq, wk, bk, wv, bv, wo, bo,
     ln2_g, ln2_b, w1, b1, w2, b2) = params
    bs, nx, d = x.shape
    hidden = w1.shape[1]
    assert d % n_heads == 0

    # Fuse the three projections into one (d, 3d) weight -> single MXU push.
    # Weights are cast to bf16 (halves resident VMEM); biases stay f32.
    wqkv = jnp.concatenate([wq, wk, wv], axis=1).astype(compute_dtype)
    bqkv = jnp.concatenate([bq, bk, bv], axis=1).astype(jnp.float32)
    wo_c = wo.astype(compute_dtype)
    w1_c = w1.astype(compute_dtype)
    w2_c = w2.astype(compute_dtype)

    # Pack batch elements per grid step so each step carries >= 128 token rows
    # (amortizes ~0.35us/step overhead, fills MXU rows).  On v7x prefer a
    # batch_block with bs // batch_block >= 2 so both TensorCores get work.
    if batch_block is None:
        batch_block = bs
        for cand in range(1, bs + 1):
            if bs % cand == 0 and cand * nx >= 128:
                batch_block = cand
                break
    assert bs % batch_block == 0
    grid = (bs // batch_block,)

    def resident(shape):
        # Parameters: constant index_map -> stay resident in VMEM across steps.
        return pl.BlockSpec(shape, lambda b: (0, 0))

    operands = (x, ln1_g, ln1_b, wqkv, bqkv, wo_c, bo,
                ln2_g, ln2_b, w1_c, b1, w2_c, b2)

    flops = bs * (2 * nx * d * 3 * d            # fused QKV projection
                  + 2 * nx * nx * d             # attention scores (all heads)
                  + 2 * nx * nx * d             # attention context
                  + 2 * nx * d * d              # output projection
                  + 4 * nx * d * hidden)        # MLP up + down
    transcendentals = bs * (n_heads * nx * nx   # softmax exp
                            + nx * hidden       # GELU erf
                            + 4 * nx)           # LN rsqrt + softmax recip
    bytes_accessed = int(sum(int(np.prod(a.shape)) * a.dtype.itemsize
                             for a in operands)
                         + int(np.prod(x.shape)) * x.dtype.itemsize)

    kernel = _make_block_kernel(n_heads, compute_dtype)
    # TODO(synk): at production dims (d_model >= 1024, seq >= 512) switch to
    # seq-tiled flash-style K/V streaming + hidden-tiled MLP instead of the
    # all-resident / full-(nx,nx)-scores design used here for small shapes.
    return pl.pallas_call(
        kernel,
        out_shape=jax.ShapeDtypeStruct((bs, nx, d), x.dtype),
        grid_spec=pltpu.PrefetchScalarGridSpec(
            num_scalar_prefetch=0,
            grid=grid,
            in_specs=[
                pl.BlockSpec((batch_block, nx, d), lambda b: (b, 0, 0)),  # x
                resident((1, d)), resident((1, d)),                # ln1 g/b
                resident((d, 3 * d)), resident((1, 3 * d)),        # Wqkv, bqkv
                resident((d, d)), resident((1, d)),                # Wo, bo
                resident((1, d)), resident((1, d)),                # ln2 g/b
                resident((d, hidden)), resident((1, hidden)),      # W1, b1
                resident((hidden, d)), resident((1, d)),           # W2, b2
            ],
            out_specs=pl.BlockSpec((batch_block, nx, d), lambda b: (b, 0, 0)),
        ),
        compiler_params=pltpu.CompilerParams(
            dimension_semantics=("parallel",),     # batch groups are carry-free
            vmem_limit_bytes=32 * 1024 * 1024),
        cost_estimate=pl.CostEstimate(flops=flops,
                                      transcendentals=transcendentals,
                                      bytes_accessed=bytes_accessed),
    )(*operands)


# -----------------------------------------------------------------------------
# Pure-JAX reference (mirrors the PyTorch forward, eval mode, f32 HIGHEST dots)
# -----------------------------------------------------------------------------
def transformer_block_ref(x, params, n_heads):
    (ln1_g, ln1_b, wq, bq, wk, bk, wv, bv, wo, bo,
     ln2_g, ln2_b, w1, b1, w2, b2) = params
    bs, nx, d = x.shape
    dk = d // n_heads
    hp = jax.lax.Precision.HIGHEST

    def mm(a, b):
        return jnp.matmul(a, b, precision=hp)

    def ln(z, g, b):
        mu = jnp.mean(z, -1, keepdims=True)
        zc = z - mu
        var = jnp.mean(zc * zc, -1, keepdims=True)
        return zc * jax.lax.rsqrt(var + _LN_EPS) * g + b

    h = ln(x, ln1_g, ln1_b)
    q = (mm(h, wq) + bq).reshape(bs, nx, n_heads, dk).transpose(0, 2, 1, 3)
    k = (mm(h, wk) + bk).reshape(bs, nx, n_heads, dk).transpose(0, 2, 3, 1)
    v = (mm(h, wv) + bv).reshape(bs, nx, n_heads, dk).transpose(0, 2, 1, 3)
    att = mm(q, k) / np.sqrt(dk)
    att = jax.nn.softmax(att, axis=-1)
    out = mm(att, v).transpose(0, 2, 1, 3).reshape(bs, nx, d)
    x1 = x + mm(out, wo) + bo
    h2 = ln(x1, ln2_g, ln2_b)
    m = mm(h2, w1) + b1
    m = 0.5 * m * (1.0 + jax.lax.erf(m / _SQRT2))
    return x1 + mm(m, w2) + b2


# -----------------------------------------------------------------------------
if __name__ == "__main__":
    key = jax.random.PRNGKey(0)

    bs, seq, d_model, n_heads, block_exp = 2, 64, 32, 4, 4
    hidden = block_exp * d_model

    ks = jax.random.split(key, 17)

    def nrm(k, shape, s=0.1):
        return s * jax.random.normal(k, shape, dtype=jnp.float32)

    x = jax.random.normal(ks[0], (bs, seq, d_model), dtype=jnp.float32)

    params = (
        1.0 + nrm(ks[1], (1, d_model)),                               # ln1 g
        nrm(ks[2], (1, d_model)),                                     # ln1 b
        nrm(ks[3], (d_model, d_model)), nrm(ks[4], (1, d_model)),     # Wq, bq
        nrm(ks[5], (d_model, d_model)), nrm(ks[6], (1, d_model)),     # Wk, bk
        nrm(ks[7], (d_model, d_model)), nrm(ks[8], (1, d_model)),     # Wv, bv
        nrm(ks[9], (d_model, d_model)), nrm(ks[10], (1, d_model)),    # Wo, bo
        1.0 + nrm(ks[11], (1, d_model)),                              # ln2 g
        nrm(ks[12], (1, d_model)),                                    # ln2 b
        nrm(ks[13], (d_model, hidden)), nrm(ks[14], (1, hidden)),     # W1, b1
        nrm(ks[15], (hidden, d_model)), nrm(ks[16], (1, d_model)),    # W2, b2
    )

    y = transformer_block(x, params, n_heads)
    jax.block_until_ready(y)

    y_ref = transformer_block_ref(x, params, n_heads)
    # bf16 MXU operands (f32 accumulation) + approx reciprocal -> ~1e-2 tol.
    np.testing.assert_allclose(np.asarray(y), np.asarray(y_ref),
                               rtol=3e-2, atol=3e-2)
    assert y.shape == (bs, seq, d_model)

    # TODO(synk): training-mode dropout (attn/resid/mlp) is intentionally not
    # implemented; forward matches the module in eval/inference mode.
    print("KERNEL_OK")
</pallas_src>

<mosaic_0001>
module attributes {stable_mosaic.version = 11 : i64} {
  func.func @kernel(%arg0: i32, %arg1: memref<2x64x32xf32, #tpu.memory_space<vmem>>, %arg2: memref<1x32xf32, #tpu.memory_space<vmem>>, %arg3: memref<1x32xf32, #tpu.memory_space<vmem>>, %arg4: memref<32x96xbf16, #tpu.memory_space<vmem>>, %arg5: memref<1x96xf32, #tpu.memory_space<vmem>>, %arg6: memref<32x32xbf16, #tpu.memory_space<vmem>>, %arg7: memref<1x32xf32, #tpu.memory_space<vmem>>, %arg8: memref<1x32xf32, #tpu.memory_space<vmem>>, %arg9: memref<1x32xf32, #tpu.memory_space<vmem>>, %arg10: memref<32x128xbf16, #tpu.memory_space<vmem>>, %arg11: memref<1x128xf32, #tpu.memory_space<vmem>>, %arg12: memref<128x32xbf16, #tpu.memory_space<vmem>>, %arg13: memref<1x32xf32, #tpu.memory_space<vmem>>, %arg14: memref<2x64x32xf32, #tpu.memory_space<vmem>>) attributes {dimension_semantics = [#tpu.dimension_semantics<parallel>], iteration_bounds = array<i64: 1>, scalar_prefetch = 0 : i64, scratch_operands = 0 : i64, tpu.core_type = #tpu.core_type<tc>, window_params = [{transform_indices = @transform_0, window_bounds = array<i64: 2, 64, 32>}, {pipeline_mode = #tpu.pipeline_mode<synchronous>, transform_indices = @transform_1, window_bounds = array<i64: 1, 32>}, {pipeline_mode = #tpu.pipeline_mode<synchronous>, transform_indices = @transform_2, window_bounds = array<i64: 1, 32>}, {pipeline_mode = #tpu.pipeline_mode<synchronous>, transform_indices = @transform_3, window_bounds = array<i64: 32, 96>}, {pipeline_mode = #tpu.pipeline_mode<synchronous>, transform_indices = @transform_4, window_bounds = array<i64: 1, 96>}, {pipeline_mode = #tpu.pipeline_mode<synchronous>, transform_indices = @transform_5, window_bounds = array<i64: 32, 32>}, {pipeline_mode = #tpu.pipeline_mode<synchronous>, transform_indices = @transform_6, window_bounds = array<i64: 1, 32>}, {pipeline_mode = #tpu.pipeline_mode<synchronous>, transform_indices = @transform_7, window_bounds = array<i64: 1, 32>}, {pipeline_mode = #tpu.pipeline_mode<synchronous>, transform_indices = @transform_8, window_bounds = array<i64: 1, 32>}, {pipeline_mode = #tpu.pipeline_mode<synchronous>, transform_indices = @transform_9, window_bounds = array<i64: 32, 128>}, {pipeline_mode = #tpu.pipeline_mode<synchronous>, transform_indices = @transform_10, window_bounds = array<i64: 1, 128>}, {pipeline_mode = #tpu.pipeline_mode<synchronous>, transform_indices = @transform_11, window_bounds = array<i64: 128, 32>}, {pipeline_mode = #tpu.pipeline_mode<synchronous>, transform_indices = @transform_12, window_bounds = array<i64: 1, 32>}, {transform_indices = @transform_13, window_bounds = array<i64: 2, 64, 32>}]} {
    %c0 = arith.constant 0 : index
    %c0_0 = arith.constant 0 : index
    %c0_1 = arith.constant 0 : index
    %0 = vector.load %arg1[%c0, %c0_0, %c0_1] : memref<2x64x32xf32, #tpu.memory_space<vmem>>, vector<2x64x32xf32>
    %1 = vector.shape_cast %0 : vector<2x64x32xf32> to vector<128x32xf32>
    %c0_2 = arith.constant 0 : index
    %c0_3 = arith.constant 0 : index
    %2 = vector.load %arg2[%c0_2, %c0_3] : memref<1x32xf32, #tpu.memory_space<vmem>>, vector<1x32xf32>
    %c0_4 = arith.constant 0 : index
    %c0_5 = arith.constant 0 : index
    %3 = vector.load %arg3[%c0_4, %c0_5] : memref<1x32xf32, #tpu.memory_space<vmem>>, vector<1x32xf32>
    %cst = arith.constant dense<0.000000e+00> : vector<128xf32>
    %4 = vector.multi_reduction <add>, %1, %cst [1] : vector<128x32xf32> to vector<128xf32>
    %5 = vector.shape_cast %4 : vector<128xf32> to vector<128x1xf32>
    %cst_6 = arith.constant 3.200000e+01 : f32
    %6 = vector.broadcast %cst_6 : f32 to vector<128x1xf32>
    %7 = arith.divf %5, %6 : vector<128x1xf32>
    %8 = vector.broadcast %7 : vector<128x1xf32> to vector<128x32xf32>
    %9 = arith.subf %1, %8 : vector<128x32xf32>
    %10 = arith.mulf %9, %9 : vector<128x32xf32>
    %cst_7 = arith.constant dense<0.000000e+00> : vector<128xf32>
    %11 = vector.multi_reduction <add>, %10, %cst_7 [1] : vector<128x32xf32> to vector<128xf32>
    %12 = vector.shape_cast %11 : vector<128xf32> to vector<128x1xf32>
    %cst_8 = arith.constant 3.200000e+01 : f32
    %13 = vector.broadcast %cst_8 : f32 to vector<128x1xf32>
    %14 = arith.divf %12, %13 : vector<128x1xf32>
    %cst_9 = arith.constant 9.99999974E-6 : f32
    %15 = vector.broadcast %cst_9 : f32 to vector<128x1xf32>
    %16 = arith.addf %14, %15 : vector<128x1xf32>
    %17 = math.rsqrt %16 : vector<128x1xf32>
    %18 = vector.broadcast %17 : vector<128x1xf32> to vector<128x32xf32>
    %19 = arith.mulf %9, %18 : vector<128x32xf32>
    %20 = vector.broadcast %2 : vector<1x32xf32> to vector<128x32xf32>
    %21 = arith.mulf %19, %20 : vector<128x32xf32>
    %22 = vector.broadcast %3 : vector<1x32xf32> to vector<128x32xf32>
    %23 = arith.addf %21, %22 : vector<128x32xf32>
    %24 = arith.truncf %23 : vector<128x32xf32> to vector<128x32xbf16>
    %c0_10 = arith.constant 0 : index
    %c0_11 = arith.constant 0 : index
    %25 = vector.load %arg4[%c0_10, %c0_11] : memref<32x96xbf16, #tpu.memory_space<vmem>>, vector<32x96xbf16>
    %cst_12 = arith.constant dense<0.000000e+00> : vector<128x96xf32>
    %26 = tpu.matmul %24, %25, %cst_12 {dimension_numbers = #tpu.dot_dimension_numbers<[1], [0], [0], [1], [0, 0, 1, 1], [], []>} : vector<128x32xbf16>, vector<32x96xbf16>, vector<128x96xf32> -> vector<128x96xf32>
    %c0_13 = arith.constant 0 : index
    %c0_14 = arith.constant 0 : index
    %27 = vector.load %arg5[%c0_13, %c0_14] : memref<1x96xf32, #tpu.memory_space<vmem>>, vector<1x96xf32>
    %28 = vector.broadcast %27 : vector<1x96xf32> to vector<128x96xf32>
    %29 = arith.addf %26, %28 : vector<128x96xf32>
    %30 = vector.extract_strided_slice %29 {offsets = [0, 0], sizes = [128, 32], strides = [1, 1]} : vector<128x96xf32> to vector<128x32xf32>
    %cst_15 = arith.constant 0.353553385 : f32
    %31 = vector.broadcast %cst_15 : f32 to vector<128x32xf32>
    %32 = arith.mulf %30, %31 : vector<128x32xf32>
    %33 = arith.truncf %32 : vector<128x32xf32> to vector<128x32xbf16>
    %34 = vector.extract_strided_slice %29 {offsets = [0, 32], sizes = [128, 32], strides = [1, 1]} : vector<128x96xf32> to vector<128x32xf32>
    %35 = arith.truncf %34 : vector<128x32xf32> to vector<128x32xbf16>
    %36 = vector.extract_strided_slice %29 {offsets = [0, 64], sizes = [128, 32], strides = [1, 1]} : vector<128x96xf32> to vector<128x32xf32>
    %37 = arith.truncf %36 : vector<128x32xf32> to vector<128x32xbf16>
    %38 = vector.extract_strided_slice %33 {offsets = [0, 0], sizes = [64, 8], strides = [1, 1]} : vector<128x32xbf16> to vector<64x8xbf16>
    %39 = vector.extract_strided_slice %33 {offsets = [0, 8], sizes = [64, 8], strides = [1, 1]} : vector<128x32xbf16> to vector<64x8xbf16>
    %40 = vector.extract_strided_slice %33 {offsets = [0, 16], sizes = [64, 8], strides = [1, 1]} : vector<128x32xbf16> to vector<64x8xbf16>
    %41 = vector.extract_strided_slice %33 {offsets = [0, 24], sizes = [64, 8], strides = [1, 1]} : vector<128x32xbf16> to vector<64x8xbf16>
    %42 = vector.shape_cast %38 : vector<64x8xbf16> to vector<1x64x8xbf16>
    %43 = vector.shape_cast %39 : vector<64x8xbf16> to vector<1x64x8xbf16>
    %44 = vector.shape_cast %40 : vector<64x8xbf16> to vector<1x64x8xbf16>
    %45 = vector.shape_cast %41 : vector<64x8xbf16> to vector<1x64x8xbf16>
    %46 = tpu.concatenate %42, %43, %44, %45 in 0 : vector<1x64x8xbf16>, vector<1x64x8xbf16>, vector<1x64x8xbf16>, vector<1x64x8xbf16> -> vector<4x64x8xbf16>
    %47 = vector.extract_strided_slice %35 {offsets = [0, 0], sizes = [64, 8], strides = [1, 1]} : vector<128x32xbf16> to vector<64x8xbf16>
    %48 = vector.extract_strided_slice %35 {offsets = [0, 8], sizes = [64, 8], strides = [1, 1]} : vector<128x32xbf16> to vector<64x8xbf16>
    %49 = vector.extract_strided_slice %35 {offsets = [0, 16], sizes = [64, 8], strides = [1, 1]} : vector<128x32xbf16> to vector<64x8xbf16>
    %50 = vector.extract_strided_slice %35 {offsets = [0, 24], sizes = [64, 8], strides = [1, 1]} : vector<128x32xbf16> to vector<64x8xbf16>
    %51 = vector.shape_cast %47 : vector<64x8xbf16> to vector<1x64x8xbf16>
    %52 = vector.shape_cast %48 : vector<64x8xbf16> to vector<1x64x8xbf16>
    %53 = vector.shape_cast %49 : vector<64x8xbf16> to vector<1x64x8xbf16>
    %54 = vector.shape_cast %50 : vector<64x8xbf16> to vector<1x64x8xbf16>
    %55 = tpu.concatenate %51, %52, %53, %54 in 0 : vector<1x64x8xbf16>, vector<1x64x8xbf16>, vector<1x64x8xbf16>, vector<1x64x8xbf16> -> vector<4x64x8xbf16>
    %56 = vector.extract_strided_slice %37 {offsets = [0, 0], sizes = [64, 8], strides = [1, 1]} : vector<128x32xbf16> to vector<64x8xbf16>
    %57 = vector.extract_strided_slice %37 {offsets = [0, 8], sizes = [64, 8], strides = [1, 1]} : vector<128x32xbf16> to vector<64x8xbf16>
    %58 = vector.extract_strided_slice %37 {offsets = [0, 16], sizes = [64, 8], strides = [1, 1]} : vector<128x32xbf16> to vector<64x8xbf16>
    %59 = vector.extract_strided_slice %37 {offsets = [0, 24], sizes = [64, 8], strides = [1, 1]} : vector<128x32xbf16> to vector<64x8xbf16>
    %60 = vector.shape_cast %56 : vector<64x8xbf16> to vector<1x64x8xbf16>
    %61 = vector.shape_cast %57 : vector<64x8xbf16> to vector<1x64x8xbf16>
    %62 = vector.shape_cast %58 : vector<64x8xbf16> to vector<1x64x8xbf16>
    %63 = vector.shape_cast %59 : vector<64x8xbf16> to vector<1x64x8xbf16>
    %64 = tpu.concatenate %60, %61, %62, %63 in 0 : vector<1x64x8xbf16>, vector<1x64x8xbf16>, vector<1x64x8xbf16>, vector<1x64x8xbf16> -> vector<4x64x8xbf16>
    "tpu.trace_start"() <{level = 10 : i32, message = "hqd,hkd->hqk"}> : () -> ()
    %cst_16 = arith.constant dense<0.000000e+00> : vector<4x64x64xf32>
    %65 = tpu.matmul %46, %55, %cst_16 {dimension_numbers = #tpu.dot_dimension_numbers<[2], [2], [1], [1], [0, 0, 0, 1, 1, 1], [0], [0]>} : vector<4x64x8xbf16>, vector<4x64x8xbf16>, vector<4x64x64xf32> -> vector<4x64x64xf32>
    "tpu.trace_stop"() : () -> ()
    %cst_17 = arith.constant dense<0xFF800000> : vector<4x64xf32>
    %66 = vector.multi_reduction <maximumf>, %65, %cst_17 [2] : vector<4x64x64xf32> to vector<4x64xf32>
    %67 = vector.shape_cast %66 : vector<4x64xf32> to vector<4x64x1xf32>
    %68 = vector.broadcast %67 : vector<4x64x1xf32> to vector<4x64x64xf32>
    %69 = arith.subf %65, %68 : vector<4x64x64xf32>
    %70 = math.exp %69 : vector<4x64x64xf32>
    %cst_18 = arith.constant dense<0.000000e+00> : vector<4x64xf32>
    %71 = vector.multi_reduction <add>, %70, %cst_18 [2] : vector<4x64x64xf32> to vector<4x64xf32>
    %72 = vector.shape_cast %71 : vector<4x64xf32> to vector<4x64x1xf32>
    %73 = tpu.reciprocal %72 {approx = true} : vector<4x64x1xf32> -> vector<4x64x1xf32>
    %74 = vector.broadcast %73 : vector<4x64x1xf32> to vector<4x64x64xf32>
    %75 = arith.mulf %70, %74 : vector<4x64x64xf32>
    %76 = arith.truncf %75 : vector<4x64x64xf32> to vector<4x64x64xbf16>
    "tpu.trace_start"() <{level = 10 : i32, message = "hqk,hkd->hqd"}> : () -> ()
    %cst_19 = arith.constant dense<0.000000e+00> : vector<4x64x8xf32>
    %77 = tpu.matmul %76, %64, %cst_19 {dimension_numbers = #tpu.dot_dimension_numbers<[2], [1], [1], [2], [0, 0, 0, 1, 1, 2], [0], [0]>} : vector<4x64x64xbf16>, vector<4x64x8xbf16>, vector<4x64x8xf32> -> vector<4x64x8xf32>
    "tpu.trace_stop"() : () -> ()
    %78 = vector.extract_strided_slice %77 {offsets = [0, 0, 0], sizes = [1, 64, 8], strides = [1, 1, 1]} : vector<4x64x8xf32> to vector<1x64x8xf32>
    %79 = vector.shape_cast %78 : vector<1x64x8xf32> to vector<64x8xf32>
    %80 = vector.extract_strided_slice %77 {offsets = [1, 0, 0], sizes = [1, 64, 8], strides = [1, 1, 1]} : vector<4x64x8xf32> to vector<1x64x8xf32>
    %81 = vector.shape_cast %80 : vector<1x64x8xf32> to vector<64x8xf32>
    %82 = vector.extract_strided_slice %77 {offsets = [2, 0, 0], sizes = [1, 64, 8], strides = [1, 1, 1]} : vector<4x64x8xf32> to vector<1x64x8xf32>
    %83 = vector.shape_cast %82 : vector<1x64x8xf32> to vector<64x8xf32>
    %84 = vector.extract_strided_slice %77 {offsets = [3, 0, 0], sizes = [1, 64, 8], strides = [1, 1, 1]} : vector<4x64x8xf32> to vector<1x64x8xf32>
    %85 = vector.shape_cast %84 : vector<1x64x8xf32> to vector<64x8xf32>
    %86 = tpu.concatenate %79, %81, %83, %85 in 1 : vector<64x8xf32>, vector<64x8xf32>, vector<64x8xf32>, vector<64x8xf32> -> vector<64x32xf32>
    %87 = vector.extract_strided_slice %33 {offsets = [64, 0], sizes = [64, 8], strides = [1, 1]} : vector<128x32xbf16> to vector<64x8xbf16>
    %88 = vector.extract_strided_slice %33 {offsets = [64, 8], sizes = [64, 8], strides = [1, 1]} : vector<128x32xbf16> to vector<64x8xbf16>
    %89 = vector.extract_strided_slice %33 {offsets = [64, 16], sizes = [64, 8], strides = [1, 1]} : vector<128x32xbf16> to vector<64x8xbf16>
    %90 = vector.extract_strided_slice %33 {offsets = [64, 24], sizes = [64, 8], strides = [1, 1]} : vector<128x32xbf16> to vector<64x8xbf16>
    %91 = vector.shape_cast %87 : vector<64x8xbf16> to vector<1x64x8xbf16>
    %92 = vector.shape_cast %88 : vector<64x8xbf16> to vector<1x64x8xbf16>
    %93 = vector.shape_cast %89 : vector<64x8xbf16> to vector<1x64x8xbf16>
    %94 = vector.shape_cast %90 : vector<64x8xbf16> to vector<1x64x8xbf16>
    %95 = tpu.concatenate %91, %92, %93, %94 in 0 : vector<1x64x8xbf16>, vector<1x64x8xbf16>, vector<1x64x8xbf16>, vector<1x64x8xbf16> -> vector<4x64x8xbf16>
    %96 = vector.extract_strided_slice %35 {offsets = [64, 0], sizes = [64, 8], strides = [1, 1]} : vector<128x32xbf16> to vector<64x8xbf16>
    %97 = vector.extract_strided_slice %35 {offsets = [64, 8], sizes = [64, 8], strides = [1, 1]} : vector<128x32xbf16> to vector<64x8xbf16>
    %98 = vector.extract_strided_slice %35 {offsets = [64, 16], sizes = [64, 8], strides = [1, 1]} : vector<128x32xbf16> to vector<64x8xbf16>
    %99 = vector.extract_strided_slice %35 {offsets = [64, 24], sizes = [64, 8], strides = [1, 1]} : vector<128x32xbf16> to vector<64x8xbf16>
    %100 = vector.shape_cast %96 : vector<64x8xbf16> to vector<1x64x8xbf16>
    %101 = vector.shape_cast %97 : vector<64x8xbf16> to vector<1x64x8xbf16>
    %102 = vector.shape_cast %98 : vector<64x8xbf16> to vector<1x64x8xbf16>
    %103 = vector.shape_cast %99 : vector<64x8xbf16> to vector<1x64x8xbf16>
    %104 = tpu.concatenate %100, %101, %102, %103 in 0 : vector<1x64x8xbf16>, vector<1x64x8xbf16>, vector<1x64x8xbf16>, vector<1x64x8xbf16> -> vector<4x64x8xbf16>
    %105 = vector.extract_strided_slice %37 {offsets = [64, 0], sizes = [64, 8], strides = [1, 1]} : vector<128x32xbf16> to vector<64x8xbf16>
    %106 = vector.extract_strided_slice %37 {offsets = [64, 8], sizes = [64, 8], strides = [1, 1]} : vector<128x32xbf16> to vector<64x8xbf16>
    %107 = vector.extract_strided_slice %37 {offsets = [64, 16], sizes = [64, 8], strides = [1, 1]} : vector<128x32xbf16> to vector<64x8xbf16>
    %108 = vector.extract_strided_slice %37 {offsets = [64, 24], sizes = [64, 8], strides = [1, 1]} : vector<128x32xbf16> to vector<64x8xbf16>
    %109 = vector.shape_cast %105 : vector<64x8xbf16> to vector<1x64x8xbf16>
    %110 = vector.shape_cast %106 : vector<64x8xbf16> to vector<1x64x8xbf16>
    %111 = vector.shape_cast %107 : vector<64x8xbf16> to vector<1x64x8xbf16>
    %112 = vector.shape_cast %108 : vector<64x8xbf16> to vector<1x64x8xbf16>
    %113 = tpu.concatenate %109, %110, %111, %112 in 0 : vector<1x64x8xbf16>, vector<1x64x8xbf16>, vector<1x64x8xbf16>, vector<1x64x8xbf16> -> vector<4x64x8xbf16>
    "tpu.trace_start"() <{level = 10 : i32, message = "hqd,hkd->hqk"}> : () -> ()
    %cst_20 = arith.constant dense<0.000000e+00> : vector<4x64x64xf32>
    %114 = tpu.matmul %95, %104, %cst_20 {dimension_numbers = #tpu.dot_dimension_numbers<[2], [2], [1], [1], [0, 0, 0, 1, 1, 1], [0], [0]>} : vector<4x64x8xbf16>, vector<4x64x8xbf16>, vector<4x64x64xf32> -> vector<4x64x64xf32>
    "tpu.trace_stop"() : () -> ()
    %cst_21 = arith.constant dense<0xFF800000> : vector<4x64xf32>
    %115 = vector.multi_reduction <maximumf>, %114, %cst_21 [2] : vector<4x64x64xf32> to vector<4x64xf32>
    %116 = vector.shape_cast %115 : vector<4x64xf32> to vector<4x64x1xf32>
    %117 = vector.broadcast %116 : vector<4x64x1xf32> to vector<4x64x64xf32>
    %118 = arith.subf %114, %117 : vector<4x64x64xf32>
    %119 = math.exp %118 : vector<4x64x64xf32>
    %cst_22 = arith.constant dense<0.000000e+00> : vector<4x64xf32>
    %120 = vector.multi_reduction <add>, %119, %cst_22 [2] : vector<4x64x64xf32> to vector<4x64xf32>
    %121 = vector.shape_cast %120 : vector<4x64xf32> to vector<4x64x1xf32>
    %122 = tpu.reciprocal %121 {approx = true} : vector<4x64x1xf32> -> vector<4x64x1xf32>
    %123 = vector.broadcast %122 : vector<4x64x1xf32> to vector<4x64x64xf32>
    %124 = arith.mulf %119, %123 : vector<4x64x64xf32>
    %125 = arith.truncf %124 : vector<4x64x64xf32> to vector<4x64x64xbf16>
    "tpu.trace_start"() <{level = 10 : i32, message = "hqk,hkd->hqd"}> : () -> ()
    %cst_23 = arith.constant dense<0.000000e+00> : vector<4x64x8xf32>
    %126 = tpu.matmul %125, %113, %cst_23 {dimension_numbers = #tpu.dot_dimension_numbers<[2], [1], [1], [2], [0, 0, 0, 1, 1, 2], [0], [0]>} : vector<4x64x64xbf16>, vector<4x64x8xbf16>, vector<4x64x8xf32> -> vector<4x64x8xf32>
    "tpu.trace_stop"() : () -> ()
    %127 = vector.extract_strided_slice %126 {offsets = [0, 0, 0], sizes = [1, 64, 8], strides = [1, 1, 1]} : vector<4x64x8xf32> to vector<1x64x8xf32>
    %128 = vector.shape_cast %127 : vector<1x64x8xf32> to vector<64x8xf32>
    %129 = vector.extract_strided_slice %126 {offsets = [1, 0, 0], sizes = [1, 64, 8], strides = [1, 1, 1]} : vector<4x64x8xf32> to vector<1x64x8xf32>
    %130 = vector.shape_cast %129 : vector<1x64x8xf32> to vector<64x8xf32>
    %131 = vector.extract_strided_slice %126 {offsets = [2, 0, 0], sizes = [1, 64, 8], strides = [1, 1, 1]} : vector<4x64x8xf32> to vector<1x64x8xf32>
    %132 = vector.shape_cast %131 : vector<1x64x8xf32> to vector<64x8xf32>
    %133 = vector.extract_strided_slice %126 {offsets = [3, 0, 0], sizes = [1, 64, 8], strides = [1, 1, 1]} : vector<4x64x8xf32> to vector<1x64x8xf32>
    %134 = vector.shape_cast %133 : vector<1x64x8xf32> to vector<64x8xf32>
    %135 = tpu.concatenate %128, %130, %132, %134 in 1 : vector<64x8xf32>, vector<64x8xf32>, vector<64x8xf32>, vector<64x8xf32> -> vector<64x32xf32>
    %136 = tpu.concatenate %86, %135 in 0 : vector<64x32xf32>, vector<64x32xf32> -> vector<128x32xf32>
    %137 = arith.truncf %136 : vector<128x32xf32> to vector<128x32xbf16>
    %c0_24 = arith.constant 0 : index
    %c0_25 = arith.constant 0 : index
    %138 = vector.load %arg6[%c0_24, %c0_25] : memref<32x32xbf16, #tpu.memory_space<vmem>>, vector<32x32xbf16>
    %cst_26 = arith.constant dense<0.000000e+00> : vector<128x32xf32>
    %139 = tpu.matmul %137, %138, %cst_26 {dimension_numbers = #tpu.dot_dimension_numbers<[1], [0], [0], [1], [0, 0, 1, 1], [], []>} : vector<128x32xbf16>, vector<32x32xbf16>, vector<128x32xf32> -> vector<128x32xf32>
    %c0_27 = arith.constant 0 : index
    %c0_28 = arith.constant 0 : index
    %140 = vector.load %arg7[%c0_27, %c0_28] : memref<1x32xf32, #tpu.memory_space<vmem>>, vector<1x32xf32>
    %141 = vector.broadcast %140 : vector<1x32xf32> to vector<128x32xf32>
    %142 = arith.addf %139, %141 : vector<128x32xf32>
    %143 = arith.addf %1, %142 : vector<128x32xf32>
    %c0_29 = arith.constant 0 : index
    %c0_30 = arith.constant 0 : index
    %144 = vector.load %arg8[%c0_29, %c0_30] : memref<1x32xf32, #tpu.memory_space<vmem>>, vector<1x32xf32>
    %c0_31 = arith.constant 0 : index
    %c0_32 = arith.constant 0 : index
    %145 = vector.load %arg9[%c0_31, %c0_32] : memref<1x32xf32, #tpu.memory_space<vmem>>, vector<1x32xf32>
    %cst_33 = arith.constant dense<0.000000e+00> : vector<128xf32>
    %146 = vector.multi_reduction <add>, %143, %cst_33 [1] : vector<128x32xf32> to vector<128xf32>
    %147 = vector.shape_cast %146 : vector<128xf32> to vector<128x1xf32>
    %cst_34 = arith.constant 3.200000e+01 : f32
    %148 = vector.broadcast %cst_34 : f32 to vector<128x1xf32>
    %149 = arith.divf %147, %148 : vector<128x1xf32>
    %150 = vector.broadcast %149 : vector<128x1xf32> to vector<128x32xf32>
    %151 = arith.subf %143, %150 : vector<128x32xf32>
    %152 = arith.mulf %151, %151 : vector<128x32xf32>
    %cst_35 = arith.constant dense<0.000000e+00> : vector<128xf32>
    %153 = vector.multi_reduction <add>, %152, %cst_35 [1] : vector<128x32xf32> to vector<128xf32>
    %154 = vector.shape_cast %153 : vector<128xf32> to vector<128x1xf32>
    %cst_36 = arith.constant 3.200000e+01 : f32
    %155 = vector.broadcast %cst_36 : f32 to vector<128x1xf32>
    %156 = arith.divf %154, %155 : vector<128x1xf32>
    %cst_37 = arith.constant 9.99999974E-6 : f32
    %157 = vector.broadcast %cst_37 : f32 to vector<128x1xf32>
    %158 = arith.addf %156, %157 : vector<128x1xf32>
    %159 = math.rsqrt %158 : vector<128x1xf32>
    %160 = vector.broadcast %159 : vector<128x1xf32> to vector<128x32xf32>
    %161 = arith.mulf %151, %160 : vector<128x32xf32>
    %162 = vector.broadcast %144 : vector<1x32xf32> to vector<128x32xf32>
    %163 = arith.mulf %161, %162 : vector<128x32xf32>
    %164 = vector.broadcast %145 : vector<1x32xf32> to vector<128x32xf32>
    %165 = arith.addf %163, %164 : vector<128x32xf32>
    %166 = arith.truncf %165 : vector<128x32xf32> to vector<128x32xbf16>
    %c0_38 = arith.constant 0 : index
    %c0_39 = arith.constant 0 : index
    %167 = vector.load %arg10[%c0_38, %c0_39] : memref<32x128xbf16, #tpu.memory_space<vmem>>, vector<32x128xbf16>
    %cst_40 = arith.constant dense<0.000000e+00> : vector<128x128xf32>
    %168 = tpu.matmul %166, %167, %cst_40 {dimension_numbers = #tpu.dot_dimension_numbers<[1], [0], [0], [1], [0, 0, 1, 1], [], []>} : vector<128x32xbf16>, vector<32x128xbf16>, vector<128x128xf32> -> vector<128x128xf32>
    %c0_41 = arith.constant 0 : index
    %c0_42 = arith.constant 0 : index
    %169 = vector.load %arg11[%c0_41, %c0_42] : memref<1x128xf32, #tpu.memory_space<vmem>>, vector<1x128xf32>
    %170 = vector.broadcast %169 : vector<1x128xf32> to vector<128x128xf32>
    %171 = arith.addf %168, %170 : vector<128x128xf32>
    %cst_43 = arith.constant 5.000000e-01 : f32
    %172 = vector.broadcast %cst_43 : f32 to vector<128x128xf32>
    %173 = arith.mulf %172, %171 : vector<128x128xf32>
    %cst_44 = arith.constant 0.707106769 : f32
    %174 = vector.broadcast %cst_44 : f32 to vector<128x128xf32>
    %175 = arith.mulf %171, %174 : vector<128x128xf32>
    %176 = math.erf %175 : vector<128x128xf32>
    %cst_45 = arith.constant 1.000000e+00 : f32
    %177 = vector.broadcast %cst_45 : f32 to vector<128x128xf32>
    %178 = arith.addf %177, %176 : vector<128x128xf32>
    %179 = arith.mulf %173, %178 : vector<128x128xf32>
    %180 = arith.truncf %179 : vector<128x128xf32> to vector<128x128xbf16>
    %c0_46 = arith.constant 0 : index
    %c0_47 = arith.constant 0 : index
    %181 = vector.load %arg12[%c0_46, %c0_47] : memref<128x32xbf16, #tpu.memory_space<vmem>>, vector<128x32xbf16>
    %cst_48 = arith.constant dense<0.000000e+00> : vector<128x32xf32>
    %182 = tpu.matmul %180, %181, %cst_48 {dimension_numbers = #tpu.dot_dimension_numbers<[1], [0], [0], [1], [0, 0, 1, 1], [], []>} : vector<128x128xbf16>, vector<128x32xbf16>, vector<128x32xf32> -> vector<128x32xf32>
    %c0_49 = arith.constant 0 : index
    %c0_50 = arith.constant 0 : index
    %183 = vector.load %arg13[%c0_49, %c0_50] : memref<1x32xf32, #tpu.memory_space<vmem>>, vector<1x32xf32>
    %184 = vector.broadcast %183 : vector<1x32xf32> to vector<128x32xf32>
    %185 = arith.addf %182, %184 : vector<128x32xf32>
    %186 = arith.addf %143, %185 : vector<128x32xf32>
    %187 = vector.shape_cast %186 : vector<128x32xf32> to vector<2x64x32xf32>
    %c0_51 = arith.constant 0 : index
    %c0_52 = arith.constant 0 : index
    %c0_53 = arith.constant 0 : index
    %188 = vector.load %arg14[%c0_51, %c0_52, %c0_53] : memref<2x64x32xf32, #tpu.memory_space<vmem>>, vector<2x64x32xf32>
    tpu.vector_store %arg14[%c0_51, %c0_52, %c0_53], %187 {strides = array<i32>} : memref<2x64x32xf32, #tpu.memory_space<vmem>>, vector<2x64x32xf32>,
    return
  }
  func.func @transform_0(%arg0: i32) -> (i32, i32, i32) {
    %c0_i32 = arith.constant 0 : i32
    %c0_i32_0 = arith.constant 0 : i32
    %c0_i32_1 = arith.constant 0 : i32
    return %arg0, %c0_i32, %c0_i32_0 : i32, i32, i32
  }
  func.func @transform_1(%arg0: i32) -> (i32, i32) {
    %c0_i32 = arith.constant 0 : i32
    %c0_i32_0 = arith.constant 0 : i32
    %c0_i32_1 = arith.constant 0 : i32
    return %c0_i32, %c0_i32_0 : i32, i32
  }
  func.func @transform_2(%arg0: i32) -> (i32, i32) {
    %c0_i32 = arith.constant 0 : i32
    %c0_i32_0 = arith.constant 0 : i32
    %c0_i32_1 = arith.constant 0 : i32
    return %c0_i32, %c0_i32_0 : i32, i32
  }
  func.func @transform_3(%arg0: i32) -> (i32, i32) {
    %c0_i32 = arith.constant 0 : i32
    %c0_i32_0 = arith.constant 0 : i32
    %c0_i32_1 = arith.constant 0 : i32
    return %c0_i32, %c0_i32_0 : i32, i32
  }
  func.func @transform_4(%arg0: i32) -> (i32, i32) {
    %c0_i32 = arith.constant 0 : i32
    %c0_i32_0 = arith.constant 0 : i32
    %c0_i32_1 = arith.constant 0 : i32
    return %c0_i32, %c0_i32_0 : i32, i32
  }
  func.func @transform_5(%arg0: i32) -> (i32, i32) {
    %c0_i32 = arith.constant 0 : i32
    %c0_i32_0 = arith.constant 0 : i32
    %c0_i32_1 = arith.constant 0 : i32
    return %c0_i32, %c0_i32_0 : i32, i32
  }
  func.func @transform_6(%arg0: i32) -> (i32, i32) {
    %c0_i32 = arith.constant 0 : i32
    %c0_i32_0 = arith.constant 0 : i32
    %c0_i32_1 = arith.constant 0 : i32
    return %c0_i32, %c0_i32_0 : i32, i32
  }
  func.func @transform_7(%arg0: i32) -> (i32, i32) {
    %c0_i32 = arith.constant 0 : i32
    %c0_i32_0 = arith.constant 0 : i32
    %c0_i32_1 = arith.constant 0 : i32
    return %c0_i32, %c0_i32_0 : i32, i32
  }
  func.func @transform_8(%arg0: i32) -> (i32, i32) {
    %c0_i32 = arith.constant 0 : i32
    %c0_i32_0 = arith.constant 0 : i32
    %c0_i32_1 = arith.constant 0 : i32
    return %c0_i32, %c0_i32_0 : i32, i32
  }
  func.func @transform_9(%arg0: i32) -> (i32, i32) {
    %c0_i32 = arith.constant 0 : i32
    %c0_i32_0 = arith.constant 0 : i32
    %c0_i32_1 = arith.constant 0 : i32
    return %c0_i32, %c0_i32_0 : i32, i32
  }
  func.func @transform_10(%arg0: i32) -> (i32, i32) {
    %c0_i32 = arith.constant 0 : i32
    %c0_i32_0 = arith.constant 0 : i32
    %c0_i32_1 = arith.constant 0 : i32
    return %c0_i32, %c0_i32_0 : i32, i32
  }
  func.func @transform_11(%arg0: i32) -> (i32, i32) {
    %c0_i32 = arith.constant 0 : i32
    %c0_i32_0 = arith.constant 0 : i32
    %c0_i32_1 = arith.constant 0 : i32
    return %c0_i32, %c0_i32_0 : i32, i32
  }
  func.func @transform_12(%arg0: i32) -> (i32, i32) {
    %c0_i32 = arith.constant 0 : i32
    %c0_i32_0 = arith.constant 0 : i32
    %c0_i32_1 = arith.constant 0 : i32
    return %c0_i32, %c0_i32_0 : i32, i32
  }
  func.func @transform_13(%arg0: i32) -> (i32, i32, i32) {
    %c0_i32 = arith.constant 0 : i32
    %c0_i32_0 = arith.constant 0 : i32
    %c0_i32_1 = arith.constant 0 : i32
    return %arg0, %c0_i32, %c0_i32_0 : i32, i32, i32
  }
}

</mosaic_0001>

<llo_original>
// kernel: tpu_custom_call.1
$region0: #{tpu_custom_call.1}
  #allocation0 [shape = 'u32[]', space=smem, size = 0x4, offset = 0x4, fixed_abs, tag = 'smem constant byte address 0x4 - core index']
  #allocation1 [shape = 'u32[72,128]{1,0:T(1,128)}', space=vmem, size = 0x9000, scoped, tag = 'internal scratch']
  %s0 = inlined_call_operand.vmem [shape: f32[2,64,32], index: 0, kind: input, shape index: {}]
  %s1 = inlined_call_operand.vmem [shape: f32[1,32], index: 1, kind: input, shape index: {}]
  %s2 = inlined_call_operand.vmem [shape: f32[1,32], index: 2, kind: input, shape index: {}]
  %s3 = inlined_call_operand.vmem [shape: bf16[32,96], index: 3, kind: input, shape index: {}]
  %s4 = inlined_call_operand.vmem [shape: f32[1,96], index: 4, kind: input, shape index: {}]
  %s5 = inlined_call_operand.vmem [shape: bf16[32,32], index: 5, kind: input, shape index: {}]
  %s6 = inlined_call_operand.vmem [shape: f32[1,32], index: 6, kind: input, shape index: {}]
  %s7 = inlined_call_operand.vmem [shape: f32[1,32], index: 7, kind: input, shape index: {}]
  %s8 = inlined_call_operand.vmem [shape: f32[1,32], index: 8, kind: input, shape index: {}]
  %s9 = inlined_call_operand.vmem [shape: bf16[32,128], index: 9, kind: input, shape index: {}]
  %s10 = inlined_call_operand.vmem [shape: f32[1,128], index: 10, kind: input, shape index: {}]
  %s11 = inlined_call_operand.vmem [shape: bf16[128,32], index: 11, kind: input, shape index: {}]
  %s12 = inlined_call_operand.vmem [shape: f32[1,32], index: 12, kind: input, shape index: {}]
  %s13 = inlined_call_operand.vmem [shape: f32[2,64,32], index: 13, kind: output, shape index: {}]
  %s14 = sld [smem:[#allocation0]]
  $region62: #{tpu_custom_call.1} parent=0
    _
  %s16 = ssub.s32 1, %s14
  %s17 = scalar_select 0, %s16, %s14
  // Predicated region
  $region2: #{tpu_custom_call.1} parent=0 // pred_check
    _
  $region3: #{tpu_custom_call.1} parent=0 // pred_check_branch
    %19 = sbr.rel (0) target = $region5
  $region4: #{tpu_custom_call.1} parent=0 // pred_region
    _
  $region5: #{tpu_custom_call.1} parent=0 // pred_fallthru
    _
  // Predicated region
  $region6: #{tpu_custom_call.1} parent=0 // pred_check
    _
  $region7: #{tpu_custom_call.1} parent=0 // pred_check_branch
    %21 = sbr.rel (0) target = $region9
  $region8: #{tpu_custom_call.1} parent=0 // pred_region
    _
  $region9: #{tpu_custom_call.1} parent=0 // pred_fallthru
    _
  // Predicated region
  $region10: #{tpu_custom_call.1} parent=0 // pred_check
    _
  $region11: #{tpu_custom_call.1} parent=0 // pred_check_branch
    %23 = sbr.rel (0) target = $region13
  $region12: #{tpu_custom_call.1} parent=0 // pred_region
    _
  $region13: #{tpu_custom_call.1} parent=0 // pred_fallthru
    _
  // Predicated region
  $region14: #{tpu_custom_call.1} parent=0 // pred_check
    _
  $region15: #{tpu_custom_call.1} parent=0 // pred_check_branch
    %25 = sbr.rel (0) target = $region17
  $region16: #{tpu_custom_call.1} parent=0 // pred_region
    _
  $region17: #{tpu_custom_call.1} parent=0 // pred_fallthru
    _
  // Predicated region
  $region18: #{tpu_custom_call.1} parent=0 // pred_check
    _
  $region19: #{tpu_custom_call.1} parent=0 // pred_check_branch
    %27 = sbr.rel (0) target = $region21
  $region20: #{tpu_custom_call.1} parent=0 // pred_region
    _
  $region21: #{tpu_custom_call.1} parent=0 // pred_fallthru
    _
  // Predicated region
  $region22: #{tpu_custom_call.1} parent=0 // pred_check
    _
  $region23: #{tpu_custom_call.1} parent=0 // pred_check_branch
    %29 = sbr.rel (0) target = $region25
  $region24: #{tpu_custom_call.1} parent=0 // pred_region
    _
  $region25: #{tpu_custom_call.1} parent=0 // pred_fallthru
    _
  // Predicated region
  $region26: #{tpu_custom_call.1} parent=0 // pred_check
    _
  $region27: #{tpu_custom_call.1} parent=0 // pred_check_branch
    %31 = sbr.rel (0) target = $region29
  $region28: #{tpu_custom_call.1} parent=0 // pred_region
    _
  $region29: #{tpu_custom_call.1} parent=0 // pred_fallthru
    _
  // Predicated region
  $region30: #{tpu_custom_call.1} parent=0 // pred_check
    _
  $region31: #{tpu_custom_call.1} parent=0 // pred_check_branch
    %33 = sbr.rel (0) target = $region33
  $region32: #{tpu_custom_call.1} parent=0 // pred_region
    _
  $region33: #{tpu_custom_call.1} parent=0 // pred_fallthru
    _
  // Predicated region
  $region34: #{tpu_custom_call.1} parent=0 // pred_check
    _
  $region35: #{tpu_custom_call.1} parent=0 // pred_check_branch
    %35 = sbr.rel (0) target = $region37
  $region36: #{tpu_custom_call.1} parent=0 // pred_region
    _
  $region37: #{tpu_custom_call.1} parent=0 // pred_fallthru
    _
  // Predicated region
  $region38: #{tpu_custom_call.1} parent=0 // pred_check
    _
  $region39: #{tpu_custom_call.1} parent=0 // pred_check_branch
    %37 = sbr.rel (0) target = $region41
  $region40: #{tpu_custom_call.1} parent=0 // pred_region
    _
  $region41: #{tpu_custom_call.1} parent=0 // pred_fallthru
    _
  // Predicated region
  $region42: #{tpu_custom_call.1} parent=0 // pred_check
    _
  $region43: #{tpu_custom_call.1} parent=0 // pred_check_branch
    %39 = sbr.rel (0) target = $region45
  $region44: #{tpu_custom_call.1} parent=0 // pred_region
    _
  $region45: #{tpu_custom_call.1} parent=0 // pred_fallthru
    _
  // Predicated region
  $region46: #{tpu_custom_call.1} parent=0 // pred_check
    _
  $region47: #{tpu_custom_call.1} parent=0 // pred_check_branch
    %41 = sbr.rel (0) target = $region49
  $region48: #{tpu_custom_call.1} parent=0 // pred_region
    _
  $region49: #{tpu_custom_call.1} parent=0 // pred_fallthru
    _
  // Predicated region
  $region50: #{tpu_custom_call.1} parent=0 // pred_check
    _
  $region51: #{tpu_custom_call.1} parent=0 // pred_check_branch
    %43 = sbr.rel (0) target = $region53
  $region52: #{tpu_custom_call.1} parent=0 // pred_region
    _
  $region53: #{tpu_custom_call.1} parent=0 // pred_fallthru
    _
  %v45 = vld [vmem:[%s0] sm:$0xff]
  %v46 = vld [vmem:[%s0 + $0x8] sm:$0xff]
  %v47 = vld [vmem:[%s0 + $0x10] sm:$0xff]
  %v48 = vld [vmem:[%s0 + $0x18] sm:$0xff]
  %v49 = vld [vmem:[%s0 + $0x20] sm:$0xff]
  %v50 = vld [vmem:[%s0 + $0x28] sm:$0xff]
  %v51 = vld [vmem:[%s0 + $0x30] sm:$0xff]
  %v52 = vld [vmem:[%s0 + $0x38] sm:$0xff]
  %v53 = vld [vmem:[%s0 + $0x40] sm:$0xff]
  %v54 = vld [vmem:[%s0 + $0x48] sm:$0xff]
  %v55 = vld [vmem:[%s0 + $0x50] sm:$0xff]
  %v56 = vld [vmem:[%s0 + $0x58] sm:$0xff]
  %v57 = vld [vmem:[%s0 + $0x60] sm:$0xff]
  %v58 = vld [vmem:[%s0 + $0x68] sm:$0xff]
  %v59 = vld [vmem:[%s0 + $0x70] sm:$0xff]
  %v60 = vld [vmem:[%s0 + $0x78] sm:$0xff]
  %v61 = vld [vmem:[%s1] sm:$0x1]
  %v62 = vld [vmem:[%s2] sm:$0x1]
  %vm63 = vcmask 261120
  %v64 = vsel %vm63, %v45, 0.0
  %65 = vadd.xlane.f32.xlu0 %v64
  %v66 = vpop.xlane.xlu0 %65
  %v67 = vsel %vm63, %v46, 0.0
  %68 = vadd.xlane.f32.xlu0 %v67
  %v69 = vpop.xlane.xlu0 %68
  %v70 = vsel %vm63, %v47, 0.0
  %71 = vadd.xlane.f32.xlu0 %v70
  %v72 = vpop.xlane.xlu0 %71
  %v73 = vsel %vm63, %v48, 0.0
  %74 = vadd.xlane.f32.xlu0 %v73
  %v75 = vpop.xlane.xlu0 %74
  %v76 = vsel %vm63, %v49, 0.0
  %77 = vadd.xlane.f32.xlu0 %v76
  %v78 = vpop.xlane.xlu0 %77
  %v79 = vsel %vm63, %v50, 0.0
  %80 = vadd.xlane.f32.xlu0 %v79
  %v81 = vpop.xlane.xlu0 %80
  %v82 = vsel %vm63, %v51, 0.0
  %83 = vadd.xlane.f32.xlu0 %v82
  %v84 = vpop.xlane.xlu0 %83
  %v85 = vsel %vm63, %v52, 0.0
  %86 = vadd.xlane.f32.xlu0 %v85
  %v87 = vpop.xlane.xlu0 %86
  %v88 = vsel %vm63, %v53, 0.0
  %89 = vadd.xlane.f32.xlu0 %v88
  %v90 = vpop.xlane.xlu0 %89
  %v91 = vsel %vm63, %v54, 0.0
  %92 = vadd.xlane.f32.xlu0 %v91
  %v93 = vpop.xlane.xlu0 %92
  %v94 = vsel %vm63, %v55, 0.0
  %95 = vadd.xlane.f32.xlu0 %v94
  %v96 = vpop.xlane.xlu0 %95
  %v97 = vsel %vm63, %v56, 0.0
  %98 = vadd.xlane.f32.xlu0 %v97
  %v99 = vpop.xlane.xlu0 %98
  %v100 = vsel %vm63, %v57, 0.0
  %101 = vadd.xlane.f32.xlu0 %v100
  %v102 = vpop.xlane.xlu0 %101
  %v103 = vsel %vm63, %v58, 0.0
  %104 = vadd.xlane.f32.xlu0 %v103
  %v105 = vpop.xlane.xlu0 %104
  %v106 = vsel %vm63, %v59, 0.0
  %107 = vadd.xlane.f32.xlu0 %v106
  %v108 = vpop.xlane.xlu0 %107
  %v109 = vsel %vm63, %v60, 0.0
  %110 = vadd.xlane.f32.xlu0 %v109
  %v111 = vpop.xlane.xlu0 %110
  %v112 = vrcp.pop 32.0
  %v113 = vmul.f32 32.0, %v112
  %v114 = vsub.f32 1.0, %v113
  %v115 = vmul.f32 %v112, %v114
  %v116 = vadd.f32 %v112, %v115
  %vm117 = vweird.f32 %v112
  %v118 = vsel %vm117, %v112, %v116
  %v119 = vmul.f32 %v66, %v118
  %v120 = vmul.f32 %v69, %v118
  %v121 = vmul.f32 %v72, %v118
  %v122 = vmul.f32 %v75, %v118
  %v123 = vmul.f32 %v78, %v118
  %v124 = vmul.f32 %v81, %v118
  %v125 = vmul.f32 %v84, %v118
  %v126 = vmul.f32 %v87, %v118
  %v127 = vmul.f32 %v90, %v118
  %v128 = vmul.f32 %v93, %v118
  %v129 = vmul.f32 %v96, %v118
  %v130 = vmul.f32 %v99, %v118
  %v131 = vmul.f32 %v102, %v118
  %v132 = vmul.f32 %v105, %v118
  %v133 = vmul.f32 %v108, %v118
  %v134 = vmul.f32 %v111, %v118
  %v135 = vsub.f32 %v45, %v119
  %v136 = vsub.f32 %v46, %v120
  %v137 = vsub.f32 %v47, %v121
  %v138 = vsub.f32 %v48, %v122
  %v139 = vsub.f32 %v49, %v123
  %v140 = vsub.f32 %v50, %v124
  %v141 = vsub.f32 %v51, %v125
  %v142 = vsub.f32 %v52, %v126
  %v143 = vsub.f32 %v53, %v127
  %v144 = vsub.f32 %v54, %v128
  %v145 = vsub.f32 %v55, %v129
  %v146 = vsub.f32 %v56, %v130
  %v147 = vsub.f32 %v57, %v131
  %v148 = vsub.f32 %v58, %v132
  %v149 = vsub.f32 %v59, %v133
  %v150 = vsub.f32 %v60, %v134
  %v151 = vmul.f32 %v135, %v135
  %v152 = vmul.f32 %v136, %v136
  %v153 = vmul.f32 %v137, %v137
  %v154 = vmul.f32 %v138, %v138
  %v155 = vmul.f32 %v139, %v139
  %v156 = vmul.f32 %v140, %v140
  %v157 = vmul.f32 %v141, %v141
  %v158 = vmul.f32 %v142, %v142
  %v159 = vmul.f32 %v143, %v143
  %v160 = vmul.f32 %v144, %v144
  %v161 = vmul.f32 %v145, %v145
  %v162 = vmul.f32 %v146, %v146
  %v163 = vmul.f32 %v147, %v147
  %v164 = vmul.f32 %v148, %v148
  %v165 = vmul.f32 %v149, %v149
  %v166 = vmul.f32 %v150, %v150
  %v167 = vsel %vm63, %v151, 0.0
  %168 = vadd.xlane.f32.xlu0 %v167
  %v169 = vpop.xlane.xlu0 %168
  %v170 = vsel %vm63, %v152, 0.0
  %171 = vadd.xlane.f32.xlu0 %v170
  %v172 = vpop.xlane.xlu0 %171
  %v173 = vsel %vm63, %v153, 0.0
  %174 = vadd.xlane.f32.xlu0 %v173
  %v175 = vpop.xlane.xlu0 %174
  %v176 = vsel %vm63, %v154, 0.0
  %177 = vadd.xlane.f32.xlu0 %v176
  %v178 = vpop.xlane.xlu0 %177
  %v179 = vsel %vm63, %v155, 0.0
  %180 = vadd.xlane.f32.xlu0 %v179
  %v181 = vpop.xlane.xlu0 %180
  %v182 = vsel %vm63, %v156, 0.0
  %183 = vadd.xlane.f32.xlu0 %v182
  %v184 = vpop.xlane.xlu0 %183
  %v185 = vsel %vm63, %v157, 0.0
  %186 = vadd.xlane.f32.xlu0 %v185
  %v187 = vpop.xlane.xlu0 %186
  %v188 = vsel %vm63, %v158, 0.0
  %189 = vadd.xlane.f32.xlu0 %v188
  %v190 = vpop.xlane.xlu0 %189
  %v191 = vsel %vm63, %v159, 0.0
  %192 = vadd.xlane.f32.xlu0 %v191
  %v193 = vpop.xlane.xlu0 %192
  %v194 = vsel %vm63, %v160, 0.0
  %195 = vadd.xlane.f32.xlu0 %v194
  %v196 = vpop.xlane.xlu0 %195
  %v197 = vsel %vm63, %v161, 0.0
  %198 = vadd.xlane.f32.xlu0 %v197
  %v199 = vpop.xlane.xlu0 %198
  %v200 = vsel %vm63, %v162, 0.0
  %201 = vadd.xlane.f32.xlu0 %v200
  %v202 = vpop.xlane.xlu0 %201
  %v203 = vsel %vm63, %v163, 0.0
  %204 = vadd.xlane.f32.xlu0 %v203
  %v205 = vpop.xlane.xlu0 %204
  %v206 = vsel %vm63, %v164, 0.0
  %207 = vadd.xlane.f32.xlu0 %v206
  %v208 = vpop.xlane.xlu0 %207
  %v209 = vsel %vm63, %v165, 0.0
  %210 = vadd.xlane.f32.xlu0 %v209
  %v211 = vpop.xlane.xlu0 %210
  %v212 = vsel %vm63, %v166, 0.0
  %213 = vadd.xlane.f32.xlu0 %v212
  %v214 = vpop.xlane.xlu0 %213
  %v215 = vmul.f32 %v169, %v118
  %v216 = vmul.f32 %v172, %v118
  %v217 = vmul.f32 %v175, %v118
  %v218 = vmul.f32 %v178, %v118
  %v219 = vmul.f32 %v181, %v118
  %v220 = vmul.f32 %v184, %v118
  %v221 = vmul.f32 %v187, %v118
  %v222 = vmul.f32 %v190, %v118
  %v223 = vmul.f32 %v193, %v118
  %v224 = vmul.f32 %v196, %v118
  %v225 = vmul.f32 %v199, %v118
  %v226 = vmul.f32 %v202, %v118
  %v227 = vmul.f32 %v205, %v118
  %v228 = vmul.f32 %v208, %v118
  %v229 = vmul.f32 %v211, %v118
  %v230 = vmul.f32 %v214, %v118
  %v231 = vadd.f32 %v215, 1e-05
  %v232 = vadd.f32 %v216, 1e-05
  %v233 = vadd.f32 %v217, 1e-05
  %v234 = vadd.f32 %v218, 1e-05
  %v235 = vadd.f32 %v219, 1e-05
  %v236 = vadd.f32 %v220, 1e-05
  %v237 = vadd.f32 %v221, 1e-05
  %v238 = vadd.f32 %v222, 1e-05
  %v239 = vadd.f32 %v223, 1e-05
  %v240 = vadd.f32 %v224, 1e-05
  %v241 = vadd.f32 %v225, 1e-05
  %v242 = vadd.f32 %v226, 1e-05
  %v243 = vadd.f32 %v227, 1e-05
  %v244 = vadd.f32 %v228, 1e-05
  %v245 = vadd.f32 %v229, 1e-05
  %v246 = vadd.f32 %v230, 1e-05
  %v247 = vrsqrt.pop %v231
  %v248 = vmul.f32 %v247, %v231
  %v249 = vmul.f32 %v248, %v247
  %v250 = vmul.f32 0.5, %v249
  %v251 = vsub.f32 1.5, %v250
  %v252 = vmul.f32 %v247, %v251
  %vm253 = vweird.f32 %v231
  %vm254 = vweird.f32 %v247
  %vm255 = vmor %vm253, %vm254
  %v256 = vsel %vm255, %v247, %v252
  %v257 = vrsqrt.pop %v232
  %v258 = vmul.f32 %v257, %v232
  %v259 = vmul.f32 %v258, %v257
  %v260 = vmul.f32 0.5, %v259
  %v261 = vsub.f32 1.5, %v260
  %v262 = vmul.f32 %v257, %v261
  %vm263 = vweird.f32 %v232
  %vm264 = vweird.f32 %v257
  %vm265 = vmor %vm263, %vm264
  %v266 = vsel %vm265, %v257, %v262
  %v267 = vrsqrt.pop %v233
  %v268 = vmul.f32 %v267, %v233
  %v269 = vmul.f32 %v268, %v267
  %v270 = vmul.f32 0.5, %v269
  %v271 = vsub.f32 1.5, %v270
  %v272 = vmul.f32 %v267, %v271
  %vm273 = vweird.f32 %v233
  %vm274 = vweird.f32 %v267
  %vm275 = vmor %vm273, %vm274
  %v276 = vsel %vm275, %v267, %v272
  %v277 = vrsqrt.pop %v234
  %v278 = vmul.f32 %v277, %v234
  %v279 = vmul.f32 %v278, %v277
  %v280 = vmul.f32 0.5, %v279
  %v281 = vsub.f32 1.5, %v280
  %v282 = vmul.f32 %v277, %v281
  %vm283 = vweird.f32 %v234
  %vm284 = vweird.f32 %v277
  %vm285 = vmor %vm283, %vm284
  %v286 = vsel %vm285, %v277, %v282
  %v287 = vrsqrt.pop %v235
  %v288 = vmul.f32 %v287, %v235
  %v289 = vmul.f32 %v288, %v287
  %v290 = vmul.f32 0.5, %v289
  %v291 = vsub.f32 1.5, %v290
  %v292 = vmul.f32 %v287, %v291
  %vm293 = vweird.f32 %v235
  %vm294 = vweird.f32 %v287
  %vm295 = vmor %vm293, %vm294
  %v296 = vsel %vm295, %v287, %v292
  %v297 = vrsqrt.pop %v236
  %v298 = vmul.f32 %v297, %v236
  %v299 = vmul.f32 %v298, %v297
  %v300 = vmul.f32 0.5, %v299
  %v301 = vsub.f32 1.5, %v300
  %v302 = vmul.f32 %v297, %v301
  %vm303 = vweird.f32 %v236
  %vm304 = vweird.f32 %v297
  %vm305 = vmor %vm303, %vm304
  %v306 = vsel %vm305, %v297, %v302
  %v307 = vrsqrt.pop %v237
  %v308 = vmul.f32 %v307, %v237
  %v309 = vmul.f32 %v308, %v307
  %v310 = vmul.f32 0.5, %v309
  %v311 = vsub.f32 1.5, %v310
  %v312 = vmul.f32 %v307, %v311
  %vm313 = vweird.f32 %v237
  %vm314 = vweird.f32 %v307
  %vm315 = vmor %vm313, %vm314
  %v316 = vsel %vm315, %v307, %v312
  %v317 = vrsqrt.pop %v238
  %v318 = vmul.f32 %v317, %v238
  %v319 = vmul.f32 %v318, %v317
  %v320 = vmul.f32 0.5, %v319
  %v321 = vsub.f32 1.5, %v320
  %v322 = vmul.f32 %v317, %v321
  %vm323 = vweird.f32 %v238
  %vm324 = vweird.f32 %v317
  %vm325 = vmor %vm323, %vm324
  %v326 = vsel %vm325, %v317, %v322
  %v327 = vrsqrt.pop %v239
  %v328 = vmul.f32 %v327, %v239
  %v329 = vmul.f32 %v328, %v327
  %v330 = vmul.f32 0.5, %v329
  %v331 = vsub.f32 1.5, %v330
  %v332 = vmul.f32 %v327, %v331
  %vm333 = vweird.f32 %v239
  %vm334 = vweird.f32 %v327
  %vm335 = vmor %vm333, %vm334
  %v336 = vsel %vm335, %v327, %v332
  %v337 = vrsqrt.pop %v240
  %v338 = vmul.f32 %v337, %v240
  %v339 = vmul.f32 %v338, %v337
  %v340 = vmul.f32 0.5, %v339
  %v341 = vsub.f32 1.5, %v340
  %v342 = vmul.f32 %v337, %v341
  %vm343 = vweird.f32 %v240
  %vm344 = vweird.f32 %v337
  %vm345 = vmor %vm343, %vm344
  %v346 = vsel %vm345, %v337, %v342
  %v347 = vrsqrt.pop %v241
  %v348 = vmul.f32 %v347, %v241
  %v349 = vmul.f32 %v348, %v347
  %v350 = vmul.f32 0.5, %v349
  %v351 = vsub.f32 1.5, %v350
  %v352 = vmul.f32 %v347, %v351
  %vm353 = vweird.f32 %v241
  %vm354 = vweird.f32 %v347
  %vm355 = vmor %vm353, %vm354
  %v356 = vsel %vm355, %v347, %v352
  %v357 = vrsqrt.pop %v242
  %v358 = vmul.f32 %v357, %v242
  %v359 = vmul.f32 %v358, %v357
  %v360 = vmul.f32 0.5, %v359
  %v361 = vsub.f32 1.5, %v360
  %v362 = vmul.f32 %v357, %v361
  %vm363 = vweird.f32 %v242
  %vm364 = vweird.f32 %v357
  %vm365 = vmor %vm363, %vm364
  %v366 = vsel %vm365, %v357, %v362
  %v367 = vrsqrt.pop %v243
  %v368 = vmul.f32 %v367, %v243
  %v369 = vmul.f32 %v368, %v367
  %v370 = vmul.f32 0.5, %v369
  %v371 = vsub.f32 1.5, %v370
  %v372 = vmul.f32 %v367, %v371
  %vm373 = vweird.f32 %v243
  %vm374 = vweird.f32 %v367
  %vm375 = vmor %vm373, %vm374
  %v376 = vsel %vm375, %v367, %v372
  %v377 = vrsqrt.pop %v244
  %v378 = vmul.f32 %v377, %v244
  %v379 = vmul.f32 %v378, %v377
  %v380 = vmul.f32 0.5, %v379
  %v381 = vsub.f32 1.5, %v380
  %v382 = vmul.f32 %v377, %v381
  %vm383 = vweird.f32 %v244
  %vm384 = vweird.f32 %v377
  %vm385 = vmor %vm383, %vm384
  %v386 = vsel %vm385, %v377, %v382
  %v387 = vrsqrt.pop %v245
  %v388 = vmul.f32 %v387, %v245
  %v389 = vmul.f32 %v388, %v387
  %v390 = vmul.f32 0.5, %v389
  %v391 = vsub.f32 1.5, %v390
  %v392 = vmul.f32 %v387, %v391
  %vm393 = vweird.f32 %v245
  %vm394 = vweird.f32 %v387
  %vm395 = vmor %vm393, %vm394
  %v396 = vsel %vm395, %v387, %v392
  %v397 = vrsqrt.pop %v246
  %v398 = vmul.f32 %v397, %v246
  %v399 = vmul.f32 %v398, %v397
  %v400 = vmul.f32 0.5, %v399
  %v401 = vsub.f32 1.5, %v400
  %v402 = vmul.f32 %v397, %v401
  %vm403 = vweird.f32 %v246
  %vm404 = vweird.f32 %v397
  %vm405 = vmor %vm403, %vm404
  %v406 = vsel %vm405, %v397, %v402
  %v407 = vmul.f32 %v135, %v256
  %v408 = vmul.f32 %v136, %v266
  %v409 = vmul.f32 %v137, %v276
  %v410 = vmul.f32 %v138, %v286
  %v411 = vmul.f32 %v139, %v296
  %v412 = vmul.f32 %v140, %v306
  %v413 = vmul.f32 %v141, %v316
  %v414 = vmul.f32 %v142, %v326
  %v415 = vmul.f32 %v143, %v336
  %v416 = vmul.f32 %v144, %v346
  %v417 = vmul.f32 %v145, %v356
  %v418 = vmul.f32 %v146, %v366
  %v419 = vmul.f32 %v147, %v376
  %v420 = vmul.f32 %v148, %v386
  %v421 = vmul.f32 %v149, %v396
  %v422 = vmul.f32 %v150, %v406
  %v424 = vperm.slane %v61, 0
  %v426 = vmul.f32 %v407, %v424
  %v427 = vmul.f32 %v408, %v424
  %v428 = vmul.f32 %v409, %v424
  %v429 = vmul.f32 %v410, %v424
  %v430 = vmul.f32 %v411, %v424
  %v431 = vmul.f32 %v412, %v424
  %v432 = vmul.f32 %v413, %v424
  %v433 = vmul.f32 %v414, %v424
  %v434 = vmul.f32 %v415, %v424
  %v435 = vmul.f32 %v416, %v424
  %v436 = vmul.f32 %v417, %v424
  %v437 = vmul.f32 %v418, %v424
  %v438 = vmul.f32 %v419, %v424
  %v439 = vmul.f32 %v420, %v424
  %v440 = vmul.f32 %v421, %v424
  %v441 = vmul.f32 %v422, %v424
  %v443 = vperm.slane %v62, 0
  %v445 = vadd.f32 %v426, %v443
  %v446 = vadd.f32 %v427, %v443
  %v447 = vadd.f32 %v428, %v443
  %v448 = vadd.f32 %v429, %v443
  %v449 = vadd.f32 %v430, %v443
  %v450 = vadd.f32 %v431, %v443
  %v451 = vadd.f32 %v432, %v443
  %v452 = vadd.f32 %v433, %v443
  %v453 = vadd.f32 %v434, %v443
  %v454 = vadd.f32 %v435, %v443
  %v455 = vadd.f32 %v436, %v443
  %v456 = vadd.f32 %v437, %v443
  %v457 = vadd.f32 %v438, %v443
  %v458 = vadd.f32 %v439, %v443
  %v459 = vadd.f32 %v440, %v443
  %v460 = vadd.f32 %v441, %v443
  %v461 = vpack.c.bf16 %v446, %v445
  %v462 = vpack.c.bf16 %v448, %v447
  %v463 = vpack.c.bf16 %v450, %v449
  %v464 = vpack.c.bf16 %v452, %v451
  %v465 = vpack.c.bf16 %v454, %v453
  %v466 = vpack.c.bf16 %v456, %v455
  %v467 = vpack.c.bf16 %v458, %v457
  %v468 = vpack.c.bf16 %v460, %v459
  %v469 = vld [vmem:[%s3] sm:$0xf]
  %v470 = vld [vmem:[%s3 + $0x4] sm:$0xf]
  %v471 = vld [vmem:[%s3 + $0x8] sm:$0xf]
  %v472 = vld [vmem:[%s3 + $0xc] sm:$0xf]
  %v473 = vld [vmem:[%s4] sm:$0x1]
  %v475 = vperm.slane %v473, 0
  %v481 = vunpack.c.l.b16 %v469
  %v482 = vunpack.c.l.b16 %v470
  %v483 = vunpack.c.l.b16 %v471
  %v484 = vunpack.c.l.b16 %v472
  %v485 = vpack.c.b16 %v482, %v481
  %v486 = vpack.c.b16 %v484, %v483
  %v490 = vsel %vm63, %v461, 0
  %v493 = vsel %vm63, %v462, 0
  %v496 = vsel %vm63, %v463, 0
  %v499 = vsel %vm63, %v464, 0
  %v502 = vsel %vm63, %v465, 0
  %v505 = vsel %vm63, %v466, 0
  %v508 = vsel %vm63, %v467, 0
  %v511 = vsel %vm63, %v468, 0
  %513 = vmatpush.bf16.msra.mxu0 0
  %514 = vmatpush.bf16.msra.mxu0 0
  %515 = vmatpush.bf16.msra.mxu0 0
  %516 = vmatpush.bf16.msra.mxu0 0
  %517 = vmatpush.bf16.msra.mxu0 0
  %518 = vmatpush.bf16.msra.mxu0 0
  %519 = vmatpush.bf16.msra.mxu0 %v486
  %520 = vmatpush.bf16.msra.mxu0 %v485
  %521 = vmatmul.bf16.gmra.mxu0 %v490
  %v522 = vpop.f32.mrf.mxu0
  %v523 = vadd.f32 %v475, %v522
  %v524 = vpop.f32.mrf.mxu0
  %v525 = vadd.f32 %v475, %v524
  %526 = vmatmul.bf16.gmra.mxu0 %v493
  %v527 = vpop.f32.mrf.mxu0
  %v528 = vadd.f32 %v475, %v527
  %v529 = vpop.f32.mrf.mxu0
  %v530 = vadd.f32 %v475, %v529
  %531 = vmatmul.bf16.gmra.mxu0 %v496
  %v532 = vpop.f32.mrf.mxu0
  %v533 = vadd.f32 %v475, %v532
  %v534 = vpop.f32.mrf.mxu0
  %v535 = vadd.f32 %v475, %v534
  %536 = vmatmul.bf16.gmra.mxu0 %v499
  %v537 = vpop.f32.mrf.mxu0
  %v538 = vadd.f32 %v475, %v537
  %v539 = vpop.f32.mrf.mxu0
  %v540 = vadd.f32 %v475, %v539
  %541 = vmatmul.bf16.gmra.mxu0 %v502
  %v542 = vpop.f32.mrf.mxu0
  %v543 = vadd.f32 %v475, %v542
  %v544 = vpop.f32.mrf.mxu0
  %v545 = vadd.f32 %v475, %v544
  %546 = vmatmul.bf16.gmra.mxu0 %v505
  %v547 = vpop.f32.mrf.mxu0
  %v548 = vadd.f32 %v475, %v547
  %v549 = vpop.f32.mrf.mxu0
  %v550 = vadd.f32 %v475, %v549
  %551 = vmatmul.bf16.gmra.mxu0 %v508
  %v552 = vpop.f32.mrf.mxu0
  %v553 = vadd.f32 %v475, %v552
  %v554 = vpop.f32.mrf.mxu0
  %v555 = vadd.f32 %v475, %v554
  %556 = vmatmul.bf16.gmra.mxu0 %v511
  %v557 = vpop.f32.mrf.mxu0
  %v558 = vadd.f32 %v475, %v557
  %v559 = vpop.f32.mrf.mxu0
  %v560 = vadd.f32 %v475, %v559
  %561 = vdwg.mxu0
  %v562 = vmul.f32 %v523, 0.35355338
  %v563 = vmul.f32 %v525, 0.35355338
  %v564 = vmul.f32 %v528, 0.35355338
  %v565 = vmul.f32 %v530, 0.35355338
  %v566 = vmul.f32 %v533, 0.35355338
  %v567 = vmul.f32 %v535, 0.35355338
  %v568 = vmul.f32 %v538, 0.35355338
  %v569 = vmul.f32 %v540, 0.35355338
  %v570 = vmul.f32 %v543, 0.35355338
  %v571 = vmul.f32 %v545, 0.35355338
  %v572 = vmul.f32 %v548, 0.35355338
  %v573 = vmul.f32 %v550, 0.35355338
  %v574 = vmul.f32 %v553, 0.35355338
  %v575 = vmul.f32 %v555, 0.35355338
  %v576 = vmul.f32 %v558, 0.35355338
  %v577 = vmul.f32 %v560, 0.35355338
  %v578 = vpack.c.bf16 %v562, %v562
  %v579 = vpack.c.bf16 %v563, %v563
  %v580 = vpack.c.bf16 %v564, %v564
  %v581 = vpack.c.bf16 %v565, %v565
  %v582 = vpack.c.bf16 %v566, %v566
  %v583 = vpack.c.bf16 %v567, %v567
  %v584 = vpack.c.bf16 %v568, %v568
  %v585 = vpack.c.bf16 %v569, %v569
  %v586 = vpack.c.bf16 %v570, %v570
  %v587 = vpack.c.bf16 %v571, %v571
  %v588 = vpack.c.bf16 %v572, %v572
  %v589 = vpack.c.bf16 %v573, %v573
  %v590 = vpack.c.bf16 %v574, %v574
  %v591 = vpack.c.bf16 %v575, %v575
  %v592 = vpack.c.bf16 %v576, %v576
  %v593 = vpack.c.bf16 %v577, %v577
  %v594 = vpack.c.bf16 %v523, %v523
  %v595 = vpack.c.bf16 %v525, %v525
  %v596 = vpack.c.bf16 %v528, %v528
  %v597 = vpack.c.bf16 %v530, %v530
  %v598 = vpack.c.bf16 %v533, %v533
  %v599 = vpack.c.bf16 %v535, %v535
  %v600 = vpack.c.bf16 %v538, %v538
  %v601 = vpack.c.bf16 %v540, %v540
  %v602 = vpack.c.bf16 %v543, %v543
  %v603 = vpack.c.bf16 %v545, %v545
  %v604 = vpack.c.bf16 %v548, %v548
  %v605 = vpack.c.bf16 %v550, %v550
  %v606 = vpack.c.bf16 %v553, %v553
  %v607 = vpack.c.bf16 %v555, %v555
  %v608 = vpack.c.bf16 %v558, %v558
  %v609 = vpack.c.bf16 %v560, %v560
  %618 = vrot.lane.b32.xlu0 %v578, 120
  %v619 = vpop.permute.xlu0 %618
  %620 = vrot.lane.b32.xlu0 %v579, 120
  %v621 = vpop.permute.xlu0 %620
  %622 = vrot.lane.b32.xlu0 %v580, 120
  %v623 = vpop.permute.xlu0 %622
  %624 = vrot.lane.b32.xlu0 %v581, 120
  %v625 = vpop.permute.xlu0 %624
  %626 = vrot.lane.b32.xlu0 %v582, 120
  %v627 = vpop.permute.xlu0 %626
  %628 = vrot.lane.b32.xlu0 %v583, 120
  %v629 = vpop.permute.xlu0 %628
  %630 = vrot.lane.b32.xlu0 %v584, 120
  %v631 = vpop.permute.xlu0 %630
  %632 = vrot.lane.b32.xlu0 %v585, 120
  %v633 = vpop.permute.xlu0 %632
  %634 = vrot.lane.b32.xlu0 %v578, 112
  %v635 = vpop.permute.xlu0 %634
  %636 = vrot.lane.b32.xlu0 %v579, 112
  %v637 = vpop.permute.xlu0 %636
  %638 = vrot.lane.b32.xlu0 %v580, 112
  %v639 = vpop.permute.xlu0 %638
  %640 = vrot.lane.b32.xlu0 %v581, 112
  %v641 = vpop.permute.xlu0 %640
  %642 = vrot.lane.b32.xlu0 %v582, 112
  %v643 = vpop.permute.xlu0 %642
  %644 = vrot.lane.b32.xlu0 %v583, 112
  %v645 = vpop.permute.xlu0 %644
  %646 = vrot.lane.b32.xlu0 %v584, 112
  %v647 = vpop.permute.xlu0 %646
  %648 = vrot.lane.b32.xlu0 %v585, 112
  %v649 = vpop.permute.xlu0 %648
  %650 = vrot.lane.b32.xlu0 %v578, 104
  %v651 = vpop.permute.xlu0 %650
  %652 = vrot.lane.b32.xlu0 %v579, 104
  %v653 = vpop.permute.xlu0 %652
  %654 = vrot.lane.b32.xlu0 %v580, 104
  %v655 = vpop.permute.xlu0 %654
  %656 = vrot.lane.b32.xlu0 %v581, 104
  %v657 = vpop.permute.xlu0 %656
  %658 = vrot.lane.b32.xlu0 %v582, 104
  %v659 = vpop.permute.xlu0 %658
  %660 = vrot.lane.b32.xlu0 %v583, 104
  %v661 = vpop.permute.xlu0 %660
  %662 = vrot.lane.b32.xlu0 %v584, 104
  %v663 = vpop.permute.xlu0 %662
  %664 = vrot.lane.b32.xlu0 %v585, 104
  %v665 = vpop.permute.xlu0 %664
  %674 = vrot.lane.b32.xlu0 %v594, 120
  %v675 = vpop.permute.xlu0 %674
  %676 = vrot.lane.b32.xlu0 %v595, 120
  %v677 = vpop.permute.xlu0 %676
  %678 = vrot.lane.b32.xlu0 %v596, 120
  %v679 = vpop.permute.xlu0 %678
  %680 = vrot.lane.b32.xlu0 %v597, 120
  %v681 = vpop.permute.xlu0 %680
  %682 = vrot.lane.b32.xlu0 %v598, 120
  %v683 = vpop.permute.xlu0 %682
  %684 = vrot.lane.b32.xlu0 %v599, 120
  %v685 = vpop.permute.xlu0 %684
  %686 = vrot.lane.b32.xlu0 %v600, 120
  %v687 = vpop.permute.xlu0 %686
  %688 = vrot.lane.b32.xlu0 %v601, 120
  %v689 = vpop.permute.xlu0 %688
  %690 = vrot.lane.b32.xlu0 %v594, 112
  %v691 = vpop.permute.xlu0 %690
  %692 = vrot.lane.b32.xlu0 %v595, 112
  %v693 = vpop.permute.xlu0 %692
  %694 = vrot.lane.b32.xlu0 %v596, 112
  %v695 = vpop.permute.xlu0 %694
  %696 = vrot.lane.b32.xlu0 %v597, 112
  %v697 = vpop.permute.xlu0 %696
  %698 = vrot.lane.b32.xlu0 %v598, 112
  %v699 = vpop.permute.xlu0 %698
  %700 = vrot.lane.b32.xlu0 %v599, 112
  %v701 = vpop.permute.xlu0 %700
  %702 = vrot.lane.b32.xlu0 %v600, 112
  %v703 = vpop.permute.xlu0 %702
  %704 = vrot.lane.b32.xlu0 %v601, 112
  %v705 = vpop.permute.xlu0 %704
  %706 = vrot.lane.b32.xlu0 %v594, 104
  %v707 = vpop.permute.xlu0 %706
  %708 = vrot.lane.b32.xlu0 %v595, 104
  %v709 = vpop.permute.xlu0 %708
  %710 = vrot.lane.b32.xlu0 %v596, 104
  %v711 = vpop.permute.xlu0 %710
  %712 = vrot.lane.b32.xlu0 %v597, 104
  %v713 = vpop.permute.xlu0 %712
  %714 = vrot.lane.b32.xlu0 %v598, 104
  %v715 = vpop.permute.xlu0 %714
  %716 = vrot.lane.b32.xlu0 %v599, 104
  %v717 = vpop.permute.xlu0 %716
  %718 = vrot.lane.b32.xlu0 %v600, 104
  %v719 = vpop.permute.xlu0 %718
  %720 = vrot.lane.b32.xlu0 %v601, 104
  %v721 = vpop.permute.xlu0 %720
  %v722 = vunpack.c.l.b16 %v578
  %v723 = vunpack.c.l.b16 %v579
  %v724 = vunpack.c.l.b16 %v580
  %v725 = vunpack.c.l.b16 %v581
  %v726 = vunpack.c.l.b16 %v582
  %v727 = vunpack.c.l.b16 %v583
  %v728 = vunpack.c.l.b16 %v584
  %v729 = vunpack.c.l.b16 %v585
  %v730 = vpack.c.b16 %v723, %v722
  %v731 = vpack.c.b16 %v725, %v724
  %v732 = vpack.c.b16 %v727, %v726
  %v733 = vpack.c.b16 %v729, %v728
  %v734 = vunpack.c.l.b16 %v594
  %v735 = vunpack.c.l.b16 %v595
  %v736 = vunpack.c.l.b16 %v596
  %v737 = vunpack.c.l.b16 %v597
  %v738 = vunpack.c.l.b16 %v598
  %v739 = vunpack.c.l.b16 %v599
  %v740 = vunpack.c.l.b16 %v600
  %v741 = vunpack.c.l.b16 %v601
  %v742 = vpack.c.b16 %v735, %v734
  %v743 = vpack.c.b16 %v737, %v736
  %v744 = vpack.c.b16 %v739, %v738
  %v745 = vpack.c.b16 %v741, %v740
  %746 = vrot.lane.b32.xlu0 %v742, 96
  %v747 = vpop.permute.xlu0 %746
  %748 = vrot.lane.b32.xlu0 %v743, 96
  %v749 = vpop.permute.xlu0 %748
  %750 = vrot.lane.b32.xlu0 %v744, 96
  %v751 = vpop.permute.xlu0 %750
  %752 = vrot.lane.b32.xlu0 %v745, 96
  %v753 = vpop.permute.xlu0 %752
  %vm754 = vcmask 64512
  %v756 = vsel %vm754, %v730, 0
  %v759 = vsel %vm754, %v731, 0
  %v762 = vsel %vm754, %v732, 0
  %v765 = vsel %vm754, %v733, 0
  %v768 = vsel %vm754, %v747, 0
  %v771 = vsel %vm754, %v749, 0
  %v774 = vsel %vm754, %v751, 0
  %v777 = vsel %vm754, %v753, 0
  %779 = vmatpush.bf16.xpose.msra.mxu0 0
  %780 = vmatpush.bf16.xpose.msra.mxu0 0
  %781 = vmatpush.bf16.xpose.msra.mxu0 0
  %782 = vmatpush.bf16.xpose.msra.mxu0 0
  %783 = vmatpush.bf16.xpose.msra.mxu0 %v777
  %784 = vmatpush.bf16.xpose.msra.mxu0 %v774
  %785 = vmatpush.bf16.xpose.msra.mxu0 %v771
  %786 = vmatpush.bf16.xpose.msra.mxu0 %v768
  %787 = vmatmul.bf16.gmra.mxu0 %v756
  %v788 = vpop.f32.mrf.mxu0
  %v789 = vadd.f32 0.0, %v788
  %v790 = vpop.f32.mrf.mxu0
  %v791 = vadd.f32 0.0, %v790
  %792 = vmatmul.bf16.gmra.mxu0 %v759
  %v793 = vpop.f32.mrf.mxu0
  %v794 = vadd.f32 0.0, %v793
  %v795 = vpop.f32.mrf.mxu0
  %v796 = vadd.f32 0.0, %v795
  %797 = vmatmul.bf16.gmra.mxu0 %v762
  %v798 = vpop.f32.mrf.mxu0
  %v799 = vadd.f32 0.0, %v798
  %v800 = vpop.f32.mrf.mxu0
  %v801 = vadd.f32 0.0, %v800
  %802 = vmatmul.bf16.gmra.mxu0 %v765
  %v803 = vpop.f32.mrf.mxu0
  %v804 = vadd.f32 0.0, %v803
  %v805 = vpop.f32.mrf.mxu0
  %v806 = vadd.f32 0.0, %v805
  %807 = vdwg.mxu0
  %v808 = vunpack.c.l.b16 %v619
  %v809 = vunpack.c.l.b16 %v621
  %v810 = vunpack.c.l.b16 %v623
  %v811 = vunpack.c.l.b16 %v625
  %v812 = vunpack.c.l.b16 %v627
  %v813 = vunpack.c.l.b16 %v629
  %v814 = vunpack.c.l.b16 %v631
  %v815 = vunpack.c.l.b16 %v633
  %v816 = vpack.c.b16 %v809, %v808
  %v817 = vpack.c.b16 %v811, %v810
  %v818 = vpack.c.b16 %v813, %v812
  %v819 = vpack.c.b16 %v815, %v814
  %v820 = vunpack.c.l.b16 %v675
  %v821 = vunpack.c.l.b16 %v677
  %v822 = vunpack.c.l.b16 %v679
  %v823 = vunpack.c.l.b16 %v681
  %v824 = vunpack.c.l.b16 %v683
  %v825 = vunpack.c.l.b16 %v685
  %v826 = vunpack.c.l.b16 %v687
  %v827 = vunpack.c.l.b16 %v689
  %v828 = vpack.c.b16 %v821, %v820
  %v829 = vpack.c.b16 %v823, %v822
  %v830 = vpack.c.b16 %v825, %v824
  %v831 = vpack.c.b16 %v827, %v826
  %832 = vrot.lane.b32.xlu0 %v828, 96
  %v833 = vpop.permute.xlu0 %832
  %834 = vrot.lane.b32.xlu0 %v829, 96
  %v835 = vpop.permute.xlu0 %834
  %836 = vrot.lane.b32.xlu0 %v830, 96
  %v837 = vpop.permute.xlu0 %836
  %838 = vrot.lane.b32.xlu0 %v831, 96
  %v839 = vpop.permute.xlu0 %838
  %v841 = vsel %vm754, %v816, 0
  %v844 = vsel %vm754, %v817, 0
  %v847 = vsel %vm754, %v818, 0
  %v850 = vsel %vm754, %v819, 0
  %v853 = vsel %vm754, %v833, 0
  %v856 = vsel %vm754, %v835, 0
  %v859 = vsel %vm754, %v837, 0
  %v862 = vsel %vm754, %v839, 0
  %864 = vmatpush.bf16.xpose.msra.mxu0 0
  %865 = vmatpush.bf16.xpose.msra.mxu0 0
  %866 = vmatpush.bf16.xpose.msra.mxu0 0
  %867 = vmatpush.bf16.xpose.msra.mxu0 0
  %868 = vmatpush.bf16.xpose.msra.mxu0 %v862
  %869 = vmatpush.bf16.xpose.msra.mxu0 %v859
  %870 = vmatpush.bf16.xpose.msra.mxu0 %v856
  %871 = vmatpush.bf16.xpose.msra.mxu0 %v853
  %872 = vmatmul.bf16.gmra.mxu0 %v841
  %v873 = vpop.f32.mrf.mxu0
  %v874 = vadd.f32 0.0, %v873
  %v875 = vpop.f32.mrf.mxu0
  %v876 = vadd.f32 0.0, %v875
  %877 = vmatmul.bf16.gmra.mxu0 %v844
  %v878 = vpop.f32.mrf.mxu0
  %v879 = vadd.f32 0.0, %v878
  %v880 = vpop.f32.mrf.mxu0
  %v881 = vadd.f32 0.0, %v880
  %882 = vmatmul.bf16.gmra.mxu0 %v847
  %v883 = vpop.f32.mrf.mxu0
  %v884 = vadd.f32 0.0, %v883
  %v885 = vpop.f32.mrf.mxu0
  %v886 = vadd.f32 0.0, %v885
  %887 = vmatmul.bf16.gmra.mxu0 %v850
  %v888 = vpop.f32.mrf.mxu0
  %v889 = vadd.f32 0.0, %v888
  %v890 = vpop.f32.mrf.mxu0
  %v891 = vadd.f32 0.0, %v890
  %892 = vdwg.mxu0
  %v893 = vunpack.c.l.b16 %v635
  %v894 = vunpack.c.l.b16 %v637
  %v895 = vunpack.c.l.b16 %v639
  %v896 = vunpack.c.l.b16 %v641
  %v897 = vunpack.c.l.b16 %v643
  %v898 = vunpack.c.l.b16 %v645
  %v899 = vunpack.c.l.b16 %v647
  %v900 = vunpack.c.l.b16 %v649
  %v901 = vpack.c.b16 %v894, %v893
  %v902 = vpack.c.b16 %v896, %v895
  %v903 = vpack.c.b16 %v898, %v897
  %v904 = vpack.c.b16 %v900, %v899
  %v905 = vunpack.c.l.b16 %v691
  %v906 = vunpack.c.l.b16 %v693
  %v907 = vunpack.c.l.b16 %v695
  %v908 = vunpack.c.l.b16 %v697
  %v909 = vunpack.c.l.b16 %v699
  %v910 = vunpack.c.l.b16 %v701
  %v911 = vunpack.c.l.b16 %v703
  %v912 = vunpack.c.l.b16 %v705
  %v913 = vpack.c.b16 %v906, %v905
  %v914 = vpack.c.b16 %v908, %v907
  %v915 = vpack.c.b16 %v910, %v909
  %v916 = vpack.c.b16 %v912, %v911
  %917 = vrot.lane.b32.xlu0 %v913, 96
  %v918 = vpop.permute.xlu0 %917
  %919 = vrot.lane.b32.xlu0 %v914, 96
  %v920 = vpop.permute.xlu0 %919
  %921 = vrot.lane.b32.xlu0 %v915, 96
  %v922 = vpop.permute.xlu0 %921
  %923 = vrot.lane.b32.xlu0 %v916, 96
  %v924 = vpop.permute.xlu0 %923
  %v926 = vsel %vm754, %v901, 0
  %v929 = vsel %vm754, %v902, 0
  %v932 = vsel %vm754, %v903, 0
  %v935 = vsel %vm754, %v904, 0
  %v938 = vsel %vm754, %v918, 0
  %v941 = vsel %vm754, %v920, 0
  %v944 = vsel %vm754, %v922, 0
  %v947 = vsel %vm754, %v924, 0
  %949 = vmatpush.bf16.xpose.msra.mxu0 0
  %950 = vmatpush.bf16.xpose.msra.mxu0 0
  %951 = vmatpush.bf16.xpose.msra.mxu0 0
  %952 = vmatpush.bf16.xpose.msra.mxu0 0
  %953 = vmatpush.bf16.xpose.msra.mxu0 %v947
  %954 = vmatpush.bf16.xpose.msra.mxu0 %v944
  %955 = vmatpush.bf16.xpose.msra.mxu0 %v941
  %956 = vmatpush.bf16.xpose.msra.mxu0 %v938
  %957 = vmatmul.bf16.gmra.mxu0 %v926
  %v958 = vpop.f32.mrf.mxu0
  %v959 = vadd.f32 0.0, %v958
  %v960 = vpop.f32.mrf.mxu0
  %v961 = vadd.f32 0.0, %v960
  %962 = vmatmul.bf16.gmra.mxu0 %v929
  %v963 = vpop.f32.mrf.mxu0
  %v964 = vadd.f32 0.0, %v963
  %v965 = vpop.f32.mrf.mxu0
  %v966 = vadd.f32 0.0, %v965
  %967 = vmatmul.bf16.gmra.mxu0 %v932
  %v968 = vpop.f32.mrf.mxu0
  %v969 = vadd.f32 0.0, %v968
  %v970 = vpop.f32.mrf.mxu0
  %v971 = vadd.f32 0.0, %v970
  %972 = vmatmul.bf16.gmra.mxu0 %v935
  %v973 = vpop.f32.mrf.mxu0
  %v974 = vadd.f32 0.0, %v973
  %v975 = vpop.f32.mrf.mxu0
  %v976 = vadd.f32 0.0, %v975
  %977 = vdwg.mxu0
  %v978 = vunpack.c.l.b16 %v651
  %v979 = vunpack.c.l.b16 %v653
  %v980 = vunpack.c.l.b16 %v655
  %v981 = vunpack.c.l.b16 %v657
  %v982 = vunpack.c.l.b16 %v659
  %v983 = vunpack.c.l.b16 %v661
  %v984 = vunpack.c.l.b16 %v663
  %v985 = vunpack.c.l.b16 %v665
  %v986 = vpack.c.b16 %v979, %v978
  %v987 = vpack.c.b16 %v981, %v980
  %v988 = vpack.c.b16 %v983, %v982
  %v989 = vpack.c.b16 %v985, %v984
  %v990 = vunpack.c.l.b16 %v707
  %v991 = vunpack.c.l.b16 %v709
  %v992 = vunpack.c.l.b16 %v711
  %v993 = vunpack.c.l.b16 %v713
  %v994 = vunpack.c.l.b16 %v715
  %v995 = vunpack.c.l.b16 %v717
  %v996 = vunpack.c.l.b16 %v719
  %v997 = vunpack.c.l.b16 %v721
  %v998 = vpack.c.b16 %v991, %v990
  %v999 = vpack.c.b16 %v993, %v992
  %v1000 = vpack.c.b16 %v995, %v994
  %v1001 = vpack.c.b16 %v997, %v996
  %1002 = vrot.lane.b32.xlu0 %v998, 96
  %v1003 = vpop.permute.xlu0 %1002
  %1004 = vrot.lane.b32.xlu0 %v999, 96
  %v1005 = vpop.permute.xlu0 %1004
  %1006 = vrot.lane.b32.xlu0 %v1000, 96
  %v1007 = vpop.permute.xlu0 %1006
  %1008 = vrot.lane.b32.xlu0 %v1001, 96
  %v1009 = vpop.permute.xlu0 %1008
  %v1011 = vsel %vm754, %v986, 0
  %v1014 = vsel %vm754, %v987, 0
  %v1017 = vsel %vm754, %v988, 0
  %v1020 = vsel %vm754, %v989, 0
  %v1023 = vsel %vm754, %v1003, 0
  %v1026 = vsel %vm754, %v1005, 0
  %v1029 = vsel %vm754, %v1007, 0
  %v1032 = vsel %vm754, %v1009, 0
  %1034 = vmatpush.bf16.xpose.msra.mxu0 0
  %1035 = vmatpush.bf16.xpose.msra.mxu0 0
  %1036 = vmatpush.bf16.xpose.msra.mxu0 0
  %1037 = vmatpush.bf16.xpose.msra.mxu0 0
  %1038 = vmatpush.bf16.xpose.msra.mxu0 %v1032
  %1039 = vmatpush.bf16.xpose.msra.mxu0 %v1029
  %1040 = vmatpush.bf16.xpose.msra.mxu0 %v1026
  %1041 = vmatpush.bf16.xpose.msra.mxu0 %v1023
  %1042 = vmatmul.bf16.gmra.mxu0 %v1011
  %v1043 = vpop.f32.mrf.mxu0
  %v1044 = vadd.f32 0.0, %v1043
  %v1045 = vpop.f32.mrf.mxu0
  %v1046 = vadd.f32 0.0, %v1045
  %1047 = vmatmul.bf16.gmra.mxu0 %v1014
  %v1048 = vpop.f32.mrf.mxu0
  %v1049 = vadd.f32 0.0, %v1048
  %v1050 = vpop.f32.mrf.mxu0
  %v1051 = vadd.f32 0.0, %v1050
  %1052 = vmatmul.bf16.gmra.mxu0 %v1017
  %v1053 = vpop.f32.mrf.mxu0
  %v1054 = vadd.f32 0.0, %v1053
  %v1055 = vpop.f32.mrf.mxu0
  %v1056 = vadd.f32 0.0, %v1055
  %1057 = vmatmul.bf16.gmra.mxu0 %v1020
  %v1058 = vpop.f32.mrf.mxu0
  %v1059 = vadd.f32 0.0, %v1058
  %v1060 = vpop.f32.mrf.mxu0
  %v1061 = vadd.f32 0.0, %v1060
  %1062 = vdwg.mxu0
  %vm1063 = vcmask 523264
  %v1064 = vsel %vm1063, %v789, -inf
  %1065 = vmax.xlane.f32.xlu0 %v1064
  %v1066 = vpop.xlane.xlu0 %1065
  %v1067 = vsel %vm1063, %v791, -inf
  %1068 = vmax.xlane.f32.xlu0 %v1067
  %v1069 = vpop.xlane.xlu0 %1068
  %v1070 = vsel %vm1063, %v794, -inf
  %1071 = vmax.xlane.f32.xlu0 %v1070
  %v1072 = vpop.xlane.xlu0 %1071
  %v1073 = vsel %vm1063, %v796, -inf
  %1074 = vmax.xlane.f32.xlu0 %v1073
  %v1075 = vpop.xlane.xlu0 %1074
  %v1076 = vsel %vm1063, %v799, -inf
  %1077 = vmax.xlane.f32.xlu0 %v1076
  %v1078 = vpop.xlane.xlu0 %1077
  %v1079 = vsel %vm1063, %v801, -inf
  %1080 = vmax.xlane.f32.xlu0 %v1079
  %v1081 = vpop.xlane.xlu0 %1080
  %v1082 = vsel %vm1063, %v804, -inf
  %1083 = vmax.xlane.f32.xlu0 %v1082
  %v1084 = vpop.xlane.xlu0 %1083
  %v1085 = vsel %vm1063, %v806, -inf
  %1086 = vmax.xlane.f32.xlu0 %v1085
  %v1087 = vpop.xlane.xlu0 %1086
  %v1088 = vsel %vm1063, %v874, -inf
  %1089 = vmax.xlane.f32.xlu0 %v1088
  %v1090 = vpop.xlane.xlu0 %1089
  %v1091 = vsel %vm1063, %v876, -inf
  %1092 = vmax.xlane.f32.xlu0 %v1091
  %v1093 = vpop.xlane.xlu0 %1092
  %v1094 = vsel %vm1063, %v879, -inf
  %1095 = vmax.xlane.f32.xlu0 %v1094
  %v1096 = vpop.xlane.xlu0 %1095
  %v1097 = vsel %vm1063, %v881, -inf
  %1098 = vmax.xlane.f32.xlu0 %v1097
  %v1099 = vpop.xlane.xlu0 %1098
  %v1100 = vsel %vm1063, %v884, -inf
  %1101 = vmax.xlane.f32.xlu0 %v1100
  %v1102 = vpop.xlane.xlu0 %1101
  %v1103 = vsel %vm1063, %v886, -inf
  %1104 = vmax.xlane.f32.xlu0 %v1103
  %v1105 = vpop.xlane.xlu0 %1104
  %v1106 = vsel %vm1063, %v889, -inf
  %1107 = vmax.xlane.f32.xlu0 %v1106
  %v1108 = vpop.xlane.xlu0 %1107
  %v1109 = vsel %vm1063, %v891, -inf
  %1110 = vmax.xlane.f32.xlu0 %v1109
  %v1111 = vpop.xlane.xlu0 %1110
  %v1112 = vsel %vm1063, %v959, -inf
  %1113 = vmax.xlane.f32.xlu0 %v1112
  %v1114 = vpop.xlane.xlu0 %1113
  %v1115 = vsel %vm1063, %v961, -inf
  %1116 = vmax.xlane.f32.xlu0 %v1115
  %v1117 = vpop.xlane.xlu0 %1116
  %v1118 = vsel %vm1063, %v964, -inf
  %1119 = vmax.xlane.f32.xlu0 %v1118
  %v1120 = vpop.xlane.xlu0 %1119
  %v1121 = vsel %vm1063, %v966, -inf
  %1122 = vmax.xlane.f32.xlu0 %v1121
  %v1123 = vpop.xlane.xlu0 %1122
  %v1124 = vsel %vm1063, %v969, -inf
  %1125 = vmax.xlane.f32.xlu0 %v1124
  %v1126 = vpop.xlane.xlu0 %1125
  %v1127 = vsel %vm1063, %v971, -inf
  %1128 = vmax.xlane.f32.xlu0 %v1127
  %v1129 = vpop.xlane.xlu0 %1128
  %v1130 = vsel %vm1063, %v974, -inf
  %1131 = vmax.xlane.f32.xlu0 %v1130
  %v1132 = vpop.xlane.xlu0 %1131
  %v1133 = vsel %vm1063, %v976, -inf
  %1134 = vmax.xlane.f32.xlu0 %v1133
  %v1135 = vpop.xlane.xlu0 %1134
  %v1136 = vsel %vm1063, %v1044, -inf
  %1137 = vmax.xlane.f32.xlu0 %v1136
  %v1138 = vpop.xlane.xlu0 %1137
  %v1139 = vsel %vm1063, %v1046, -inf
  %1140 = vmax.xlane.f32.xlu0 %v1139
  %v1141 = vpop.xlane.xlu0 %1140
  %v1142 = vsel %vm1063, %v1049, -inf
  %1143 = vmax.xlane.f32.xlu0 %v1142
  %v1144 = vpop.xlane.xlu0 %1143
  %v1145 = vsel %vm1063, %v1051, -inf
  %1146 = vmax.xlane.f32.xlu0 %v1145
  %v1147 = vpop.xlane.xlu0 %1146
  %v1148 = vsel %vm1063, %v1054, -inf
  %1149 = vmax.xlane.f32.xlu0 %v1148
  %v1150 = vpop.xlane.xlu0 %1149
  %v1151 = vsel %vm1063, %v1056, -inf
  %1152 = vmax.xlane.f32.xlu0 %v1151
  %v1153 = vpop.xlane.xlu0 %1152
  %v1154 = vsel %vm1063, %v1059, -inf
  %1155 = vmax.xlane.f32.xlu0 %v1154
  %v1156 = vpop.xlane.xlu0 %1155
  %v1157 = vsel %vm1063, %v1061, -inf
  %1158 = vmax.xlane.f32.xlu0 %v1157
  %v1159 = vpop.xlane.xlu0 %1158
  %v1160 = vsub.f32 %v789, %v1066
  %v1161 = vsub.f32 %v791, %v1069
  %v1162 = vsub.f32 %v794, %v1072
  %v1163 = vsub.f32 %v796, %v1075
  %v1164 = vsub.f32 %v799, %v1078
  %v1165 = vsub.f32 %v801, %v1081
  %v1166 = vsub.f32 %v804, %v1084
  %v1167 = vsub.f32 %v806, %v1087
  %v1168 = vsub.f32 %v874, %v1090
  %v1169 = vsub.f32 %v876, %v1093
  %v1170 = vsub.f32 %v879, %v1096
  %v1171 = vsub.f32 %v881, %v1099
  %v1172 = vsub.f32 %v884, %v1102
  %v1173 = vsub.f32 %v886, %v1105
  %v1174 = vsub.f32 %v889, %v1108
  %v1175 = vsub.f32 %v891, %v1111
  %v1176 = vsub.f32 %v959, %v1114
  %v1177 = vsub.f32 %v961, %v1117
  %v1178 = vsub.f32 %v964, %v1120
  %v1179 = vsub.f32 %v966, %v1123
  %v1180 = vsub.f32 %v969, %v1126
  %v1181 = vsub.f32 %v971, %v1129
  %v1182 = vsub.f32 %v974, %v1132
  %v1183 = vsub.f32 %v976, %v1135
  %v1184 = vsub.f32 %v1044, %v1138
  %v1185 = vsub.f32 %v1046, %v1141
  %v1186 = vsub.f32 %v1049, %v1144
  %v1187 = vsub.f32 %v1051, %v1147
  %v1188 = vsub.f32 %v1054, %v1150
  %v1189 = vsub.f32 %v1056, %v1153
  %v1190 = vsub.f32 %v1059, %v1156
  %v1191 = vsub.f32 %v1061, %v1159
  %v1192 = vmul.f32 %v1160, 1.442695
  %v1193 = vpow.pop %v1192
  %v1194 = vmul.f32 %v1161, 1.442695
  %v1195 = vpow.pop %v1194
  %v1196 = vmul.f32 %v1162, 1.442695
  %v1197 = vpow.pop %v1196
  %v1198 = vmul.f32 %v1163, 1.442695
  %v1199 = vpow.pop %v1198
  %v1200 = vmul.f32 %v1164, 1.442695
  %v1201 = vpow.pop %v1200
  %v1202 = vmul.f32 %v1165, 1.442695
  %v1203 = vpow.pop %v1202
  %v1204 = vmul.f32 %v1166, 1.442695
  %v1205 = vpow.pop %v1204
  %v1206 = vmul.f32 %v1167, 1.442695
  %v1207 = vpow.pop %v1206
  %v1208 = vmul.f32 %v1168, 1.442695
  %v1209 = vpow.pop %v1208
  %v1210 = vmul.f32 %v1169, 1.442695
  %v1211 = vpow.pop %v1210
  %v1212 = vmul.f32 %v1170, 1.442695
  %v1213 = vpow.pop %v1212
  %v1214 = vmul.f32 %v1171, 1.442695
  %v1215 = vpow.pop %v1214
  %v1216 = vmul.f32 %v1172, 1.442695
  %v1217 = vpow.pop %v1216
  %v1218 = vmul.f32 %v1173, 1.442695
  %v1219 = vpow.pop %v1218
  %v1220 = vmul.f32 %v1174, 1.442695
  %v1221 = vpow.pop %v1220
  %v1222 = vmul.f32 %v1175, 1.442695
  %v1223 = vpow.pop %v1222
  %v1224 = vmul.f32 %v1176, 1.442695
  %v1225 = vpow.pop %v1224
  %v1226 = vmul.f32 %v1177, 1.442695
  %v1227 = vpow.pop %v1226
  %v1228 = vmul.f32 %v1178, 1.442695
  %v1229 = vpow.pop %v1228
  %v1230 = vmul.f32 %v1179, 1.442695
  %v1231 = vpow.pop %v1230
  %v1232 = vmul.f32 %v1180, 1.442695
  %v1233 = vpow.pop %v1232
  %v1234 = vmul.f32 %v1181, 1.442695
  %v1235 = vpow.pop %v1234
  %v1236 = vmul.f32 %v1182, 1.442695
  %v1237 = vpow.pop %v1236
  %v1238 = vmul.f32 %v1183, 1.442695
  %v1239 = vpow.pop %v1238
  %v1240 = vmul.f32 %v1184, 1.442695
  %v1241 = vpow.pop %v1240
  %v1242 = vmul.f32 %v1185, 1.442695
  %v1243 = vpow.pop %v1242
  %v1244 = vmul.f32 %v1186, 1.442695
  %v1245 = vpow.pop %v1244
  %v1246 = vmul.f32 %v1187, 1.442695
  %v1247 = vpow.pop %v1246
  %v1248 = vmul.f32 %v1188, 1.442695
  %v1249 = vpow.pop %v1248
  %v1250 = vmul.f32 %v1189, 1.442695
  %v1251 = vpow.pop %v1250
  %v1252 = vmul.f32 %v1190, 1.442695
  %v1253 = vpow.pop %v1252
  %v1254 = vmul.f32 %v1191, 1.442695
  %v1255 = vpow.pop %v1254
  %v1256 = vsel %vm1063, %v1193, 0.0
  %1257 = vadd.xlane.f32.xlu0 %v1256
  %v1258 = vpop.xlane.xlu0 %1257
  %v1259 = vsel %vm1063, %v1195, 0.0
  %1260 = vadd.xlane.f32.xlu0 %v1259
  %v1261 = vpop.xlane.xlu0 %1260
  %v1262 = vsel %vm1063, %v1197, 0.0
  %1263 = vadd.xlane.f32.xlu0 %v1262
  %v1264 = vpop.xlane.xlu0 %1263
  %v1265 = vsel %vm1063, %v1199, 0.0
  %1266 = vadd.xlane.f32.xlu0 %v1265
  %v1267 = vpop.xlane.xlu0 %1266
  %v1268 = vsel %vm1063, %v1201, 0.0
  %1269 = vadd.xlane.f32.xlu0 %v1268
  %v1270 = vpop.xlane.xlu0 %1269
  %v1271 = vsel %vm1063, %v1203, 0.0
  %1272 = vadd.xlane.f32.xlu0 %v1271
  %v1273 = vpop.xlane.xlu0 %1272
  %v1274 = vsel %vm1063, %v1205, 0.0
  %1275 = vadd.xlane.f32.xlu0 %v1274
  %v1276 = vpop.xlane.xlu0 %1275
  %v1277 = vsel %vm1063, %v1207, 0.0
  %1278 = vadd.xlane.f32.xlu0 %v1277
  %v1279 = vpop.xlane.xlu0 %1278
  %v1280 = vsel %vm1063, %v1209, 0.0
  %1281 = vadd.xlane.f32.xlu0 %v1280
  %v1282 = vpop.xlane.xlu0 %1281
  %v1283 = vsel %vm1063, %v1211, 0.0
  %1284 = vadd.xlane.f32.xlu0 %v1283
  %v1285 = vpop.xlane.xlu0 %1284
  %v1286 = vsel %vm1063, %v1213, 0.0
  %1287 = vadd.xlane.f32.xlu0 %v1286
  %v1288 = vpop.xlane.xlu0 %1287
  %v1289 = vsel %vm1063, %v1215, 0.0
  %1290 = vadd.xlane.f32.xlu0 %v1289
  %v1291 = vpop.xlane.xlu0 %1290
  %v1292 = vsel %vm1063, %v1217, 0.0
  %1293 = vadd.xlane.f32.xlu0 %v1292
  %v1294 = vpop.xlane.xlu0 %1293
  %v1295 = vsel %vm1063, %v1219, 0.0
  %1296 = vadd.xlane.f32.xlu0 %v1295
  %v1297 = vpop.xlane.xlu0 %1296
  %v1298 = vsel %vm1063, %v1221, 0.0
  %1299 = vadd.xlane.f32.xlu0 %v1298
  %v1300 = vpop.xlane.xlu0 %1299
  %v1301 = vsel %vm1063, %v1223, 0.0
  %1302 = vadd.xlane.f32.xlu0 %v1301
  %v1303 = vpop.xlane.xlu0 %1302
  %v1304 = vsel %vm1063, %v1225, 0.0
  %1305 = vadd.xlane.f32.xlu0 %v1304
  %v1306 = vpop.xlane.xlu0 %1305
  %v1307 = vsel %vm1063, %v1227, 0.0
  %1308 = vadd.xlane.f32.xlu0 %v1307
  %v1309 = vpop.xlane.xlu0 %1308
  %v1310 = vsel %vm1063, %v1229, 0.0
  %1311 = vadd.xlane.f32.xlu0 %v1310
  %v1312 = vpop.xlane.xlu0 %1311
  %v1313 = vsel %vm1063, %v1231, 0.0
  %1314 = vadd.xlane.f32.xlu0 %v1313
  %v1315 = vpop.xlane.xlu0 %1314
  %v1316 = vsel %vm1063, %v1233, 0.0
  %1317 = vadd.xlane.f32.xlu0 %v1316
  %v1318 = vpop.xlane.xlu0 %1317
  %v1319 = vsel %vm1063, %v1235, 0.0
  %1320 = vadd.xlane.f32.xlu0 %v1319
  %v1321 = vpop.xlane.xlu0 %1320
  %v1322 = vsel %vm1063, %v1237, 0.0
  %1323 = vadd.xlane.f32.xlu0 %v1322
  %v1324 = vpop.xlane.xlu0 %1323
  %v1325 = vsel %vm1063, %v1239, 0.0
  %1326 = vadd.xlane.f32.xlu0 %v1325
  %v1327 = vpop.xlane.xlu0 %1326
  %v1328 = vsel %vm1063, %v1241, 0.0
  %1329 = vadd.xlane.f32.xlu0 %v1328
  %v1330 = vpop.xlane.xlu0 %1329
  %v1331 = vsel %vm1063, %v1243, 0.0
  %1332 = vadd.xlane.f32.xlu0 %v1331
  %v1333 = vpop.xlane.xlu0 %1332
  %v1334 = vsel %vm1063, %v1245, 0.0
  %1335 = vadd.xlane.f32.xlu0 %v1334
  %v1336 = vpop.xlane.xlu0 %1335
  %v1337 = vsel %vm1063, %v1247, 0.0
  %1338 = vadd.xlane.f32.xlu0 %v1337
  %v1339 = vpop.xlane.xlu0 %1338
  %v1340 = vsel %vm1063, %v1249, 0.0
  %1341 = vadd.xlane.f32.xlu0 %v1340
  %v1342 = vpop.xlane.xlu0 %1341
  %v1343 = vsel %vm1063, %v1251, 0.0
  %1344 = vadd.xlane.f32.xlu0 %v1343
  %v1345 = vpop.xlane.xlu0 %1344
  %v1346 = vsel %vm1063, %v1253, 0.0
  %1347 = vadd.xlane.f32.xlu0 %v1346
  %v1348 = vpop.xlane.xlu0 %1347
  %v1349 = vsel %vm1063, %v1255, 0.0
  %1350 = vadd.xlane.f32.xlu0 %v1349
  %v1351 = vpop.xlane.xlu0 %1350
  %v1352 = vrcp.pop %v1258
  %v1353 = vrcp.pop %v1261
  %v1354 = vrcp.pop %v1264
  %v1355 = vrcp.pop %v1267
  %v1356 = vrcp.pop %v1270
  %v1357 = vrcp.pop %v1273
  %v1358 = vrcp.pop %v1276
  %v1359 = vrcp.pop %v1279
  %v1360 = vrcp.pop %v1282
  %v1361 = vrcp.pop %v1285
  %v1362 = vrcp.pop %v1288
  %v1363 = vrcp.pop %v1291
  %v1364 = vrcp.pop %v1294
  %v1365 = vrcp.pop %v1297
  %v1366 = vrcp.pop %v1300
  %v1367 = vrcp.pop %v1303
  %v1368 = vrcp.pop %v1306
  %v1369 = vrcp.pop %v1309
  %v1370 = vrcp.pop %v1312
  %v1371 = vrcp.pop %v1315
  %v1372 = vrcp.pop %v1318
  %v1373 = vrcp.pop %v1321
  %v1374 = vrcp.pop %v1324
  %v1375 = vrcp.pop %v1327
  %v1376 = vrcp.pop %v1330
  %v1377 = vrcp.pop %v1333
  %v1378 = vrcp.pop %v1336
  %v1379 = vrcp.pop %v1339
  %v1380 = vrcp.pop %v1342
  %v1381 = vrcp.pop %v1345
  %v1382 = vrcp.pop %v1348
  %v1383 = vrcp.pop %v1351
  %v1384 = vmul.f32 %v1193, %v1352
  %v1385 = vmul.f32 %v1195, %v1353
  %v1386 = vmul.f32 %v1197, %v1354
  %v1387 = vmul.f32 %v1199, %v1355
  %v1388 = vmul.f32 %v1201, %v1356
  %v1389 = vmul.f32 %v1203, %v1357
  %v1390 = vmul.f32 %v1205, %v1358
  %v1391 = vmul.f32 %v1207, %v1359
  %v1392 = vmul.f32 %v1209, %v1360
  %v1393 = vmul.f32 %v1211, %v1361
  %v1394 = vmul.f32 %v1213, %v1362
  %v1395 = vmul.f32 %v1215, %v1363
  %v1396 = vmul.f32 %v1217, %v1364
  %v1397 = vmul.f32 %v1219, %v1365
  %v1398 = vmul.f32 %v1221, %v1366
  %v1399 = vmul.f32 %v1223, %v1367
  %v1400 = vmul.f32 %v1225, %v1368
  %v1401 = vmul.f32 %v1227, %v1369
  %v1402 = vmul.f32 %v1229, %v1370
  %v1403 = vmul.f32 %v1231, %v1371
  %v1404 = vmul.f32 %v1233, %v1372
  %v1405 = vmul.f32 %v1235, %v1373
  %v1406 = vmul.f32 %v1237, %v1374
  %v1407 = vmul.f32 %v1239, %v1375
  %v1408 = vmul.f32 %v1241, %v1376
  %v1409 = vmul.f32 %v1243, %v1377
  %v1410 = vmul.f32 %v1245, %v1378
  %v1411 = vmul.f32 %v1247, %v1379
  %v1412 = vmul.f32 %v1249, %v1380
  %v1413 = vmul.f32 %v1251, %v1381
  %v1414 = vmul.f32 %v1253, %v1382
  %v1415 = vmul.f32 %v1255, %v1383
  %v1416 = vpack.c.bf16 %v1384, %v1384
  %v1417 = vpack.c.bf16 %v1385, %v1385
  %v1418 = vpack.c.bf16 %v1386, %v1386
  %v1419 = vpack.c.bf16 %v1387, %v1387
  %v1420 = vpack.c.bf16 %v1388, %v1388
  %v1421 = vpack.c.bf16 %v1389, %v1389
  %v1422 = vpack.c.bf16 %v1390, %v1390
  %v1423 = vpack.c.bf16 %v1391, %v1391
  %v1424 = vpack.c.bf16 %v1392, %v1392
  %v1425 = vpack.c.bf16 %v1393, %v1393
  %v1426 = vpack.c.bf16 %v1394, %v1394
  %v1427 = vpack.c.bf16 %v1395, %v1395
  %v1428 = vpack.c.bf16 %v1396, %v1396
  %v1429 = vpack.c.bf16 %v1397, %v1397
  %v1430 = vpack.c.bf16 %v1398, %v1398
  %v1431 = vpack.c.bf16 %v1399, %v1399
  %v1432 = vpack.c.bf16 %v1400, %v1400
  %v1433 = vpack.c.bf16 %v1401, %v1401
  %v1434 = vpack.c.bf16 %v1402, %v1402
  %v1435 = vpack.c.bf16 %v1403, %v1403
  %v1436 = vpack.c.bf16 %v1404, %v1404
  %v1437 = vpack.c.bf16 %v1405, %v1405
  %v1438 = vpack.c.bf16 %v1406, %v1406
  %v1439 = vpack.c.bf16 %v1407, %v1407
  %v1440 = vpack.c.bf16 %v1408, %v1408
  %v1441 = vpack.c.bf16 %v1409, %v1409
  %v1442 = vpack.c.bf16 %v1410, %v1410
  %v1443 = vpack.c.bf16 %v1411, %v1411
  %v1444 = vpack.c.bf16 %v1412, %v1412
  %v1445 = vpack.c.bf16 %v1413, %v1413
  %v1446 = vpack.c.bf16 %v1414, %v1414
  %v1447 = vpack.c.bf16 %v1415, %v1415
  %v1456 = vunpack.c.l.b16 %v1416
  %v1457 = vunpack.c.l.b16 %v1417
  %v1458 = vunpack.c.l.b16 %v1418
  %v1459 = vunpack.c.l.b16 %v1419
  %v1460 = vunpack.c.l.b16 %v1420
  %v1461 = vunpack.c.l.b16 %v1421
  %v1462 = vunpack.c.l.b16 %v1422
  %v1463 = vunpack.c.l.b16 %v1423
  %v1464 = vpack.c.b16 %v1457, %v1456
  %v1465 = vpack.c.b16 %v1459, %v1458
  %v1466 = vpack.c.b16 %v1461, %v1460
  %v1467 = vpack.c.b16 %v1463, %v1462
  %1468 = vrot.lane.b32.xlu0 %v742, 64
  %v1469 = vpop.permute.xlu0 %1468
  %1470 = vrot.lane.b32.xlu0 %v743, 64
  %v1471 = vpop.permute.xlu0 %1470
  %1472 = vrot.lane.b32.xlu0 %v744, 64
  %v1473 = vpop.permute.xlu0 %1472
  %1474 = vrot.lane.b32.xlu0 %v745, 64
  %v1475 = vpop.permute.xlu0 %1474
  %v1481 = vsel %vm1063, %v1464, 0
  %v1484 = vsel %vm1063, %v1465, 0
  %v1487 = vsel %vm1063, %v1466, 0
  %v1490 = vsel %vm1063, %v1467, 0
  %1492 = vmatpush.bf16.msra.mxu0 0
  %1493 = vmatpush.bf16.msra.mxu0 0
  %1494 = vmatpush.bf16.msra.mxu0 0
  %1495 = vmatpush.bf16.msra.mxu0 0
  %1496 = vmatpush.bf16.msra.mxu0 %v1475
  %1497 = vmatpush.bf16.msra.mxu0 %v1473
  %1498 = vmatpush.bf16.msra.mxu0 %v1471
  %1499 = vmatpush.bf16.msra.mxu0 %v1469
  %1500 = vmatmul.bf16.gmra.mxu0 %v1481
  %v1501 = vpop.f32.mrf.mxu0
  %v1502 = vadd.f32 0.0, %v1501
  %v1503 = vpop.f32.mrf.mxu0
  %v1504 = vadd.f32 0.0, %v1503
  %1505 = vmatmul.bf16.gmra.mxu0 %v1484
  %v1506 = vpop.f32.mrf.mxu0
  %v1507 = vadd.f32 0.0, %v1506
  %v1508 = vpop.f32.mrf.mxu0
  %v1509 = vadd.f32 0.0, %v1508
  %1510 = vmatmul.bf16.gmra.mxu0 %v1487
  %v1511 = vpop.f32.mrf.mxu0
  %v1512 = vadd.f32 0.0, %v1511
  %v1513 = vpop.f32.mrf.mxu0
  %v1514 = vadd.f32 0.0, %v1513
  %1515 = vmatmul.bf16.gmra.mxu0 %v1490
  %v1516 = vpop.f32.mrf.mxu0
  %v1517 = vadd.f32 0.0, %v1516
  %v1518 = vpop.f32.mrf.mxu0
  %v1519 = vadd.f32 0.0, %v1518
  %1520 = vdwg.mxu0
  %v1529 = vunpack.c.l.b16 %v1424
  %v1530 = vunpack.c.l.b16 %v1425
  %v1531 = vunpack.c.l.b16 %v1426
  %v1532 = vunpack.c.l.b16 %v1427
  %v1533 = vunpack.c.l.b16 %v1428
  %v1534 = vunpack.c.l.b16 %v1429
  %v1535 = vunpack.c.l.b16 %v1430
  %v1536 = vunpack.c.l.b16 %v1431
  %v1537 = vpack.c.b16 %v1530, %v1529
  %v1538 = vpack.c.b16 %v1532, %v1531
  %v1539 = vpack.c.b16 %v1534, %v1533
  %v1540 = vpack.c.b16 %v1536, %v1535
  %1541 = vrot.lane.b32.xlu0 %v828, 64
  %v1542 = vpop.permute.xlu0 %1541
  %1543 = vrot.lane.b32.xlu0 %v829, 64
  %v1544 = vpop.permute.xlu0 %1543
  %1545 = vrot.lane.b32.xlu0 %v830, 64
  %v1546 = vpop.permute.xlu0 %1545
  %1547 = vrot.lane.b32.xlu0 %v831, 64
  %v1548 = vpop.permute.xlu0 %1547
  %v1554 = vsel %vm1063, %v1537, 0
  %v1557 = vsel %vm1063, %v1538, 0
  %v1560 = vsel %vm1063, %v1539, 0
  %v1563 = vsel %vm1063, %v1540, 0
  %1565 = vmatpush.bf16.msra.mxu0 0
  %1566 = vmatpush.bf16.msra.mxu0 0
  %1567 = vmatpush.bf16.msra.mxu0 0
  %1568 = vmatpush.bf16.msra.mxu0 0
  %1569 = vmatpush.bf16.msra.mxu0 %v1548
  %1570 = vmatpush.bf16.msra.mxu0 %v1546
  %1571 = vmatpush.bf16.msra.mxu0 %v1544
  %1572 = vmatpush.bf16.msra.mxu0 %v1542
  %1573 = vmatmul.bf16.gmra.mxu0 %v1554
  %v1574 = vpop.f32.mrf.mxu0
  %v1575 = vadd.f32 0.0, %v1574
  %v1576 = vpop.f32.mrf.mxu0
  %v1577 = vadd.f32 0.0, %v1576
  %1578 = vmatmul.bf16.gmra.mxu0 %v1557
  %v1579 = vpop.f32.mrf.mxu0
  %v1580 = vadd.f32 0.0, %v1579
  %v1581 = vpop.f32.mrf.mxu0
  %v1582 = vadd.f32 0.0, %v1581
  %1583 = vmatmul.bf16.gmra.mxu0 %v1560
  %v1584 = vpop.f32.mrf.mxu0
  %v1585 = vadd.f32 0.0, %v1584
  %v1586 = vpop.f32.mrf.mxu0
  %v1587 = vadd.f32 0.0, %v1586
  %1588 = vmatmul.bf16.gmra.mxu0 %v1563
  %v1589 = vpop.f32.mrf.mxu0
  %v1590 = vadd.f32 0.0, %v1589
  %v1591 = vpop.f32.mrf.mxu0
  %v1592 = vadd.f32 0.0, %v1591
  %1593 = vdwg.mxu0
  %v1602 = vunpack.c.l.b16 %v1432
  %v1603 = vunpack.c.l.b16 %v1433
  %v1604 = vunpack.c.l.b16 %v1434
  %v1605 = vunpack.c.l.b16 %v1435
  %v1606 = vunpack.c.l.b16 %v1436
  %v1607 = vunpack.c.l.b16 %v1437
  %v1608 = vunpack.c.l.b16 %v1438
  %v1609 = vunpack.c.l.b16 %v1439
  %v1610 = vpack.c.b16 %v1603, %v1602
  %v1611 = vpack.c.b16 %v1605, %v1604
  %v1612 = vpack.c.b16 %v1607, %v1606
  %v1613 = vpack.c.b16 %v1609, %v1608
  %1614 = vrot.lane.b32.xlu0 %v913, 64
  %v1615 = vpop.permute.xlu0 %1614
  %1616 = vrot.lane.b32.xlu0 %v914, 64
  %v1617 = vpop.permute.xlu0 %1616
  %1618 = vrot.lane.b32.xlu0 %v915, 64
  %v1619 = vpop.permute.xlu0 %1618
  %1620 = vrot.lane.b32.xlu0 %v916, 64
  %v1621 = vpop.permute.xlu0 %1620
  %v1627 = vsel %vm1063, %v1610, 0
  %v1630 = vsel %vm1063, %v1611, 0
  %v1633 = vsel %vm1063, %v1612, 0
  %v1636 = vsel %vm1063, %v1613, 0
  %1638 = vmatpush.bf16.msra.mxu0 0
  %1639 = vmatpush.bf16.msra.mxu0 0
  %1640 = vmatpush.bf16.msra.mxu0 0
  %1641 = vmatpush.bf16.msra.mxu0 0
  %1642 = vmatpush.bf16.msra.mxu0 %v1621
  %1643 = vmatpush.bf16.msra.mxu0 %v1619
  %1644 = vmatpush.bf16.msra.mxu0 %v1617
  %1645 = vmatpush.bf16.msra.mxu0 %v1615
  %1646 = vmatmul.bf16.gmra.mxu0 %v1627
  %v1647 = vpop.f32.mrf.mxu0
  %v1648 = vadd.f32 0.0, %v1647
  %v1649 = vpop.f32.mrf.mxu0
  %v1650 = vadd.f32 0.0, %v1649
  %1651 = vmatmul.bf16.gmra.mxu0 %v1630
  %v1652 = vpop.f32.mrf.mxu0
  %v1653 = vadd.f32 0.0, %v1652
  %v1654 = vpop.f32.mrf.mxu0
  %v1655 = vadd.f32 0.0, %v1654
  %1656 = vmatmul.bf16.gmra.mxu0 %v1633
  %v1657 = vpop.f32.mrf.mxu0
  %v1658 = vadd.f32 0.0, %v1657
  %v1659 = vpop.f32.mrf.mxu0
  %v1660 = vadd.f32 0.0, %v1659
  %1661 = vmatmul.bf16.gmra.mxu0 %v1636
  %v1662 = vpop.f32.mrf.mxu0
  %v1663 = vadd.f32 0.0, %v1662
  %v1664 = vpop.f32.mrf.mxu0
  %v1665 = vadd.f32 0.0, %v1664
  %1666 = vdwg.mxu0
  %v1675 = vunpack.c.l.b16 %v1440
  %v1676 = vunpack.c.l.b16 %v1441
  %v1677 = vunpack.c.l.b16 %v1442
  %v1678 = vunpack.c.l.b16 %v1443
  %v1679 = vunpack.c.l.b16 %v1444
  %v1680 = vunpack.c.l.b16 %v1445
  %v1681 = vunpack.c.l.b16 %v1446
  %v1682 = vunpack.c.l.b16 %v1447
  %v1683 = vpack.c.b16 %v1676, %v1675
  %v1684 = vpack.c.b16 %v1678, %v1677
  %v1685 = vpack.c.b16 %v1680, %v1679
  %v1686 = vpack.c.b16 %v1682, %v1681
  %1687 = vrot.lane.b32.xlu0 %v998, 64
  %v1688 = vpop.permute.xlu0 %1687
  %1689 = vrot.lane.b32.xlu0 %v999, 64
  %v1690 = vpop.permute.xlu0 %1689
  %1691 = vrot.lane.b32.xlu0 %v1000, 64
  %v1692 = vpop.permute.xlu0 %1691
  %1693 = vrot.lane.b32.xlu0 %v1001, 64
  %v1694 = vpop.permute.xlu0 %1693
  %v1700 = vsel %vm1063, %v1683, 0
  %v1703 = vsel %vm1063, %v1684, 0
  %v1706 = vsel %vm1063, %v1685, 0
  %v1709 = vsel %vm1063, %v1686, 0
  %1711 = vmatpush.bf16.msra.mxu0 0
  %1712 = vmatpush.bf16.msra.mxu0 0
  %1713 = vmatpush.bf16.msra.mxu0 0
  %1714 = vmatpush.bf16.msra.mxu0 0
  %1715 = vmatpush.bf16.msra.mxu0 %v1694
  %1716 = vmatpush.bf16.msra.mxu0 %v1692
  %1717 = vmatpush.bf16.msra.mxu0 %v1690
  %1718 = vmatpush.bf16.msra.mxu0 %v1688
  %1719 = vmatmul.bf16.gmra.mxu0 %v1700
  %v1720 = vpop.f32.mrf.mxu0
  %v1721 = vadd.f32 0.0, %v1720
  %v1722 = vpop.f32.mrf.mxu0
  %v1723 = vadd.f32 0.0, %v1722
  %1724 = vmatmul.bf16.gmra.mxu0 %v1703
  %v1725 = vpop.f32.mrf.mxu0
  %v1726 = vadd.f32 0.0, %v1725
  %v1727 = vpop.f32.mrf.mxu0
  %v1728 = vadd.f32 0.0, %v1727
  %1729 = vmatmul.bf16.gmra.mxu0 %v1706
  %v1730 = vpop.f32.mrf.mxu0
  %v1731 = vadd.f32 0.0, %v1730
  %v1732 = vpop.f32.mrf.mxu0
  %v1733 = vadd.f32 0.0, %v1732
  %1734 = vmatmul.bf16.gmra.mxu0 %v1709
  %v1735 = vpop.f32.mrf.mxu0
  %v1736 = vadd.f32 0.0, %v1735
  %v1737 = vpop.f32.mrf.mxu0
  %v1738 = vadd.f32 0.0, %v1737
  %1739 = vdwg.mxu0
  %1748 = vrot.lane.b32.xlu0 %v1575, 8
  %v1749 = vpop.permute.xlu0 %1748
  %1750 = vrot.lane.b32.xlu0 %v1577, 8
  %v1751 = vpop.permute.xlu0 %1750
  %1752 = vrot.lane.b32.xlu0 %v1580, 8
  %v1753 = vpop.permute.xlu0 %1752
  %1754 = vrot.lane.b32.xlu0 %v1582, 8
  %v1755 = vpop.permute.xlu0 %1754
  %1756 = vrot.lane.b32.xlu0 %v1585, 8
  %v1757 = vpop.permute.xlu0 %1756
  %1758 = vrot.lane.b32.xlu0 %v1587, 8
  %v1759 = vpop.permute.xlu0 %1758
  %1760 = vrot.lane.b32.xlu0 %v1590, 8
  %v1761 = vpop.permute.xlu0 %1760
  %1762 = vrot.lane.b32.xlu0 %v1592, 8
  %v1763 = vpop.permute.xlu0 %1762
  %1780 = vrot.lane.b32.xlu0 %v1648, 16
  %v1781 = vpop.permute.xlu0 %1780
  %1782 = vrot.lane.b32.xlu0 %v1650, 16
  %v1783 = vpop.permute.xlu0 %1782
  %1784 = vrot.lane.b32.xlu0 %v1653, 16
  %v1785 = vpop.permute.xlu0 %1784
  %1786 = vrot.lane.b32.xlu0 %v1655, 16
  %v1787 = vpop.permute.xlu0 %1786
  %1788 = vrot.lane.b32.xlu0 %v1658, 16
  %v1789 = vpop.permute.xlu0 %1788
  %1790 = vrot.lane.b32.xlu0 %v1660, 16
  %v1791 = vpop.permute.xlu0 %1790
  %1792 = vrot.lane.b32.xlu0 %v1663, 16
  %v1793 = vpop.permute.xlu0 %1792
  %1794 = vrot.lane.b32.xlu0 %v1665, 16
  %v1795 = vpop.permute.xlu0 %1794
  %1812 = vrot.lane.b32.xlu0 %v1721, 24
  %v1813 = vpop.permute.xlu0 %1812
  %1814 = vrot.lane.b32.xlu0 %v1723, 24
  %v1815 = vpop.permute.xlu0 %1814
  %1816 = vrot.lane.b32.xlu0 %v1726, 24
  %v1817 = vpop.permute.xlu0 %1816
  %1818 = vrot.lane.b32.xlu0 %v1728, 24
  %v1819 = vpop.permute.xlu0 %1818
  %1820 = vrot.lane.b32.xlu0 %v1731, 24
  %v1821 = vpop.permute.xlu0 %1820
  %1822 = vrot.lane.b32.xlu0 %v1733, 24
  %v1823 = vpop.permute.xlu0 %1822
  %1824 = vrot.lane.b32.xlu0 %v1736, 24
  %v1825 = vpop.permute.xlu0 %1824
  %1826 = vrot.lane.b32.xlu0 %v1738, 24
  %v1827 = vpop.permute.xlu0 %1826
  %v1836 = vsel %vm754, %v1502, %v1749
  %v1837 = vsel %vm754, %v1504, %v1751
  %v1838 = vsel %vm754, %v1507, %v1753
  %v1839 = vsel %vm754, %v1509, %v1755
  %v1840 = vsel %vm754, %v1512, %v1757
  %v1841 = vsel %vm754, %v1514, %v1759
  %v1842 = vsel %vm754, %v1517, %v1761
  %v1843 = vsel %vm754, %v1519, %v1763
  %vm1844 = vcmask 130048
  %v1845 = vsel %vm1844, %v1836, %v1781
  %v1846 = vsel %vm1844, %v1837, %v1783
  %v1847 = vsel %vm1844, %v1838, %v1785
  %v1848 = vsel %vm1844, %v1839, %v1787
  %v1849 = vsel %vm1844, %v1840, %v1789
  %v1850 = vsel %vm1844, %v1841, %v1791
  %v1851 = vsel %vm1844, %v1842, %v1793
  %v1852 = vsel %vm1844, %v1843, %v1795
  %vm1853 = vcmask 195584
  %v1854 = vsel %vm1853, %v1845, %v1813
  %v1855 = vsel %vm1853, %v1846, %v1815
  %v1856 = vsel %vm1853, %v1847, %v1817
  %v1857 = vsel %vm1853, %v1848, %v1819
  %v1858 = vsel %vm1853, %v1849, %v1821
  %v1859 = vsel %vm1853, %v1850, %v1823
  %v1860 = vsel %vm1853, %v1851, %v1825
  %v1861 = vsel %vm1853, %v1852, %v1827
  %1870 = vrot.lane.b32.xlu0 %v586, 120
  %v1871 = vpop.permute.xlu0 %1870
  %1872 = vrot.lane.b32.xlu0 %v587, 120
  %v1873 = vpop.permute.xlu0 %1872
  %1874 = vrot.lane.b32.xlu0 %v588, 120
  %v1875 = vpop.permute.xlu0 %1874
  %1876 = vrot.lane.b32.xlu0 %v589, 120
  %v1877 = vpop.permute.xlu0 %1876
  %1878 = vrot.lane.b32.xlu0 %v590, 120
  %v1879 = vpop.permute.xlu0 %1878
  %1880 = vrot.lane.b32.xlu0 %v591, 120
  %v1881 = vpop.permute.xlu0 %1880
  %1882 = vrot.lane.b32.xlu0 %v592, 120
  %v1883 = vpop.permute.xlu0 %1882
  %1884 = vrot.lane.b32.xlu0 %v593, 120
  %v1885 = vpop.permute.xlu0 %1884
  %1886 = vrot.lane.b32.xlu0 %v586, 112
  %v1887 = vpop.permute.xlu0 %1886
  %1888 = vrot.lane.b32.xlu0 %v587, 112
  %v1889 = vpop.permute.xlu0 %1888
  %1890 = vrot.lane.b32.xlu0 %v588, 112
  %v1891 = vpop.permute.xlu0 %1890
  %1892 = vrot.lane.b32.xlu0 %v589, 112
  %v1893 = vpop.permute.xlu0 %1892
  %1894 = vrot.lane.b32.xlu0 %v590, 112
  %v1895 = vpop.permute.xlu0 %1894
  %1896 = vrot.lane.b32.xlu0 %v591, 112
  %v1897 = vpop.permute.xlu0 %1896
  %1898 = vrot.lane.b32.xlu0 %v592, 112
  %v1899 = vpop.permute.xlu0 %1898
  %1900 = vrot.lane.b32.xlu0 %v593, 112
  %v1901 = vpop.permute.xlu0 %1900
  %1902 = vrot.lane.b32.xlu0 %v586, 104
  %v1903 = vpop.permute.xlu0 %1902
  %1904 = vrot.lane.b32.xlu0 %v587, 104
  %v1905 = vpop.permute.xlu0 %1904
  %1906 = vrot.lane.b32.xlu0 %v588, 104
  %v1907 = vpop.permute.xlu0 %1906
  %1908 = vrot.lane.b32.xlu0 %v589, 104
  %v1909 = vpop.permute.xlu0 %1908
  %1910 = vrot.lane.b32.xlu0 %v590, 104
  %v1911 = vpop.permute.xlu0 %1910
  %1912 = vrot.lane.b32.xlu0 %v591, 104
  %v1913 = vpop.permute.xlu0 %1912
  %1914 = vrot.lane.b32.xlu0 %v592, 104
  %v1915 = vpop.permute.xlu0 %1914
  %1916 = vrot.lane.b32.xlu0 %v593, 104
  %v1917 = vpop.permute.xlu0 %1916
  %1926 = vrot.lane.b32.xlu0 %v602, 120
  %v1927 = vpop.permute.xlu0 %1926
  %1928 = vrot.lane.b32.xlu0 %v603, 120
  %v1929 = vpop.permute.xlu0 %1928
  %1930 = vrot.lane.b32.xlu0 %v604, 120
  %v1931 = vpop.permute.xlu0 %1930
  %1932 = vrot.lane.b32.xlu0 %v605, 120
  %v1933 = vpop.permute.xlu0 %1932
  %1934 = vrot.lane.b32.xlu0 %v606, 120
  %v1935 = vpop.permute.xlu0 %1934
  %1936 = vrot.lane.b32.xlu0 %v607, 120
  %v1937 = vpop.permute.xlu0 %1936
  %1938 = vrot.lane.b32.xlu0 %v608, 120
  %v1939 = vpop.permute.xlu0 %1938
  %1940 = vrot.lane.b32.xlu0 %v609, 120
  %v1941 = vpop.permute.xlu0 %1940
  %1942 = vrot.lane.b32.xlu0 %v602, 112
  %v1943 = vpop.permute.xlu0 %1942
  %1944 = vrot.lane.b32.xlu0 %v603, 112
  %v1945 = vpop.permute.xlu0 %1944
  %1946 = vrot.lane.b32.xlu0 %v604, 112
  %v1947 = vpop.permute.xlu0 %1946
  %1948 = vrot.lane.b32.xlu0 %v605, 112
  %v1949 = vpop.permute.xlu0 %1948
  %1950 = vrot.lane.b32.xlu0 %v606, 112
  %v1951 = vpop.permute.xlu0 %1950
  %1952 = vrot.lane.b32.xlu0 %v607, 112
  %v1953 = vpop.permute.xlu0 %1952
  %1954 = vrot.lane.b32.xlu0 %v608, 112
  %v1955 = vpop.permute.xlu0 %1954
  %1956 = vrot.lane.b32.xlu0 %v609, 112
  %v1957 = vpop.permute.xlu0 %1956
  %1958 = vrot.lane.b32.xlu0 %v602, 104
  %v1959 = vpop.permute.xlu0 %1958
  %1960 = vrot.lane.b32.xlu0 %v603, 104
  %v1961 = vpop.permute.xlu0 %1960
  %1962 = vrot.lane.b32.xlu0 %v604, 104
  %v1963 = vpop.permute.xlu0 %1962
  %1964 = vrot.lane.b32.xlu0 %v605, 104
  %v1965 = vpop.permute.xlu0 %1964
  %1966 = vrot.lane.b32.xlu0 %v606, 104
  %v1967 = vpop.permute.xlu0 %1966
  %1968 = vrot.lane.b32.xlu0 %v607, 104
  %v1969 = vpop.permute.xlu0 %1968
  %1970 = vrot.lane.b32.xlu0 %v608, 104
  %v1971 = vpop.permute.xlu0 %1970
  %1972 = vrot.lane.b32.xlu0 %v609, 104
  %v1973 = vpop.permute.xlu0 %1972
  %v1974 = vunpack.c.l.b16 %v586
  %v1975 = vunpack.c.l.b16 %v587
  %v1976 = vunpack.c.l.b16 %v588
  %v1977 = vunpack.c.l.b16 %v589
  %v1978 = vunpack.c.l.b16 %v590
  %v1979 = vunpack.c.l.b16 %v591
  %v1980 = vunpack.c.l.b16 %v592
  %v1981 = vunpack.c.l.b16 %v593
  %v1982 = vpack.c.b16 %v1975, %v1974
  %v1983 = vpack.c.b16 %v1977, %v1976
  %v1984 = vpack.c.b16 %v1979, %v1978
  %v1985 = vpack.c.b16 %v1981, %v1980
  %v1986 = vunpack.c.l.b16 %v602
  %v1987 = vunpack.c.l.b16 %v603
  %v1988 = vunpack.c.l.b16 %v604
  %v1989 = vunpack.c.l.b16 %v605
  %v1990 = vunpack.c.l.b16 %v606
  %v1991 = vunpack.c.l.b16 %v607
  %v1992 = vunpack.c.l.b16 %v608
  %v1993 = vunpack.c.l.b16 %v609
  %v1994 = vpack.c.b16 %v1987, %v1986
  %v1995 = vpack.c.b16 %v1989, %v1988
  %v1996 = vpack.c.b16 %v1991, %v1990
  %v1997 = vpack.c.b16 %v1993, %v1992
  %1998 = vrot.lane.b32.xlu0 %v1994, 96
  %v1999 = vpop.permute.xlu0 %1998
  %2000 = vrot.lane.b32.xlu0 %v1995, 96
  %v2001 = vpop.permute.xlu0 %2000
  %2002 = vrot.lane.b32.xlu0 %v1996, 96
  %v2003 = vpop.permute.xlu0 %2002
  %2004 = vrot.lane.b32.xlu0 %v1997, 96
  %v2005 = vpop.permute.xlu0 %2004
  %v2007 = vsel %vm754, %v1982, 0
  %v2010 = vsel %vm754, %v1983, 0
  %v2013 = vsel %vm754, %v1984, 0
  %v2016 = vsel %vm754, %v1985, 0
  %v2019 = vsel %vm754, %v1999, 0
  %v2022 = vsel %vm754, %v2001, 0
  %v2025 = vsel %vm754, %v2003, 0
  %v2028 = vsel %vm754, %v2005, 0
  %2030 = vmatpush.bf16.xpose.msra.mxu0 0
  %2031 = vmatpush.bf16.xpose.msra.mxu0 0
  %2032 = vmatpush.bf16.xpose.msra.mxu0 0
  %2033 = vmatpush.bf16.xpose.msra.mxu0 0
  %2034 = vmatpush.bf16.xpose.msra.mxu0 %v2028
  %2035 = vmatpush.bf16.xpose.msra.mxu0 %v2025
  %2036 = vmatpush.bf16.xpose.msra.mxu0 %v2022
  %2037 = vmatpush.bf16.xpose.msra.mxu0 %v2019
  %2038 = vmatmul.bf16.gmra.mxu0 %v2007
  %v2039 = vpop.f32.mrf.mxu0
  %v2040 = vadd.f32 0.0, %v2039
  %v2041 = vpop.f32.mrf.mxu0
  %v2042 = vadd.f32 0.0, %v2041
  %2043 = vmatmul.bf16.gmra.mxu0 %v2010
  %v2044 = vpop.f32.mrf.mxu0
  %v2045 = vadd.f32 0.0, %v2044
  %v2046 = vpop.f32.mrf.mxu0
  %v2047 = vadd.f32 0.0, %v2046
  %2048 = vmatmul.bf16.gmra.mxu0 %v2013
  %v2049 = vpop.f32.mrf.mxu0
  %v2050 = vadd.f32 0.0, %v2049
  %v2051 = vpop.f32.mrf.mxu0
  %v2052 = vadd.f32 0.0, %v2051
  %2053 = vmatmul.bf16.gmra.mxu0 %v2016
  %v2054 = vpop.f32.mrf.mxu0
  %v2055 = vadd.f32 0.0, %v2054
  %v2056 = vpop.f32.mrf.mxu0
  %v2057 = vadd.f32 0.0, %v2056
  %2058 = vdwg.mxu0
  %v2059 = vunpack.c.l.b16 %v1871
  %v2060 = vunpack.c.l.b16 %v1873
  %v2061 = vunpack.c.l.b16 %v1875
  %v2062 = vunpack.c.l.b16 %v1877
  %v2063 = vunpack.c.l.b16 %v1879
  %v2064 = vunpack.c.l.b16 %v1881
  %v2065 = vunpack.c.l.b16 %v1883
  %v2066 = vunpack.c.l.b16 %v1885
  %v2067 = vpack.c.b16 %v2060, %v2059
  %v2068 = vpack.c.b16 %v2062, %v2061
  %v2069 = vpack.c.b16 %v2064, %v2063
  %v2070 = vpack.c.b16 %v2066, %v2065
  %v2071 = vunpack.c.l.b16 %v1927
  %v2072 = vunpack.c.l.b16 %v1929
  %v2073 = vunpack.c.l.b16 %v1931
  %v2074 = vunpack.c.l.b16 %v1933
  %v2075 = vunpack.c.l.b16 %v1935
  %v2076 = vunpack.c.l.b16 %v1937
  %v2077 = vunpack.c.l.b16 %v1939
  %v2078 = vunpack.c.l.b16 %v1941
  %v2079 = vpack.c.b16 %v2072, %v2071
  %v2080 = vpack.c.b16 %v2074, %v2073
  %v2081 = vpack.c.b16 %v2076, %v2075
  %v2082 = vpack.c.b16 %v2078, %v2077
  %2083 = vrot.lane.b32.xlu0 %v2079, 96
  %v2084 = vpop.permute.xlu0 %2083
  %2085 = vrot.lane.b32.xlu0 %v2080, 96
  %v2086 = vpop.permute.xlu0 %2085
  %2087 = vrot.lane.b32.xlu0 %v2081, 96
  %v2088 = vpop.permute.xlu0 %2087
  %2089 = vrot.lane.b32.xlu0 %v2082, 96
  %v2090 = vpop.permute.xlu0 %2089
  %v2092 = vsel %vm754, %v2067, 0
  %v2095 = vsel %vm754, %v2068, 0
  %v2098 = vsel %vm754, %v2069, 0
  %v2101 = vsel %vm754, %v2070, 0
  %v2104 = vsel %vm754, %v2084, 0
  %v2107 = vsel %vm754, %v2086, 0
  %v2110 = vsel %vm754, %v2088, 0
  %v2113 = vsel %vm754, %v2090, 0
  %2115 = vmatpush.bf16.xpose.msra.mxu0 0
  %2116 = vmatpush.bf16.xpose.msra.mxu0 0
  %2117 = vmatpush.bf16.xpose.msra.mxu0 0
  %2118 = vmatpush.bf16.xpose.msra.mxu0 0
  %2119 = vmatpush.bf16.xpose.msra.mxu0 %v2113
  %2120 = vmatpush.bf16.xpose.msra.mxu0 %v2110
  %2121 = vmatpush.bf16.xpose.msra.mxu0 %v2107
  %2122 = vmatpush.bf16.xpose.msra.mxu0 %v2104
  %2123 = vmatmul.bf16.gmra.mxu0 %v2092
  %v2124 = vpop.f32.mrf.mxu0
  %v2125 = vadd.f32 0.0, %v2124
  %v2126 = vpop.f32.mrf.mxu0
  %v2127 = vadd.f32 0.0, %v2126
  %2128 = vmatmul.bf16.gmra.mxu0 %v2095
  %v2129 = vpop.f32.mrf.mxu0
  %v2130 = vadd.f32 0.0, %v2129
  %v2131 = vpop.f32.mrf.mxu0
  %v2132 = vadd.f32 0.0, %v2131
  %2133 = vmatmul.bf16.gmra.mxu0 %v2098
  %v2134 = vpop.f32.mrf.mxu0
  %v2135 = vadd.f32 0.0, %v2134
  %v2136 = vpop.f32.mrf.mxu0
  %v2137 = vadd.f32 0.0, %v2136
  %2138 = vmatmul.bf16.gmra.mxu0 %v2101
  %v2139 = vpop.f32.mrf.mxu0
  %v2140 = vadd.f32 0.0, %v2139
  %v2141 = vpop.f32.mrf.mxu0
  %v2142 = vadd.f32 0.0, %v2141
  %2143 = vdwg.mxu0
  %v2144 = vunpack.c.l.b16 %v1887
  %v2145 = vunpack.c.l.b16 %v1889
  %v2146 = vunpack.c.l.b16 %v1891
  %v2147 = vunpack.c.l.b16 %v1893
  %v2148 = vunpack.c.l.b16 %v1895
  %v2149 = vunpack.c.l.b16 %v1897
  %v2150 = vunpack.c.l.b16 %v1899
  %v2151 = vunpack.c.l.b16 %v1901
  %v2152 = vpack.c.b16 %v2145, %v2144
  %v2153 = vpack.c.b16 %v2147, %v2146
  %v2154 = vpack.c.b16 %v2149, %v2148
  %v2155 = vpack.c.b16 %v2151, %v2150
  %v2156 = vunpack.c.l.b16 %v1943
  %v2157 = vunpack.c.l.b16 %v1945
  %v2158 = vunpack.c.l.b16 %v1947
  %v2159 = vunpack.c.l.b16 %v1949
  %v2160 = vunpack.c.l.b16 %v1951
  %v2161 = vunpack.c.l.b16 %v1953
  %v2162 = vunpack.c.l.b16 %v1955
  %v2163 = vunpack.c.l.b16 %v1957
  %v2164 = vpack.c.b16 %v2157, %v2156
  %v2165 = vpack.c.b16 %v2159, %v2158
  %v2166 = vpack.c.b16 %v2161, %v2160
  %v2167 = vpack.c.b16 %v2163, %v2162
  %2168 = vrot.lane.b32.xlu0 %v2164, 96
  %v2169 = vpop.permute.xlu0 %2168
  %2170 = vrot.lane.b32.xlu0 %v2165, 96
  %v2171 = vpop.permute.xlu0 %2170
  %2172 = vrot.lane.b32.xlu0 %v2166, 96
  %v2173 = vpop.permute.xlu0 %2172
  %2174 = vrot.lane.b32.xlu0 %v2167, 96
  %v2175 = vpop.permute.xlu0 %2174
  %v2177 = vsel %vm754, %v2152, 0
  %v2180 = vsel %vm754, %v2153, 0
  %v2183 = vsel %vm754, %v2154, 0
  %v2186 = vsel %vm754, %v2155, 0
  %v2189 = vsel %vm754, %v2169, 0
  %v2192 = vsel %vm754, %v2171, 0
  %v2195 = vsel %vm754, %v2173, 0
  %v2198 = vsel %vm754, %v2175, 0
  %2200 = vmatpush.bf16.xpose.msra.mxu0 0
  %2201 = vmatpush.bf16.xpose.msra.mxu0 0
  %2202 = vmatpush.bf16.xpose.msra.mxu0 0
  %2203 = vmatpush.bf16.xpose.msra.mxu0 0
  %2204 = vmatpush.bf16.xpose.msra.mxu0 %v2198
  %2205 = vmatpush.bf16.xpose.msra.mxu0 %v2195
  %2206 = vmatpush.bf16.xpose.msra.mxu0 %v2192
  %2207 = vmatpush.bf16.xpose.msra.mxu0 %v2189
  %2208 = vmatmul.bf16.gmra.mxu0 %v2177
  %v2209 = vpop.f32.mrf.mxu0
  %v2210 = vadd.f32 0.0, %v2209
  %v2211 = vpop.f32.mrf.mxu0
  %v2212 = vadd.f32 0.0, %v2211
  %2213 = vmatmul.bf16.gmra.mxu0 %v2180
  %v2214 = vpop.f32.mrf.mxu0
  %v2215 = vadd.f32 0.0, %v2214
  %v2216 = vpop.f32.mrf.mxu0
  %v2217 = vadd.f32 0.0, %v2216
  %2218 = vmatmul.bf16.gmra.mxu0 %v2183
  %v2219 = vpop.f32.mrf.mxu0
  %v2220 = vadd.f32 0.0, %v2219
  %v2221 = vpop.f32.mrf.mxu0
  %v2222 = vadd.f32 0.0, %v2221
  %2223 = vmatmul.bf16.gmra.mxu0 %v2186
  %v2224 = vpop.f32.mrf.mxu0
  %v2225 = vadd.f32 0.0, %v2224
  %v2226 = vpop.f32.mrf.mxu0
  %v2227 = vadd.f32 0.0, %v2226
  %2228 = vdwg.mxu0
  %v2229 = vunpack.c.l.b16 %v1903
  %v2230 = vunpack.c.l.b16 %v1905
  %v2231 = vunpack.c.l.b16 %v1907
  %v2232 = vunpack.c.l.b16 %v1909
  %v2233 = vunpack.c.l.b16 %v1911
  %v2234 = vunpack.c.l.b16 %v1913
  %v2235 = vunpack.c.l.b16 %v1915
  %v2236 = vunpack.c.l.b16 %v1917
  %v2237 = vpack.c.b16 %v2230, %v2229
  %v2238 = vpack.c.b16 %v2232, %v2231
  %v2239 = vpack.c.b16 %v2234, %v2233
  %v2240 = vpack.c.b16 %v2236, %v2235
  %v2241 = vunpack.c.l.b16 %v1959
  %v2242 = vunpack.c.l.b16 %v1961
  %v2243 = vunpack.c.l.b16 %v1963
  %v2244 = vunpack.c.l.b16 %v1965
  %v2245 = vunpack.c.l.b16 %v1967
  %v2246 = vunpack.c.l.b16 %v1969
  %v2247 = vunpack.c.l.b16 %v1971
  %v2248 = vunpack.c.l.b16 %v1973
  %v2249 = vpack.c.b16 %v2242, %v2241
  %v2250 = vpack.c.b16 %v2244, %v2243
  %v2251 = vpack.c.b16 %v2246, %v2245
  %v2252 = vpack.c.b16 %v2248, %v2247
  %2253 = vrot.lane.b32.xlu0 %v2249, 96
  %v2254 = vpop.permute.xlu0 %2253
  %2255 = vrot.lane.b32.xlu0 %v2250, 96
  %v2256 = vpop.permute.xlu0 %2255
  %2257 = vrot.lane.b32.xlu0 %v2251, 96
  %v2258 = vpop.permute.xlu0 %2257
  %2259 = vrot.lane.b32.xlu0 %v2252, 96
  %v2260 = vpop.permute.xlu0 %2259
  %v2262 = vsel %vm754, %v2237, 0
  %v2265 = vsel %vm754, %v2238, 0
  %v2268 = vsel %vm754, %v2239, 0
  %v2271 = vsel %vm754, %v2240, 0
  %v2274 = vsel %vm754, %v2254, 0
  %v2277 = vsel %vm754, %v2256, 0
  %v2280 = vsel %vm754, %v2258, 0
  %v2283 = vsel %vm754, %v2260, 0
  %2285 = vmatpush.bf16.xpose.msra.mxu0 0
  %2286 = vmatpush.bf16.xpose.msra.mxu0 0
  %2287 = vmatpush.bf16.xpose.msra.mxu0 0
  %2288 = vmatpush.bf16.xpose.msra.mxu0 0
  %2289 = vmatpush.bf16.xpose.msra.mxu0 %v2283
  %2290 = vmatpush.bf16.xpose.msra.mxu0 %v2280
  %2291 = vmatpush.bf16.xpose.msra.mxu0 %v2277
  %2292 = vmatpush.bf16.xpose.msra.mxu0 %v2274
  %2293 = vmatmul.bf16.gmra.mxu0 %v2262
  %v2294 = vpop.f32.mrf.mxu0
  %v2295 = vadd.f32 0.0, %v2294
  %v2296 = vpop.f32.mrf.mxu0
  %v2297 = vadd.f32 0.0, %v2296
  %2298 = vmatmul.bf16.gmra.mxu0 %v2265
  %v2299 = vpop.f32.mrf.mxu0
  %v2300 = vadd.f32 0.0, %v2299
  %v2301 = vpop.f32.mrf.mxu0
  %v2302 = vadd.f32 0.0, %v2301
  %2303 = vmatmul.bf16.gmra.mxu0 %v2268
  %v2304 = vpop.f32.mrf.mxu0
  %v2305 = vadd.f32 0.0, %v2304
  %v2306 = vpop.f32.mrf.mxu0
  %v2307 = vadd.f32 0.0, %v2306
  %2308 = vmatmul.bf16.gmra.mxu0 %v2271
  %v2309 = vpop.f32.mrf.mxu0
  %v2310 = vadd.f32 0.0, %v2309
  %v2311 = vpop.f32.mrf.mxu0
  %v2312 = vadd.f32 0.0, %v2311
  %2313 = vdwg.mxu0
  %v2314 = vsel %vm1063, %v2040, -inf
  %2315 = vmax.xlane.f32.xlu0 %v2314
  %v2316 = vpop.xlane.xlu0 %2315
  %v2317 = vsel %vm1063, %v2042, -inf
  %2318 = vmax.xlane.f32.xlu0 %v2317
  %v2319 = vpop.xlane.xlu0 %2318
  %v2320 = vsel %vm1063, %v2045, -inf
  %2321 = vmax.xlane.f32.xlu0 %v2320
  %v2322 = vpop.xlane.xlu0 %2321
  %v2323 = vsel %vm1063, %v2047, -inf
  %2324 = vmax.xlane.f32.xlu0 %v2323
  %v2325 = vpop.xlane.xlu0 %2324
  %v2326 = vsel %vm1063, %v2050, -inf
  %2327 = vmax.xlane.f32.xlu0 %v2326
  %v2328 = vpop.xlane.xlu0 %2327
  %v2329 = vsel %vm1063, %v2052, -inf
  %2330 = vmax.xlane.f32.xlu0 %v2329
  %v2331 = vpop.xlane.xlu0 %2330
  %v2332 = vsel %vm1063, %v2055, -inf
  %2333 = vmax.xlane.f32.xlu0 %v2332
  %v2334 = vpop.xlane.xlu0 %2333
  %v2335 = vsel %vm1063, %v2057, -inf
  %2336 = vmax.xlane.f32.xlu0 %v2335
  %v2337 = vpop.xlane.xlu0 %2336
  %v2338 = vsel %vm1063, %v2125, -inf
  %2339 = vmax.xlane.f32.xlu0 %v2338
  %v2340 = vpop.xlane.xlu0 %2339
  %v2341 = vsel %vm1063, %v2127, -inf
  %2342 = vmax.xlane.f32.xlu0 %v2341
  %v2343 = vpop.xlane.xlu0 %2342
  %v2344 = vsel %vm1063, %v2130, -inf
  %2345 = vmax.xlane.f32.xlu0 %v2344
  %v2346 = vpop.xlane.xlu0 %2345
  %v2347 = vsel %vm1063, %v2132, -inf
  %2348 = vmax.xlane.f32.xlu0 %v2347
  %v2349 = vpop.xlane.xlu0 %2348
  %v2350 = vsel %vm1063, %v2135, -inf
  %2351 = vmax.xlane.f32.xlu0 %v2350
  %v2352 = vpop.xlane.xlu0 %2351
  %v2353 = vsel %vm1063, %v2137, -inf
  %2354 = vmax.xlane.f32.xlu0 %v2353
  %v2355 = vpop.xlane.xlu0 %2354
  %v2356 = vsel %vm1063, %v2140, -inf
  %2357 = vmax.xlane.f32.xlu0 %v2356
  %v2358 = vpop.xlane.xlu0 %2357
  %v2359 = vsel %vm1063, %v2142, -inf
  %2360 = vmax.xlane.f32.xlu0 %v2359
  %v2361 = vpop.xlane.xlu0 %2360
  %v2362 = vsel %vm1063, %v2210, -inf
  %2363 = vmax.xlane.f32.xlu0 %v2362
  %v2364 = vpop.xlane.xlu0 %2363
  %v2365 = vsel %vm1063, %v2212, -inf
  %2366 = vmax.xlane.f32.xlu0 %v2365
  %v2367 = vpop.xlane.xlu0 %2366
  %v2368 = vsel %vm1063, %v2215, -inf
  %2369 = vmax.xlane.f32.xlu0 %v2368
  %v2370 = vpop.xlane.xlu0 %2369
  %v2371 = vsel %vm1063, %v2217, -inf
  %2372 = vmax.xlane.f32.xlu0 %v2371
  %v2373 = vpop.xlane.xlu0 %2372
  %v2374 = vsel %vm1063, %v2220, -inf
  %2375 = vmax.xlane.f32.xlu0 %v2374
  %v2376 = vpop.xlane.xlu0 %2375
  %v2377 = vsel %vm1063, %v2222, -inf
  %2378 = vmax.xlane.f32.xlu0 %v2377
  %v2379 = vpop.xlane.xlu0 %2378
  %v2380 = vsel %vm1063, %v2225, -inf
  %2381 = vmax.xlane.f32.xlu0 %v2380
  %v2382 = vpop.xlane.xlu0 %2381
  %v2383 = vsel %vm1063, %v2227, -inf
  %2384 = vmax.xlane.f32.xlu0 %v2383
  %v2385 = vpop.xlane.xlu0 %2384
  %v2386 = vsel %vm1063, %v2295, -inf
  %2387 = vmax.xlane.f32.xlu0 %v2386
  %v2388 = vpop.xlane.xlu0 %2387
  %v2389 = vsel %vm1063, %v2297, -inf
  %2390 = vmax.xlane.f32.xlu0 %v2389
  %v2391 = vpop.xlane.xlu0 %2390
  %v2392 = vsel %vm1063, %v2300, -inf
  %2393 = vmax.xlane.f32.xlu0 %v2392
  %v2394 = vpop.xlane.xlu0 %2393
  %v2395 = vsel %vm1063, %v2302, -inf
  %2396 = vmax.xlane.f32.xlu0 %v2395
  %v2397 = vpop.xlane.xlu0 %2396
  %v2398 = vsel %vm1063, %v2305, -inf
  %2399 = vmax.xlane.f32.xlu0 %v2398
  %v2400 = vpop.xlane.xlu0 %2399
  %v2401 = vsel %vm1063, %v2307, -inf
  %2402 = vmax.xlane.f32.xlu0 %v2401
  %v2403 = vpop.xlane.xlu0 %2402
  %v2404 = vsel %vm1063, %v2310, -inf
  %2405 = vmax.xlane.f32.xlu0 %v2404
  %v2406 = vpop.xlane.xlu0 %2405
  %v2407 = vsel %vm1063, %v2312, -inf
  %2408 = vmax.xlane.f32.xlu0 %v2407
  %v2409 = vpop.xlane.xlu0 %2408
  %v2410 = vsub.f32 %v2040, %v2316
  %v2411 = vsub.f32 %v2042, %v2319
  %v2412 = vsub.f32 %v2045, %v2322
  %v2413 = vsub.f32 %v2047, %v2325
  %v2414 = vsub.f32 %v2050, %v2328
  %v2415 = vsub.f32 %v2052, %v2331
  %v2416 = vsub.f32 %v2055, %v2334
  %v2417 = vsub.f32 %v2057, %v2337
  %v2418 = vsub.f32 %v2125, %v2340
  %v2419 = vsub.f32 %v2127, %v2343
  %v2420 = vsub.f32 %v2130, %v2346
  %v2421 = vsub.f32 %v2132, %v2349
  %v2422 = vsub.f32 %v2135, %v2352
  %v2423 = vsub.f32 %v2137, %v2355
  %v2424 = vsub.f32 %v2140, %v2358
  %v2425 = vsub.f32 %v2142, %v2361
  %v2426 = vsub.f32 %v2210, %v2364
  %v2427 = vsub.f32 %v2212, %v2367
  %v2428 = vsub.f32 %v2215, %v2370
  %v2429 = vsub.f32 %v2217, %v2373
  %v2430 = vsub.f32 %v2220, %v2376
  %v2431 = vsub.f32 %v2222, %v2379
  %v2432 = vsub.f32 %v2225, %v2382
  %v2433 = vsub.f32 %v2227, %v2385
  %v2434 = vsub.f32 %v2295, %v2388
  %v2435 = vsub.f32 %v2297, %v2391
  %v2436 = vsub.f32 %v2300, %v2394
  %v2437 = vsub.f32 %v2302, %v2397
  %v2438 = vsub.f32 %v2305, %v2400
  %v2439 = vsub.f32 %v2307, %v2403
  %v2440 = vsub.f32 %v2310, %v2406
  %v2441 = vsub.f32 %v2312, %v2409
  %v2442 = vmul.f32 %v2410, 1.442695
  %v2443 = vpow.pop %v2442
  %v2444 = vmul.f32 %v2411, 1.442695
  %v2445 = vpow.pop %v2444
  %v2446 = vmul.f32 %v2412, 1.442695
  %v2447 = vpow.pop %v2446
  %v2448 = vmul.f32 %v2413, 1.442695
  %v2449 = vpow.pop %v2448
  %v2450 = vmul.f32 %v2414, 1.442695
  %v2451 = vpow.pop %v2450
  %v2452 = vmul.f32 %v2415, 1.442695
  %v2453 = vpow.pop %v2452
  %v2454 = vmul.f32 %v2416, 1.442695
  %v2455 = vpow.pop %v2454
  %v2456 = vmul.f32 %v2417, 1.442695
  %v2457 = vpow.pop %v2456
  %v2458 = vmul.f32 %v2418, 1.442695
  %v2459 = vpow.pop %v2458
  %v2460 = vmul.f32 %v2419, 1.442695
  %v2461 = vpow.pop %v2460
  %v2462 = vmul.f32 %v2420, 1.442695
  %v2463 = vpow.pop %v2462
  %v2464 = vmul.f32 %v2421, 1.442695
  %v2465 = vpow.pop %v2464
  %v2466 = vmul.f32 %v2422, 1.442695
  %v2467 = vpow.pop %v2466
  %v2468 = vmul.f32 %v2423, 1.442695
  %v2469 = vpow.pop %v2468
  %v2470 = vmul.f32 %v2424, 1.442695
  %v2471 = vpow.pop %v2470
  %v2472 = vmul.f32 %v2425, 1.442695
  %v2473 = vpow.pop %v2472
  %v2474 = vmul.f32 %v2426, 1.442695
  %v2475 = vpow.pop %v2474
  %v2476 = vmul.f32 %v2427, 1.442695
  %v2477 = vpow.pop %v2476
  %v2478 = vmul.f32 %v2428, 1.442695
  %v2479 = vpow.pop %v2478
  %v2480 = vmul.f32 %v2429, 1.442695
  %v2481 = vpow.pop %v2480
  %v2482 = vmul.f32 %v2430, 1.442695
  %v2483 = vpow.pop %v2482
  %v2484 = vmul.f32 %v2431, 1.442695
  %v2485 = vpow.pop %v2484
  %v2486 = vmul.f32 %v2432, 1.442695
  %v2487 = vpow.pop %v2486
  %v2488 = vmul.f32 %v2433, 1.442695
  %v2489 = vpow.pop %v2488
  %v2490 = vmul.f32 %v2434, 1.442695
  %v2491 = vpow.pop %v2490
  %v2492 = vmul.f32 %v2435, 1.442695
  %v2493 = vpow.pop %v2492
  %v2494 = vmul.f32 %v2436, 1.442695
  %v2495 = vpow.pop %v2494
  %v2496 = vmul.f32 %v2437, 1.442695
  %v2497 = vpow.pop %v2496
  %v2498 = vmul.f32 %v2438, 1.442695
  %v2499 = vpow.pop %v2498
  %v2500 = vmul.f32 %v2439, 1.442695
  %v2501 = vpow.pop %v2500
  %v2502 = vmul.f32 %v2440, 1.442695
  %v2503 = vpow.pop %v2502
  %v2504 = vmul.f32 %v2441, 1.442695
  %v2505 = vpow.pop %v2504
  %v2506 = vsel %vm1063, %v2443, 0.0
  %2507 = vadd.xlane.f32.xlu0 %v2506
  %v2508 = vpop.xlane.xlu0 %2507
  %v2509 = vsel %vm1063, %v2445, 0.0
  %2510 = vadd.xlane.f32.xlu0 %v2509
  %v2511 = vpop.xlane.xlu0 %2510
  %v2512 = vsel %vm1063, %v2447, 0.0
  %2513 = vadd.xlane.f32.xlu0 %v2512
  %v2514 = vpop.xlane.xlu0 %2513
  %v2515 = vsel %vm1063, %v2449, 0.0
  %2516 = vadd.xlane.f32.xlu0 %v2515
  %v2517 = vpop.xlane.xlu0 %2516
  %v2518 = vsel %vm1063, %v2451, 0.0
  %2519 = vadd.xlane.f32.xlu0 %v2518
  %v2520 = vpop.xlane.xlu0 %2519
  %v2521 = vsel %vm1063, %v2453, 0.0
  %2522 = vadd.xlane.f32.xlu0 %v2521
  %v2523 = vpop.xlane.xlu0 %2522
  %v2524 = vsel %vm1063, %v2455, 0.0
  %2525 = vadd.xlane.f32.xlu0 %v2524
  %v2526 = vpop.xlane.xlu0 %2525
  %v2527 = vsel %vm1063, %v2457, 0.0
  %2528 = vadd.xlane.f32.xlu0 %v2527
  %v2529 = vpop.xlane.xlu0 %2528
  %v2530 = vsel %vm1063, %v2459, 0.0
  %2531 = vadd.xlane.f32.xlu0 %v2530
  %v2532 = vpop.xlane.xlu0 %2531
  %v2533 = vsel %vm1063, %v2461, 0.0
  %2534 = vadd.xlane.f32.xlu0 %v2533
  %v2535 = vpop.xlane.xlu0 %2534
  %v2536 = vsel %vm1063, %v2463, 0.0
  %2537 = vadd.xlane.f32.xlu0 %v2536
  %v2538 = vpop.xlane.xlu0 %2537
  %v2539 = vsel %vm1063, %v2465, 0.0
  %2540 = vadd.xlane.f32.xlu0 %v2539
  %v2541 = vpop.xlane.xlu0 %2540
  %v2542 = vsel %vm1063, %v2467, 0.0
  %2543 = vadd.xlane.f32.xlu0 %v2542
  %v2544 = vpop.xlane.xlu0 %2543
  %v2545 = vsel %vm1063, %v2469, 0.0
  %2546 = vadd.xlane.f32.xlu0 %v2545
  %v2547 = vpop.xlane.xlu0 %2546
  %v2548 = vsel %vm1063, %v2471, 0.0
  %2549 = vadd.xlane.f32.xlu0 %v2548
  %v2550 = vpop.xlane.xlu0 %2549
  %v2551 = vsel %vm1063, %v2473, 0.0
  %2552 = vadd.xlane.f32.xlu0 %v2551
  %v2553 = vpop.xlane.xlu0 %2552
  %v2554 = vsel %vm1063, %v2475, 0.0
  %2555 = vadd.xlane.f32.xlu0 %v2554
  %v2556 = vpop.xlane.xlu0 %2555
  %v2557 = vsel %vm1063, %v2477, 0.0
  %2558 = vadd.xlane.f32.xlu0 %v2557
  %v2559 = vpop.xlane.xlu0 %2558
  %v2560 = vsel %vm1063, %v2479, 0.0
  %2561 = vadd.xlane.f32.xlu0 %v2560
  %v2562 = vpop.xlane.xlu0 %2561
  %v2563 = vsel %vm1063, %v2481, 0.0
  %2564 = vadd.xlane.f32.xlu0 %v2563
  %v2565 = vpop.xlane.xlu0 %2564
  %v2566 = vsel %vm1063, %v2483, 0.0
  %2567 = vadd.xlane.f32.xlu0 %v2566
  %v2568 = vpop.xlane.xlu0 %2567
  %v2569 = vsel %vm1063, %v2485, 0.0
  %2570 = vadd.xlane.f32.xlu0 %v2569
  %v2571 = vpop.xlane.xlu0 %2570
  %v2572 = vsel %vm1063, %v2487, 0.0
  %2573 = vadd.xlane.f32.xlu0 %v2572
  %v2574 = vpop.xlane.xlu0 %2573
  %v2575 = vsel %vm1063, %v2489, 0.0
  %2576 = vadd.xlane.f32.xlu0 %v2575
  %v2577 = vpop.xlane.xlu0 %2576
  %v2578 = vsel %vm1063, %v2491, 0.0
  %2579 = vadd.xlane.f32.xlu0 %v2578
  %v2580 = vpop.xlane.xlu0 %2579
  %v2581 = vsel %vm1063, %v2493, 0.0
  %2582 = vadd.xlane.f32.xlu0 %v2581
  %v2583 = vpop.xlane.xlu0 %2582
  %v2584 = vsel %vm1063, %v2495, 0.0
  %2585 = vadd.xlane.f32.xlu0 %v2584
  %v2586 = vpop.xlane.xlu0 %2585
  %v2587 = vsel %vm1063, %v2497, 0.0
  %2588 = vadd.xlane.f32.xlu0 %v2587
  %v2589 = vpop.xlane.xlu0 %2588
  %v2590 = vsel %vm1063, %v2499, 0.0
  %2591 = vadd.xlane.f32.xlu0 %v2590
  %v2592 = vpop.xlane.xlu0 %2591
  %v2593 = vsel %vm1063, %v2501, 0.0
  %2594 = vadd.xlane.f32.xlu0 %v2593
  %v2595 = vpop.xlane.xlu0 %2594
  %v2596 = vsel %vm1063, %v2503, 0.0
  %2597 = vadd.xlane.f32.xlu0 %v2596
  %v2598 = vpop.xlane.xlu0 %2597
  %v2599 = vsel %vm1063, %v2505, 0.0
  %2600 = vadd.xlane.f32.xlu0 %v2599
  %v2601 = vpop.xlane.xlu0 %2600
  %v2602 = vrcp.pop %v2508
  %v2603 = vrcp.pop %v2511
  %v2604 = vrcp.pop %v2514
  %v2605 = vrcp.pop %v2517
  %v2606 = vrcp.pop %v2520
  %v2607 = vrcp.pop %v2523
  %v2608 = vrcp.pop %v2526
  %v2609 = vrcp.pop %v2529
  %v2610 = vrcp.pop %v2532
  %v2611 = vrcp.pop %v2535
  %v2612 = vrcp.pop %v2538
  %v2613 = vrcp.pop %v2541
  %v2614 = vrcp.pop %v2544
  %v2615 = vrcp.pop %v2547
  %v2616 = vrcp.pop %v2550
  %v2617 = vrcp.pop %v2553
  %v2618 = vrcp.pop %v2556
  %v2619 = vrcp.pop %v2559
  %v2620 = vrcp.pop %v2562
  %v2621 = vrcp.pop %v2565
  %v2622 = vrcp.pop %v2568
  %v2623 = vrcp.pop %v2571
  %v2624 = vrcp.pop %v2574
  %v2625 = vrcp.pop %v2577
  %v2626 = vrcp.pop %v2580
  %v2627 = vrcp.pop %v2583
  %v2628 = vrcp.pop %v2586
  %v2629 = vrcp.pop %v2589
  %v2630 = vrcp.pop %v2592
  %v2631 = vrcp.pop %v2595
  %v2632 = vrcp.pop %v2598
  %v2633 = vrcp.pop %v2601
  %v2634 = vmul.f32 %v2443, %v2602
  %v2635 = vmul.f32 %v2445, %v2603
  %v2636 = vmul.f32 %v2447, %v2604
  %v2637 = vmul.f32 %v2449, %v2605
  %v2638 = vmul.f32 %v2451, %v2606
  %v2639 = vmul.f32 %v2453, %v2607
  %v2640 = vmul.f32 %v2455, %v2608
  %v2641 = vmul.f32 %v2457, %v2609
  %v2642 = vmul.f32 %v2459, %v2610
  %v2643 = vmul.f32 %v2461, %v2611
  %v2644 = vmul.f32 %v2463, %v2612
  %v2645 = vmul.f32 %v2465, %v2613
  %v2646 = vmul.f32 %v2467, %v2614
  %v2647 = vmul.f32 %v2469, %v2615
  %v2648 = vmul.f32 %v2471, %v2616
  %v2649 = vmul.f32 %v2473, %v2617
  %v2650 = vmul.f32 %v2475, %v2618
  %v2651 = vmul.f32 %v2477, %v2619
  %v2652 = vmul.f32 %v2479, %v2620
  %v2653 = vmul.f32 %v2481, %v2621
  %v2654 = vmul.f32 %v2483, %v2622
  %v2655 = vmul.f32 %v2485, %v2623
  %v2656 = vmul.f32 %v2487, %v2624
  %v2657 = vmul.f32 %v2489, %v2625
  %v2658 = vmul.f32 %v2491, %v2626
  %v2659 = vmul.f32 %v2493, %v2627
  %v2660 = vmul.f32 %v2495, %v2628
  %v2661 = vmul.f32 %v2497, %v2629
  %v2662 = vmul.f32 %v2499, %v2630
  %v2663 = vmul.f32 %v2501, %v2631
  %v2664 = vmul.f32 %v2503, %v2632
  %v2665 = vmul.f32 %v2505, %v2633
  %v2666 = vpack.c.bf16 %v2634, %v2634
  %v2667 = vpack.c.bf16 %v2635, %v2635
  %v2668 = vpack.c.bf16 %v2636, %v2636
  %v2669 = vpack.c.bf16 %v2637, %v2637
  %v2670 = vpack.c.bf16 %v2638, %v2638
  %v2671 = vpack.c.bf16 %v2639, %v2639
  %v2672 = vpack.c.bf16 %v2640, %v2640
  %v2673 = vpack.c.bf16 %v2641, %v2641
  %v2674 = vpack.c.bf16 %v2642, %v2642
  %v2675 = vpack.c.bf16 %v2643, %v2643
  %v2676 = vpack.c.bf16 %v2644, %v2644
  %v2677 = vpack.c.bf16 %v2645, %v2645
  %v2678 = vpack.c.bf16 %v2646, %v2646
  %v2679 = vpack.c.bf16 %v2647, %v2647
  %v2680 = vpack.c.bf16 %v2648, %v2648
  %v2681 = vpack.c.bf16 %v2649, %v2649
  %v2682 = vpack.c.bf16 %v2650, %v2650
  %v2683 = vpack.c.bf16 %v2651, %v2651
  %v2684 = vpack.c.bf16 %v2652, %v2652
  %v2685 = vpack.c.bf16 %v2653, %v2653
  %v2686 = vpack.c.bf16 %v2654, %v2654
  %v2687 = vpack.c.bf16 %v2655, %v2655
  %v2688 = vpack.c.bf16 %v2656, %v2656
  %v2689 = vpack.c.bf16 %v2657, %v2657
  %v2690 = vpack.c.bf16 %v2658, %v2658
  %v2691 = vpack.c.bf16 %v2659, %v2659
  %v2692 = vpack.c.bf16 %v2660, %v2660
  %v2693 = vpack.c.bf16 %v2661, %v2661
  %v2694 = vpack.c.bf16 %v2662, %v2662
  %v2695 = vpack.c.bf16 %v2663, %v2663
  %v2696 = vpack.c.bf16 %v2664, %v2664
  %v2697 = vpack.c.bf16 %v2665, %v2665
  %v2706 = vunpack.c.l.b16 %v2666
  %v2707 = vunpack.c.l.b16 %v2667
  %v2708 = vunpack.c.l.b16 %v2668
  %v2709 = vunpack.c.l.b16 %v2669
  %v2710 = vunpack.c.l.b16 %v2670
  %v2711 = vunpack.c.l.b16 %v2671
  %v2712 = vunpack.c.l.b16 %v2672
  %v2713 = vunpack.c.l.b16 %v2673
  %v2714 = vpack.c.b16 %v2707, %v2706
  %v2715 = vpack.c.b16 %v2709, %v2708
  %v2716 = vpack.c.b16 %v2711, %v2710
  %v2717 = vpack.c.b16 %v2713, %v2712
  %2718 = vrot.lane.b32.xlu0 %v1994, 64
  %v2719 = vpop.permute.xlu0 %2718
  %2720 = vrot.lane.b32.xlu0 %v1995, 64
  %v2721 = vpop.permute.xlu0 %2720
  %2722 = vrot.lane.b32.xlu0 %v1996, 64
  %v2723 = vpop.permute.xlu0 %2722
  %2724 = vrot.lane.b32.xlu0 %v1997, 64
  %v2725 = vpop.permute.xlu0 %2724
  %v2731 = vsel %vm1063, %v2714, 0
  %v2734 = vsel %vm1063, %v2715, 0
  %v2737 = vsel %vm1063, %v2716, 0
  %v2740 = vsel %vm1063, %v2717, 0
  %2742 = vmatpush.bf16.msra.mxu0 0
  %2743 = vmatpush.bf16.msra.mxu0 0
  %2744 = vmatpush.bf16.msra.mxu0 0
  %2745 = vmatpush.bf16.msra.mxu0 0
  %2746 = vmatpush.bf16.msra.mxu0 %v2725
  %2747 = vmatpush.bf16.msra.mxu0 %v2723
  %2748 = vmatpush.bf16.msra.mxu0 %v2721
  %2749 = vmatpush.bf16.msra.mxu0 %v2719
  %2750 = vmatmul.bf16.gmra.mxu0 %v2731
  %v2751 = vpop.f32.mrf.mxu0
  %v2752 = vadd.f32 0.0, %v2751
  %v2753 = vpop.f32.mrf.mxu0
  %v2754 = vadd.f32 0.0, %v2753
  %2755 = vmatmul.bf16.gmra.mxu0 %v2734
  %v2756 = vpop.f32.mrf.mxu0
  %v2757 = vadd.f32 0.0, %v2756
  %v2758 = vpop.f32.mrf.mxu0
  %v2759 = vadd.f32 0.0, %v2758
  %2760 = vmatmul.bf16.gmra.mxu0 %v2737
  %v2761 = vpop.f32.mrf.mxu0
  %v2762 = vadd.f32 0.0, %v2761
  %v2763 = vpop.f32.mrf.mxu0
  %v2764 = vadd.f32 0.0, %v2763
  %2765 = vmatmul.bf16.gmra.mxu0 %v2740
  %v2766 = vpop.f32.mrf.mxu0
  %v2767 = vadd.f32 0.0, %v2766
  %v2768 = vpop.f32.mrf.mxu0
  %v2769 = vadd.f32 0.0, %v2768
  %2770 = vdwg.mxu0
  %v2779 = vunpack.c.l.b16 %v2674
  %v2780 = vunpack.c.l.b16 %v2675
  %v2781 = vunpack.c.l.b16 %v2676
  %v2782 = vunpack.c.l.b16 %v2677
  %v2783 = vunpack.c.l.b16 %v2678
  %v2784 = vunpack.c.l.b16 %v2679
  %v2785 = vunpack.c.l.b16 %v2680
  %v2786 = vunpack.c.l.b16 %v2681
  %v2787 = vpack.c.b16 %v2780, %v2779
  %v2788 = vpack.c.b16 %v2782, %v2781
  %v2789 = vpack.c.b16 %v2784, %v2783
  %v2790 = vpack.c.b16 %v2786, %v2785
  %2791 = vrot.lane.b32.xlu0 %v2079, 64
  %v2792 = vpop.permute.xlu0 %2791
  %2793 = vrot.lane.b32.xlu0 %v2080, 64
  %v2794 = vpop.permute.xlu0 %2793
  %2795 = vrot.lane.b32.xlu0 %v2081, 64
  %v2796 = vpop.permute.xlu0 %2795
  %2797 = vrot.lane.b32.xlu0 %v2082, 64
  %v2798 = vpop.permute.xlu0 %2797
  %v2804 = vsel %vm1063, %v2787, 0
  %v2807 = vsel %vm1063, %v2788, 0
  %v2810 = vsel %vm1063, %v2789, 0
  %v2813 = vsel %vm1063, %v2790, 0
  %2815 = vmatpush.bf16.msra.mxu0 0
  %2816 = vmatpush.bf16.msra.mxu0 0
  %2817 = vmatpush.bf16.msra.mxu0 0
  %2818 = vmatpush.bf16.msra.mxu0 0
  %2819 = vmatpush.bf16.msra.mxu0 %v2798
  %2820 = vmatpush.bf16.msra.mxu0 %v2796
  %2821 = vmatpush.bf16.msra.mxu0 %v2794
  %2822 = vmatpush.bf16.msra.mxu0 %v2792
  %2823 = vmatmul.bf16.gmra.mxu0 %v2804
  %v2824 = vpop.f32.mrf.mxu0
  %v2825 = vadd.f32 0.0, %v2824
  %v2826 = vpop.f32.mrf.mxu0
  %v2827 = vadd.f32 0.0, %v2826
  %2828 = vmatmul.bf16.gmra.mxu0 %v2807
  %v2829 = vpop.f32.mrf.mxu0
  %v2830 = vadd.f32 0.0, %v2829
  %v2831 = vpop.f32.mrf.mxu0
  %v2832 = vadd.f32 0.0, %v2831
  %2833 = vmatmul.bf16.gmra.mxu0 %v2810
  %v2834 = vpop.f32.mrf.mxu0
  %v2835 = vadd.f32 0.0, %v2834
  %v2836 = vpop.f32.mrf.mxu0
  %v2837 = vadd.f32 0.0, %v2836
  %2838 = vmatmul.bf16.gmra.mxu0 %v2813
  %v2839 = vpop.f32.mrf.mxu0
  %v2840 = vadd.f32 0.0, %v2839
  %v2841 = vpop.f32.mrf.mxu0
  %v2842 = vadd.f32 0.0, %v2841
  %2843 = vdwg.mxu0
  %v2852 = vunpack.c.l.b16 %v2682
  %v2853 = vunpack.c.l.b16 %v2683
  %v2854 = vunpack.c.l.b16 %v2684
  %v2855 = vunpack.c.l.b16 %v2685
  %v2856 = vunpack.c.l.b16 %v2686
  %v2857 = vunpack.c.l.b16 %v2687
  %v2858 = vunpack.c.l.b16 %v2688
  %v2859 = vunpack.c.l.b16 %v2689
  %v2860 = vpack.c.b16 %v2853, %v2852
  %v2861 = vpack.c.b16 %v2855, %v2854
  %v2862 = vpack.c.b16 %v2857, %v2856
  %v2863 = vpack.c.b16 %v2859, %v2858
  %2864 = vrot.lane.b32.xlu0 %v2164, 64
  %v2865 = vpop.permute.xlu0 %2864
  %2866 = vrot.lane.b32.xlu0 %v2165, 64
  %v2867 = vpop.permute.xlu0 %2866
  %2868 = vrot.lane.b32.xlu0 %v2166, 64
  %v2869 = vpop.permute.xlu0 %2868
  %2870 = vrot.lane.b32.xlu0 %v2167, 64
  %v2871 = vpop.permute.xlu0 %2870
  %v2877 = vsel %vm1063, %v2860, 0
  %v2880 = vsel %vm1063, %v2861, 0
  %v2883 = vsel %vm1063, %v2862, 0
  %v2886 = vsel %vm1063, %v2863, 0
  %2888 = vmatpush.bf16.msra.mxu0 0
  %2889 = vmatpush.bf16.msra.mxu0 0
  %2890 = vmatpush.bf16.msra.mxu0 0
  %2891 = vmatpush.bf16.msra.mxu0 0
  %2892 = vmatpush.bf16.msra.mxu0 %v2871
  %2893 = vmatpush.bf16.msra.mxu0 %v2869
  %2894 = vmatpush.bf16.msra.mxu0 %v2867
  %2895 = vmatpush.bf16.msra.mxu0 %v2865
  %2896 = vmatmul.bf16.gmra.mxu0 %v2877
  %v2897 = vpop.f32.mrf.mxu0
  %v2898 = vadd.f32 0.0, %v2897
  %v2899 = vpop.f32.mrf.mxu0
  %v2900 = vadd.f32 0.0, %v2899
  %2901 = vmatmul.bf16.gmra.mxu0 %v2880
  %v2902 = vpop.f32.mrf.mxu0
  %v2903 = vadd.f32 0.0, %v2902
  %v2904 = vpop.f32.mrf.mxu0
  %v2905 = vadd.f32 0.0, %v2904
  %2906 = vmatmul.bf16.gmra.mxu0 %v2883
  %v2907 = vpop.f32.mrf.mxu0
  %v2908 = vadd.f32 0.0, %v2907
  %v2909 = vpop.f32.mrf.mxu0
  %v2910 = vadd.f32 0.0, %v2909
  %2911 = vmatmul.bf16.gmra.mxu0 %v2886
  %v2912 = vpop.f32.mrf.mxu0
  %v2913 = vadd.f32 0.0, %v2912
  %v2914 = vpop.f32.mrf.mxu0
  %v2915 = vadd.f32 0.0, %v2914
  %2916 = vdwg.mxu0
  %v2925 = vunpack.c.l.b16 %v2690
  %v2926 = vunpack.c.l.b16 %v2691
  %v2927 = vunpack.c.l.b16 %v2692
  %v2928 = vunpack.c.l.b16 %v2693
  %v2929 = vunpack.c.l.b16 %v2694
  %v2930 = vunpack.c.l.b16 %v2695
  %v2931 = vunpack.c.l.b16 %v2696
  %v2932 = vunpack.c.l.b16 %v2697
  %v2933 = vpack.c.b16 %v2926, %v2925
  %v2934 = vpack.c.b16 %v2928, %v2927
  %v2935 = vpack.c.b16 %v2930, %v2929
  %v2936 = vpack.c.b16 %v2932, %v2931
  %2937 = vrot.lane.b32.xlu0 %v2249, 64
  %v2938 = vpop.permute.xlu0 %2937
  %2939 = vrot.lane.b32.xlu0 %v2250, 64
  %v2940 = vpop.permute.xlu0 %2939
  %2941 = vrot.lane.b32.xlu0 %v2251, 64
  %v2942 = vpop.permute.xlu0 %2941
  %2943 = vrot.lane.b32.xlu0 %v2252, 64
  %v2944 = vpop.permute.xlu0 %2943
  %v2950 = vsel %vm1063, %v2933, 0
  %v2953 = vsel %vm1063, %v2934, 0
  %v2956 = vsel %vm1063, %v2935, 0
  %v2959 = vsel %vm1063, %v2936, 0
  %2961 = vmatpush.bf16.msra.mxu0 0
  %2962 = vmatpush.bf16.msra.mxu0 0
  %2963 = vmatpush.bf16.msra.mxu0 0
  %2964 = vmatpush.bf16.msra.mxu0 0
  %2965 = vmatpush.bf16.msra.mxu0 %v2944
  %2966 = vmatpush.bf16.msra.mxu0 %v2942
  %2967 = vmatpush.bf16.msra.mxu0 %v2940
  %2968 = vmatpush.bf16.msra.mxu0 %v2938
  %2969 = vmatmul.bf16.gmra.mxu0 %v2950
  %v2970 = vpop.f32.mrf.mxu0
  %v2971 = vadd.f32 0.0, %v2970
  %v2972 = vpop.f32.mrf.mxu0
  %v2973 = vadd.f32 0.0, %v2972
  %2974 = vmatmul.bf16.gmra.mxu0 %v2953
  %v2975 = vpop.f32.mrf.mxu0
  %v2976 = vadd.f32 0.0, %v2975
  %v2977 = vpop.f32.mrf.mxu0
  %v2978 = vadd.f32 0.0, %v2977
  %2979 = vmatmul.bf16.gmra.mxu0 %v2956
  %v2980 = vpop.f32.mrf.mxu0
  %v2981 = vadd.f32 0.0, %v2980
  %v2982 = vpop.f32.mrf.mxu0
  %v2983 = vadd.f32 0.0, %v2982
  %2984 = vmatmul.bf16.gmra.mxu0 %v2959
  %v2985 = vpop.f32.mrf.mxu0
  %v2986 = vadd.f32 0.0, %v2985
  %v2987 = vpop.f32.mrf.mxu0
  %v2988 = vadd.f32 0.0, %v2987
  %2989 = vdwg.mxu0
  %2998 = vrot.lane.b32.xlu0 %v2825, 8
  %v2999 = vpop.permute.xlu0 %2998
  %3000 = vrot.lane.b32.xlu0 %v2827, 8
  %v3001 = vpop.permute.xlu0 %3000
  %3002 = vrot.lane.b32.xlu0 %v2830, 8
  %v3003 = vpop.permute.xlu0 %3002
  %3004 = vrot.lane.b32.xlu0 %v2832, 8
  %v3005 = vpop.permute.xlu0 %3004
  %3006 = vrot.lane.b32.xlu0 %v2835, 8
  %v3007 = vpop.permute.xlu0 %3006
  %3008 = vrot.lane.b32.xlu0 %v2837, 8
  %v3009 = vpop.permute.xlu0 %3008
  %3010 = vrot.lane.b32.xlu0 %v2840, 8
  %v3011 = vpop.permute.xlu0 %3010
  %3012 = vrot.lane.b32.xlu0 %v2842, 8
  %v3013 = vpop.permute.xlu0 %3012
  %3030 = vrot.lane.b32.xlu0 %v2898, 16
  %v3031 = vpop.permute.xlu0 %3030
  %3032 = vrot.lane.b32.xlu0 %v2900, 16
  %v3033 = vpop.permute.xlu0 %3032
  %3034 = vrot.lane.b32.xlu0 %v2903, 16
  %v3035 = vpop.permute.xlu0 %3034
  %3036 = vrot.lane.b32.xlu0 %v2905, 16
  %v3037 = vpop.permute.xlu0 %3036
  %3038 = vrot.lane.b32.xlu0 %v2908, 16
  %v3039 = vpop.permute.xlu0 %3038
  %3040 = vrot.lane.b32.xlu0 %v2910, 16
  %v3041 = vpop.permute.xlu0 %3040
  %3042 = vrot.lane.b32.xlu0 %v2913, 16
  %v3043 = vpop.permute.xlu0 %3042
  %3044 = vrot.lane.b32.xlu0 %v2915, 16
  %v3045 = vpop.permute.xlu0 %3044
  %3062 = vrot.lane.b32.xlu0 %v2971, 24
  %v3063 = vpop.permute.xlu0 %3062
  %3064 = vrot.lane.b32.xlu0 %v2973, 24
  %v3065 = vpop.permute.xlu0 %3064
  %3066 = vrot.lane.b32.xlu0 %v2976, 24
  %v3067 = vpop.permute.xlu0 %3066
  %3068 = vrot.lane.b32.xlu0 %v2978, 24
  %v3069 = vpop.permute.xlu0 %3068
  %3070 = vrot.lane.b32.xlu0 %v2981, 24
  %v3071 = vpop.permute.xlu0 %3070
  %3072 = vrot.lane.b32.xlu0 %v2983, 24
  %v3073 = vpop.permute.xlu0 %3072
  %3074 = vrot.lane.b32.xlu0 %v2986, 24
  %v3075 = vpop.permute.xlu0 %3074
  %3076 = vrot.lane.b32.xlu0 %v2988, 24
  %v3077 = vpop.permute.xlu0 %3076
  %v3086 = vsel %vm754, %v2752, %v2999
  %v3087 = vsel %vm754, %v2754, %v3001
  %v3088 = vsel %vm754, %v2757, %v3003
  %v3089 = vsel %vm754, %v2759, %v3005
  %v3090 = vsel %vm754, %v2762, %v3007
  %v3091 = vsel %vm754, %v2764, %v3009
  %v3092 = vsel %vm754, %v2767, %v3011
  %v3093 = vsel %vm754, %v2769, %v3013
  %v3094 = vsel %vm1844, %v3086, %v3031
  %v3095 = vsel %vm1844, %v3087, %v3033
  %v3096 = vsel %vm1844, %v3088, %v3035
  %v3097 = vsel %vm1844, %v3089, %v3037
  %v3098 = vsel %vm1844, %v3090, %v3039
  %v3099 = vsel %vm1844, %v3091, %v3041
  %v3100 = vsel %vm1844, %v3092, %v3043
  %v3101 = vsel %vm1844, %v3093, %v3045
  %v3102 = vsel %vm1853, %v3094, %v3063
  %v3103 = vsel %vm1853, %v3095, %v3065
  %v3104 = vsel %vm1853, %v3096, %v3067
  %v3105 = vsel %vm1853, %v3097, %v3069
  %v3106 = vsel %vm1853, %v3098, %v3071
  %v3107 = vsel %vm1853, %v3099, %v3073
  %v3108 = vsel %vm1853, %v3100, %v3075
  %v3109 = vsel %vm1853, %v3101, %v3077
  %v3110 = vpack.c.bf16 %v1855, %v1854
  %v3111 = vpack.c.bf16 %v1857, %v1856
  %v3112 = vpack.c.bf16 %v1859, %v1858
  %v3113 = vpack.c.bf16 %v1861, %v1860
  %v3114 = vpack.c.bf16 %v3103, %v3102
  %v3115 = vpack.c.bf16 %v3105, %v3104
  %v3116 = vpack.c.bf16 %v3107, %v3106
  %v3117 = vpack.c.bf16 %v3109, %v3108
  %v3118 = vld [vmem:[%s5] sm:$0xf]
  %v3119 = vld [vmem:[%s5 + $0x4] sm:$0xf]
  %v3120 = vld [vmem:[%s5 + $0x8] sm:$0xf]
  %v3121 = vld [vmem:[%s5 + $0xc] sm:$0xf]
  %v3122 = vld [vmem:[%s6] sm:$0x1]
  %v3124 = vperm.slane %v3122, 0
  %v3130 = vunpack.c.l.b16 %v3118
  %v3131 = vunpack.c.l.b16 %v3119
  %v3132 = vunpack.c.l.b16 %v3120
  %v3133 = vunpack.c.l.b16 %v3121
  %v3134 = vpack.c.b16 %v3131, %v3130
  %v3135 = vpack.c.b16 %v3133, %v3132
  %v3139 = vsel %vm63, %v3110, 0
  %v3142 = vsel %vm63, %v3111, 0
  %v3145 = vsel %vm63, %v3112, 0
  %v3148 = vsel %vm63, %v3113, 0
  %v3151 = vsel %vm63, %v3114, 0
  %v3154 = vsel %vm63, %v3115, 0
  %v3157 = vsel %vm63, %v3116, 0
  %v3160 = vsel %vm63, %v3117, 0
  %3162 = vmatpush.bf16.msra.mxu0 0
  %3163 = vmatpush.bf16.msra.mxu0 0
  %3164 = vmatpush.bf16.msra.mxu0 0
  %3165 = vmatpush.bf16.msra.mxu0 0
  %3166 = vmatpush.bf16.msra.mxu0 0
  %3167 = vmatpush.bf16.msra.mxu0 0
  %3168 = vmatpush.bf16.msra.mxu0 %v3135
  %3169 = vmatpush.bf16.msra.mxu0 %v3134
  %3170 = vmatmul.bf16.gmra.mxu0 %v3139
  %v3171 = vpop.f32.mrf.mxu0
  %v3172 = vadd.f32 %v3124, %v3171
  %v3173 = vpop.f32.mrf.mxu0
  %v3174 = vadd.f32 %v3124, %v3173
  %3175 = vmatmul.bf16.gmra.mxu0 %v3142
  %v3176 = vpop.f32.mrf.mxu0
  %v3177 = vadd.f32 %v3124, %v3176
  %v3178 = vpop.f32.mrf.mxu0
  %v3179 = vadd.f32 %v3124, %v3178
  %3180 = vmatmul.bf16.gmra.mxu0 %v3145
  %v3181 = vpop.f32.mrf.mxu0
  %v3182 = vadd.f32 %v3124, %v3181
  %v3183 = vpop.f32.mrf.mxu0
  %v3184 = vadd.f32 %v3124, %v3183
  %3185 = vmatmul.bf16.gmra.mxu0 %v3148
  %v3186 = vpop.f32.mrf.mxu0
  %v3187 = vadd.f32 %v3124, %v3186
  %v3188 = vpop.f32.mrf.mxu0
  %v3189 = vadd.f32 %v3124, %v3188
  %3190 = vmatmul.bf16.gmra.mxu0 %v3151
  %v3191 = vpop.f32.mrf.mxu0
  %v3192 = vadd.f32 %v3124, %v3191
  %v3193 = vpop.f32.mrf.mxu0
  %v3194 = vadd.f32 %v3124, %v3193
  %3195 = vmatmul.bf16.gmra.mxu0 %v3154
  %v3196 = vpop.f32.mrf.mxu0
  %v3197 = vadd.f32 %v3124, %v3196
  %v3198 = vpop.f32.mrf.mxu0
  %v3199 = vadd.f32 %v3124, %v3198
  %3200 = vmatmul.bf16.gmra.mxu0 %v3157
  %v3201 = vpop.f32.mrf.mxu0
  %v3202 = vadd.f32 %v3124, %v3201
  %v3203 = vpop.f32.mrf.mxu0
  %v3204 = vadd.f32 %v3124, %v3203
  %3205 = vmatmul.bf16.gmra.mxu0 %v3160
  %v3206 = vpop.f32.mrf.mxu0
  %v3207 = vadd.f32 %v3124, %v3206
  %v3208 = vpop.f32.mrf.mxu0
  %v3209 = vadd.f32 %v3124, %v3208
  %3210 = vdwg.mxu0
  %v3211 = vadd.f32 %v45, %v3172
  %v3212 = vadd.f32 %v46, %v3174
  %v3213 = vadd.f32 %v47, %v3177
  %v3214 = vadd.f32 %v48, %v3179
  %v3215 = vadd.f32 %v49, %v3182
  %v3216 = vadd.f32 %v50, %v3184
  %v3217 = vadd.f32 %v51, %v3187
  %v3218 = vadd.f32 %v52, %v3189
  %v3219 = vadd.f32 %v53, %v3192
  %v3220 = vadd.f32 %v54, %v3194
  %v3221 = vadd.f32 %v55, %v3197
  %v3222 = vadd.f32 %v56, %v3199
  %v3223 = vadd.f32 %v57, %v3202
  %v3224 = vadd.f32 %v58, %v3204
  %v3225 = vadd.f32 %v59, %v3207
  %v3226 = vadd.f32 %v60, %v3209
  %v3227 = vld [vmem:[%s7] sm:$0x1]
  %v3228 = vld [vmem:[%s8] sm:$0x1]
  %v3229 = vsel %vm63, %v3211, 0.0
  %3230 = vadd.xlane.f32.xlu0 %v3229
  %v3231 = vpop.xlane.xlu0 %3230
  %v3232 = vsel %vm63, %v3212, 0.0
  %3233 = vadd.xlane.f32.xlu0 %v3232
  %v3234 = vpop.xlane.xlu0 %3233
  %v3235 = vsel %vm63, %v3213, 0.0
  %3236 = vadd.xlane.f32.xlu0 %v3235
  %v3237 = vpop.xlane.xlu0 %3236
  %v3238 = vsel %vm63, %v3214, 0.0
  %3239 = vadd.xlane.f32.xlu0 %v3238
  %v3240 = vpop.xlane.xlu0 %3239
  %v3241 = vsel %vm63, %v3215, 0.0
  %3242 = vadd.xlane.f32.xlu0 %v3241
  %v3243 = vpop.xlane.xlu0 %3242
  %v3244 = vsel %vm63, %v3216, 0.0
  %3245 = vadd.xlane.f32.xlu0 %v3244
  %v3246 = vpop.xlane.xlu0 %3245
  %v3247 = vsel %vm63, %v3217, 0.0
  %3248 = vadd.xlane.f32.xlu0 %v3247
  %v3249 = vpop.xlane.xlu0 %3248
  %v3250 = vsel %vm63, %v3218, 0.0
  %3251 = vadd.xlane.f32.xlu0 %v3250
  %v3252 = vpop.xlane.xlu0 %3251
  %v3253 = vsel %vm63, %v3219, 0.0
  %3254 = vadd.xlane.f32.xlu0 %v3253
  %v3255 = vpop.xlane.xlu0 %3254
  %v3256 = vsel %vm63, %v3220, 0.0
  %3257 = vadd.xlane.f32.xlu0 %v3256
  %v3258 = vpop.xlane.xlu0 %3257
  %v3259 = vsel %vm63, %v3221, 0.0
  %3260 = vadd.xlane.f32.xlu0 %v3259
  %v3261 = vpop.xlane.xlu0 %3260
  %v3262 = vsel %vm63, %v3222, 0.0
  %3263 = vadd.xlane.f32.xlu0 %v3262
  %v3264 = vpop.xlane.xlu0 %3263
  %v3265 = vsel %vm63, %v3223, 0.0
  %3266 = vadd.xlane.f32.xlu0 %v3265
  %v3267 = vpop.xlane.xlu0 %3266
  %v3268 = vsel %vm63, %v3224, 0.0
  %3269 = vadd.xlane.f32.xlu0 %v3268
  %v3270 = vpop.xlane.xlu0 %3269
  %v3271 = vsel %vm63, %v3225, 0.0
  %3272 = vadd.xlane.f32.xlu0 %v3271
  %v3273 = vpop.xlane.xlu0 %3272
  %v3274 = vsel %vm63, %v3226, 0.0
  %3275 = vadd.xlane.f32.xlu0 %v3274
  %v3276 = vpop.xlane.xlu0 %3275
  %v3277 = vmul.f32 %v3231, %v118
  %v3278 = vmul.f32 %v3234, %v118
  %v3279 = vmul.f32 %v3237, %v118
  %v3280 = vmul.f32 %v3240, %v118
  %v3281 = vmul.f32 %v3243, %v118
  %v3282 = vmul.f32 %v3246, %v118
  %v3283 = vmul.f32 %v3249, %v118
  %v3284 = vmul.f32 %v3252, %v118
  %v3285 = vmul.f32 %v3255, %v118
  %v3286 = vmul.f32 %v3258, %v118
  %v3287 = vmul.f32 %v3261, %v118
  %v3288 = vmul.f32 %v3264, %v118
  %v3289 = vmul.f32 %v3267, %v118
  %v3290 = vmul.f32 %v3270, %v118
  %v3291 = vmul.f32 %v3273, %v118
  %v3292 = vmul.f32 %v3276, %v118
  %v3293 = vsub.f32 %v3211, %v3277
  %v3294 = vsub.f32 %v3212, %v3278
  %v3295 = vsub.f32 %v3213, %v3279
  %v3296 = vsub.f32 %v3214, %v3280
  %v3297 = vsub.f32 %v3215, %v3281
  %v3298 = vsub.f32 %v3216, %v3282
  %v3299 = vsub.f32 %v3217, %v3283
  %v3300 = vsub.f32 %v3218, %v3284
  %v3301 = vsub.f32 %v3219, %v3285
  %v3302 = vsub.f32 %v3220, %v3286
  %v3303 = vsub.f32 %v3221, %v3287
  %v3304 = vsub.f32 %v3222, %v3288
  %v3305 = vsub.f32 %v3223, %v3289
  %v3306 = vsub.f32 %v3224, %v3290
  %v3307 = vsub.f32 %v3225, %v3291
  %v3308 = vsub.f32 %v3226, %v3292
  %v3309 = vmul.f32 %v3293, %v3293
  %v3310 = vmul.f32 %v3294, %v3294
  %v3311 = vmul.f32 %v3295, %v3295
  %v3312 = vmul.f32 %v3296, %v3296
  %v3313 = vmul.f32 %v3297, %v3297
  %v3314 = vmul.f32 %v3298, %v3298
  %v3315 = vmul.f32 %v3299, %v3299
  %v3316 = vmul.f32 %v3300, %v3300
  %v3317 = vmul.f32 %v3301, %v3301
  %v3318 = vmul.f32 %v3302, %v3302
  %v3319 = vmul.f32 %v3303, %v3303
  %v3320 = vmul.f32 %v3304, %v3304
  %v3321 = vmul.f32 %v3305, %v3305
  %v3322 = vmul.f32 %v3306, %v3306
  %v3323 = vmul.f32 %v3307, %v3307
  %v3324 = vmul.f32 %v3308, %v3308
  %v3325 = vsel %vm63, %v3309, 0.0
  %3326 = vadd.xlane.f32.xlu0 %v3325
  %v3327 = vpop.xlane.xlu0 %3326
  %v3328 = vsel %vm63, %v3310, 0.0
  %3329 = vadd.xlane.f32.xlu0 %v3328
  %v3330 = vpop.xlane.xlu0 %3329
  %v3331 = vsel %vm63, %v3311, 0.0
  %3332 = vadd.xlane.f32.xlu0 %v3331
  %v3333 = vpop.xlane.xlu0 %3332
  %v3334 = vsel %vm63, %v3312, 0.0
  %3335 = vadd.xlane.f32.xlu0 %v3334
  %v3336 = vpop.xlane.xlu0 %3335
  %v3337 = vsel %vm63, %v3313, 0.0
  %3338 = vadd.xlane.f32.xlu0 %v3337
  %v3339 = vpop.xlane.xlu0 %3338
  %v3340 = vsel %vm63, %v3314, 0.0
  %3341 = vadd.xlane.f32.xlu0 %v3340
  %v3342 = vpop.xlane.xlu0 %3341
  %v3343 = vsel %vm63, %v3315, 0.0
  %3344 = vadd.xlane.f32.xlu0 %v3343
  %v3345 = vpop.xlane.xlu0 %3344
  %v3346 = vsel %vm63, %v3316, 0.0
  %3347 = vadd.xlane.f32.xlu0 %v3346
  %v3348 = vpop.xlane.xlu0 %3347
  %v3349 = vsel %vm63, %v3317, 0.0
  %3350 = vadd.xlane.f32.xlu0 %v3349
  %v3351 = vpop.xlane.xlu0 %3350
  %v3352 = vsel %vm63, %v3318, 0.0
  %3353 = vadd.xlane.f32.xlu0 %v3352
  %v3354 = vpop.xlane.xlu0 %3353
  %v3355 = vsel %vm63, %v3319, 0.0
  %3356 = vadd.xlane.f32.xlu0 %v3355
  %v3357 = vpop.xlane.xlu0 %3356
  %v3358 = vsel %vm63, %v3320, 0.0
  %3359 = vadd.xlane.f32.xlu0 %v3358
  %v3360 = vpop.xlane.xlu0 %3359
  %v3361 = vsel %vm63, %v3321, 0.0
  %3362 = vadd.xlane.f32.xlu0 %v3361
  %v3363 = vpop.xlane.xlu0 %3362
  %v3364 = vsel %vm63, %v3322, 0.0
  %3365 = vadd.xlane.f32.xlu0 %v3364
  %v3366 = vpop.xlane.xlu0 %3365
  %v3367 = vsel %vm63, %v3323, 0.0
  %3368 = vadd.xlane.f32.xlu0 %v3367
  %v3369 = vpop.xlane.xlu0 %3368
  %v3370 = vsel %vm63, %v3324, 0.0
  %3371 = vadd.xlane.f32.xlu0 %v3370
  %v3372 = vpop.xlane.xlu0 %3371
  %v3373 = vmul.f32 %v3327, %v118
  %v3374 = vmul.f32 %v3330, %v118
  %v3375 = vmul.f32 %v3333, %v118
  %v3376 = vmul.f32 %v3336, %v118
  %v3377 = vmul.f32 %v3339, %v118
  %v3378 = vmul.f32 %v3342, %v118
  %v3379 = vmul.f32 %v3345, %v118
  %v3380 = vmul.f32 %v3348, %v118
  %v3381 = vmul.f32 %v3351, %v118
  %v3382 = vmul.f32 %v3354, %v118
  %v3383 = vmul.f32 %v3357, %v118
  %v3384 = vmul.f32 %v3360, %v118
  %v3385 = vmul.f32 %v3363, %v118
  %v3386 = vmul.f32 %v3366, %v118
  %v3387 = vmul.f32 %v3369, %v118
  %v3388 = vmul.f32 %v3372, %v118
  %v3389 = vadd.f32 %v3373, 1e-05
  %v3390 = vadd.f32 %v3374, 1e-05
  %v3391 = vadd.f32 %v3375, 1e-05
  %v3392 = vadd.f32 %v3376, 1e-05
  %v3393 = vadd.f32 %v3377, 1e-05
  %v3394 = vadd.f32 %v3378, 1e-05
  %v3395 = vadd.f32 %v3379, 1e-05
  %v3396 = vadd.f32 %v3380, 1e-05
  %v3397 = vadd.f32 %v3381, 1e-05
  %v3398 = vadd.f32 %v3382, 1e-05
  %v3399 = vadd.f32 %v3383, 1e-05
  %v3400 = vadd.f32 %v3384, 1e-05
  %v3401 = vadd.f32 %v3385, 1e-05
  %v3402 = vadd.f32 %v3386, 1e-05
  %v3403 = vadd.f32 %v3387, 1e-05
  %v3404 = vadd.f32 %v3388, 1e-05
  %v3405 = vrsqrt.pop %v3389
  %v3406 = vmul.f32 %v3405, %v3389
  %v3407 = vmul.f32 %v3406, %v3405
  %v3408 = vmul.f32 0.5, %v3407
  %v3409 = vsub.f32 1.5, %v3408
  %v3410 = vmul.f32 %v3405, %v3409
  %vm3411 = vweird.f32 %v3389
  %vm3412 = vweird.f32 %v3405
  %vm3413 = vmor %vm3411, %vm3412
  %v3414 = vsel %vm3413, %v3405, %v3410
  %v3415 = vrsqrt.pop %v3390
  %v3416 = vmul.f32 %v3415, %v3390
  %v3417 = vmul.f32 %v3416, %v3415
  %v3418 = vmul.f32 0.5, %v3417
  %v3419 = vsub.f32 1.5, %v3418
  %v3420 = vmul.f32 %v3415, %v3419
  %vm3421 = vweird.f32 %v3390
  %vm3422 = vweird.f32 %v3415
  %vm3423 = vmor %vm3421, %vm3422
  %v3424 = vsel %vm3423, %v3415, %v3420
  %v3425 = vrsqrt.pop %v3391
  %v3426 = vmul.f32 %v3425, %v3391
  %v3427 = vmul.f32 %v3426, %v3425
  %v3428 = vmul.f32 0.5, %v3427
  %v3429 = vsub.f32 1.5, %v3428
  %v3430 = vmul.f32 %v3425, %v3429
  %vm3431 = vweird.f32 %v3391
  %vm3432 = vweird.f32 %v3425
  %vm3433 = vmor %vm3431, %vm3432
  %v3434 = vsel %vm3433, %v3425, %v3430
  %v3435 = vrsqrt.pop %v3392
  %v3436 = vmul.f32 %v3435, %v3392
  %v3437 = vmul.f32 %v3436, %v3435
  %v3438 = vmul.f32 0.5, %v3437
  %v3439 = vsub.f32 1.5, %v3438
  %v3440 = vmul.f32 %v3435, %v3439
  %vm3441 = vweird.f32 %v3392
  %vm3442 = vweird.f32 %v3435
  %vm3443 = vmor %vm3441, %vm3442
  %v3444 = vsel %vm3443, %v3435, %v3440
  %v3445 = vrsqrt.pop %v3393
  %v3446 = vmul.f32 %v3445, %v3393
  %v3447 = vmul.f32 %v3446, %v3445
  %v3448 = vmul.f32 0.5, %v3447
  %v3449 = vsub.f32 1.5, %v3448
  %v3450 = vmul.f32 %v3445, %v3449
  %vm3451 = vweird.f32 %v3393
  %vm3452 = vweird.f32 %v3445
  %vm3453 = vmor %vm3451, %vm3452
  %v3454 = vsel %vm3453, %v3445, %v3450
  %v3455 = vrsqrt.pop %v3394
  %v3456 = vmul.f32 %v3455, %v3394
  %v3457 = vmul.f32 %v3456, %v3455
  %v3458 = vmul.f32 0.5, %v3457
  %v3459 = vsub.f32 1.5, %v3458
  %v3460 = vmul.f32 %v3455, %v3459
  %vm3461 = vweird.f32 %v3394
  %vm3462 = vweird.f32 %v3455
  %vm3463 = vmor %vm3461, %vm3462
  %v3464 = vsel %vm3463, %v3455, %v3460
  %v3465 = vrsqrt.pop %v3395
  %v3466 = vmul.f32 %v3465, %v3395
  %v3467 = vmul.f32 %v3466, %v3465
  %v3468 = vmul.f32 0.5, %v3467
  %v3469 = vsub.f32 1.5, %v3468
  %v3470 = vmul.f32 %v3465, %v3469
  %vm3471 = vweird.f32 %v3395
  %vm3472 = vweird.f32 %v3465
  %vm3473 = vmor %vm3471, %vm3472
  %v3474 = vsel %vm3473, %v3465, %v3470
  %v3475 = vrsqrt.pop %v3396
  %v3476 = vmul.f32 %v3475, %v3396
  %v3477 = vmul.f32 %v3476, %v3475
  %v3478 = vmul.f32 0.5, %v3477
  %v3479 = vsub.f32 1.5, %v3478
  %v3480 = vmul.f32 %v3475, %v3479
  %vm3481 = vweird.f32 %v3396
  %vm3482 = vweird.f32 %v3475
  %vm3483 = vmor %vm3481, %vm3482
  %v3484 = vsel %vm3483, %v3475, %v3480
  %v3485 = vrsqrt.pop %v3397
  %v3486 = vmul.f32 %v3485, %v3397
  %v3487 = vmul.f32 %v3486, %v3485
  %v3488 = vmul.f32 0.5, %v3487
  %v3489 = vsub.f32 1.5, %v3488
  %v3490 = vmul.f32 %v3485, %v3489
  %vm3491 = vweird.f32 %v3397
  %vm3492 = vweird.f32 %v3485
  %vm3493 = vmor %vm3491, %vm3492
  %v3494 = vsel %vm3493, %v3485, %v3490
  %v3495 = vrsqrt.pop %v3398
  %v3496 = vmul.f32 %v3495, %v3398
  %v3497 = vmul.f32 %v3496, %v3495
  %v3498 = vmul.f32 0.5, %v3497
  %v3499 = vsub.f32 1.5, %v3498
  %v3500 = vmul.f32 %v3495, %v3499
  %vm3501 = vweird.f32 %v3398
  %vm3502 = vweird.f32 %v3495
  %vm3503 = vmor %vm3501, %vm3502
  %v3504 = vsel %vm3503, %v3495, %v3500
  %v3505 = vrsqrt.pop %v3399
  %v3506 = vmul.f32 %v3505, %v3399
  %v3507 = vmul.f32 %v3506, %v3505
  %v3508 = vmul.f32 0.5, %v3507
  %v3509 = vsub.f32 1.5, %v3508
  %v3510 = vmul.f32 %v3505, %v3509
  %vm3511 = vweird.f32 %v3399
  %vm3512 = vweird.f32 %v3505
  %vm3513 = vmor %vm3511, %vm3512
  %v3514 = vsel %vm3513, %v3505, %v3510
  %v3515 = vrsqrt.pop %v3400
  %v3516 = vmul.f32 %v3515, %v3400
  %v3517 = vmul.f32 %v3516, %v3515
  %v3518 = vmul.f32 0.5, %v3517
  %v3519 = vsub.f32 1.5, %v3518
  %v3520 = vmul.f32 %v3515, %v3519
  %vm3521 = vweird.f32 %v3400
  %vm3522 = vweird.f32 %v3515
  %vm3523 = vmor %vm3521, %vm3522
  %v3524 = vsel %vm3523, %v3515, %v3520
  %v3525 = vrsqrt.pop %v3401
  %v3526 = vmul.f32 %v3525, %v3401
  %v3527 = vmul.f32 %v3526, %v3525
  %v3528 = vmul.f32 0.5, %v3527
  %v3529 = vsub.f32 1.5, %v3528
  %v3530 = vmul.f32 %v3525, %v3529
  %vm3531 = vweird.f32 %v3401
  %vm3532 = vweird.f32 %v3525
  %vm3533 = vmor %vm3531, %vm3532
  %v3534 = vsel %vm3533, %v3525, %v3530
  %v3535 = vrsqrt.pop %v3402
  %v3536 = vmul.f32 %v3535, %v3402
  %v3537 = vmul.f32 %v3536, %v3535
  %v3538 = vmul.f32 0.5, %v3537
  %v3539 = vsub.f32 1.5, %v3538
  %v3540 = vmul.f32 %v3535, %v3539
  %vm3541 = vweird.f32 %v3402
  %vm3542 = vweird.f32 %v3535
  %vm3543 = vmor %vm3541, %vm3542
  %v3544 = vsel %vm3543, %v3535, %v3540
  %v3545 = vrsqrt.pop %v3403
  %v3546 = vmul.f32 %v3545, %v3403
  %v3547 = vmul.f32 %v3546, %v3545
  %v3548 = vmul.f32 0.5, %v3547
  %v3549 = vsub.f32 1.5, %v3548
  %v3550 = vmul.f32 %v3545, %v3549
  %vm3551 = vweird.f32 %v3403
  %vm3552 = vweird.f32 %v3545
  %vm3553 = vmor %vm3551, %vm3552
  %v3554 = vsel %vm3553, %v3545, %v3550
  %v3555 = vrsqrt.pop %v3404
  %v3556 = vmul.f32 %v3555, %v3404
  %v3557 = vmul.f32 %v3556, %v3555
  %v3558 = vmul.f32 0.5, %v3557
  %v3559 = vsub.f32 1.5, %v3558
  %v3560 = vmul.f32 %v3555, %v3559
  %vm3561 = vweird.f32 %v3404
  %vm3562 = vweird.f32 %v3555
  %vm3563 = vmor %vm3561, %vm3562
  %v3564 = vsel %vm3563, %v3555, %v3560
  %v3565 = vmul.f32 %v3293, %v3414
  %v3566 = vmul.f32 %v3294, %v3424
  %v3567 = vmul.f32 %v3295, %v3434
  %v3568 = vmul.f32 %v3296, %v3444
  %v3569 = vmul.f32 %v3297, %v3454
  %v3570 = vmul.f32 %v3298, %v3464
  %v3571 = vmul.f32 %v3299, %v3474
  %v3572 = vmul.f32 %v3300, %v3484
  %v3573 = vmul.f32 %v3301, %v3494
  %v3574 = vmul.f32 %v3302, %v3504
  %v3575 = vmul.f32 %v3303, %v3514
  %v3576 = vmul.f32 %v3304, %v3524
  %v3577 = vmul.f32 %v3305, %v3534
  %v3578 = vmul.f32 %v3306, %v3544
  %v3579 = vmul.f32 %v3307, %v3554
  %v3580 = vmul.f32 %v3308, %v3564
  %v3582 = vperm.slane %v3227, 0
  %v3584 = vmul.f32 %v3565, %v3582
  %v3585 = vmul.f32 %v3566, %v3582
  %v3586 = vmul.f32 %v3567, %v3582
  %v3587 = vmul.f32 %v3568, %v3582
  %v3588 = vmul.f32 %v3569, %v3582
  %v3589 = vmul.f32 %v3570, %v3582
  %v3590 = vmul.f32 %v3571, %v3582
  %v3591 = vmul.f32 %v3572, %v3582
  %v3592 = vmul.f32 %v3573, %v3582
  %v3593 = vmul.f32 %v3574, %v3582
  %v3594 = vmul.f32 %v3575, %v3582
  %v3595 = vmul.f32 %v3576, %v3582
  %v3596 = vmul.f32 %v3577, %v3582
  %v3597 = vmul.f32 %v3578, %v3582
  %v3598 = vmul.f32 %v3579, %v3582
  %v3599 = vmul.f32 %v3580, %v3582
  %v3601 = vperm.slane %v3228, 0
  %v3603 = vadd.f32 %v3584, %v3601
  %v3604 = vadd.f32 %v3585, %v3601
  %v3605 = vadd.f32 %v3586, %v3601
  %v3606 = vadd.f32 %v3587, %v3601
  %v3607 = vadd.f32 %v3588, %v3601
  %v3608 = vadd.f32 %v3589, %v3601
  %v3609 = vadd.f32 %v3590, %v3601
  %v3610 = vadd.f32 %v3591, %v3601
  %v3611 = vadd.f32 %v3592, %v3601
  %v3612 = vadd.f32 %v3593, %v3601
  %v3613 = vadd.f32 %v3594, %v3601
  %v3614 = vadd.f32 %v3595, %v3601
  %v3615 = vadd.f32 %v3596, %v3601
  %v3616 = vadd.f32 %v3597, %v3601
  %v3617 = vadd.f32 %v3598, %v3601
  %v3618 = vadd.f32 %v3599, %v3601
  %v3619 = vpack.c.bf16 %v3604, %v3603
  %v3620 = vpack.c.bf16 %v3606, %v3605
  %v3621 = vpack.c.bf16 %v3608, %v3607
  %v3622 = vpack.c.bf16 %v3610, %v3609
  %v3623 = vpack.c.bf16 %v3612, %v3611
  %v3624 = vpack.c.bf16 %v3614, %v3613
  %v3625 = vpack.c.bf16 %v3616, %v3615
  %v3626 = vpack.c.bf16 %v3618, %v3617
  %v3627 = vld [vmem:[%s9] sm:$0xf]
  %v3628 = vld [vmem:[%s9 + $0x4] sm:$0xf]
  %v3629 = vld [vmem:[%s9 + $0x8] sm:$0xf]
  %v3630 = vld [vmem:[%s9 + $0xc] sm:$0xf]
  %v3631 = vld [vmem:[%s10] sm:$0x1]
  %v3633 = vperm.slane %v3631, 0
  %v3639 = vunpack.c.l.b16 %v3627
  %v3640 = vunpack.c.l.b16 %v3628
  %v3641 = vunpack.c.l.b16 %v3629
  %v3642 = vunpack.c.l.b16 %v3630
  %v3643 = vpack.c.b16 %v3640, %v3639
  %v3644 = vpack.c.b16 %v3642, %v3641
  %v3648 = vsel %vm63, %v3619, 0
  %v3651 = vsel %vm63, %v3620, 0
  %v3654 = vsel %vm63, %v3621, 0
  %v3657 = vsel %vm63, %v3622, 0
  %v3660 = vsel %vm63, %v3623, 0
  %v3663 = vsel %vm63, %v3624, 0
  %v3666 = vsel %vm63, %v3625, 0
  %v3669 = vsel %vm63, %v3626, 0
  %3671 = vmatpush.bf16.msra.mxu0 0
  %3672 = vmatpush.bf16.msra.mxu0 0
  %3673 = vmatpush.bf16.msra.mxu0 0
  %3674 = vmatpush.bf16.msra.mxu0 0
  %3675 = vmatpush.bf16.msra.mxu0 0
  %3676 = vmatpush.bf16.msra.mxu0 0
  %3677 = vmatpush.bf16.msra.mxu0 %v3644
  %3678 = vmatpush.bf16.msra.mxu0 %v3643
  %3679 = vmatmul.bf16.gmra.mxu0 %v3648
  %v3680 = vpop.f32.mrf.mxu0
  %v3681 = vadd.f32 %v3633, %v3680
  %v3682 = vpop.f32.mrf.mxu0
  %v3683 = vadd.f32 %v3633, %v3682
  %3684 = vmatmul.bf16.gmra.mxu0 %v3651
  %v3685 = vpop.f32.mrf.mxu0
  %v3686 = vadd.f32 %v3633, %v3685
  %v3687 = vpop.f32.mrf.mxu0
  %v3688 = vadd.f32 %v3633, %v3687
  %3689 = vmatmul.bf16.gmra.mxu0 %v3654
  %v3690 = vpop.f32.mrf.mxu0
  %v3691 = vadd.f32 %v3633, %v3690
  %v3692 = vpop.f32.mrf.mxu0
  %v3693 = vadd.f32 %v3633, %v3692
  %3694 = vmatmul.bf16.gmra.mxu0 %v3657
  %v3695 = vpop.f32.mrf.mxu0
  %v3696 = vadd.f32 %v3633, %v3695
  %v3697 = vpop.f32.mrf.mxu0
  %v3698 = vadd.f32 %v3633, %v3697
  %3699 = vmatmul.bf16.gmra.mxu0 %v3660
  %v3700 = vpop.f32.mrf.mxu0
  %v3701 = vadd.f32 %v3633, %v3700
  %v3702 = vpop.f32.mrf.mxu0
  %v3703 = vadd.f32 %v3633, %v3702
  %3704 = vmatmul.bf16.gmra.mxu0 %v3663
  %v3705 = vpop.f32.mrf.mxu0
  %v3706 = vadd.f32 %v3633, %v3705
  %v3707 = vpop.f32.mrf.mxu0
  %v3708 = vadd.f32 %v3633, %v3707
  %3709 = vmatmul.bf16.gmra.mxu0 %v3666
  %v3710 = vpop.f32.mrf.mxu0
  %v3711 = vadd.f32 %v3633, %v3710
  %v3712 = vpop.f32.mrf.mxu0
  %v3713 = vadd.f32 %v3633, %v3712
  %3714 = vmatmul.bf16.gmra.mxu0 %v3669
  %v3715 = vpop.f32.mrf.mxu0
  %v3716 = vadd.f32 %v3633, %v3715
  %v3717 = vpop.f32.mrf.mxu0
  %v3718 = vadd.f32 %v3633, %v3717
  %3719 = vdwg.mxu0
  %v3720 = vmul.f32 %v3681, 0.5
  %v3721 = vmul.f32 %v3683, 0.5
  %v3722 = vmul.f32 %v3686, 0.5
  %v3723 = vmul.f32 %v3688, 0.5
  %v3724 = vmul.f32 %v3691, 0.5
  %v3725 = vmul.f32 %v3693, 0.5
  %v3726 = vmul.f32 %v3696, 0.5
  %v3727 = vmul.f32 %v3698, 0.5
  %v3728 = vmul.f32 %v3701, 0.5
  %v3729 = vmul.f32 %v3703, 0.5
  %v3730 = vmul.f32 %v3706, 0.5
  %v3731 = vmul.f32 %v3708, 0.5
  %v3732 = vmul.f32 %v3711, 0.5
  %v3733 = vmul.f32 %v3713, 0.5
  %v3734 = vmul.f32 %v3716, 0.5
  %v3735 = vmul.f32 %v3718, 0.5
  %v3736 = vmul.f32 %v3681, 0.70710677
  %v3737 = vmul.f32 %v3683, 0.70710677
  %v3738 = vmul.f32 %v3686, 0.70710677
  %v3739 = vmul.f32 %v3688, 0.70710677
  %v3740 = vmul.f32 %v3691, 0.70710677
  %v3741 = vmul.f32 %v3693, 0.70710677
  %v3742 = vmul.f32 %v3696, 0.70710677
  %v3743 = vmul.f32 %v3698, 0.70710677
  %v3744 = vmul.f32 %v3701, 0.70710677
  %v3745 = vmul.f32 %v3703, 0.70710677
  %v3746 = vmul.f32 %v3706, 0.70710677
  %v3747 = vmul.f32 %v3708, 0.70710677
  %v3748 = vmul.f32 %v3711, 0.70710677
  %v3749 = vmul.f32 %v3713, 0.70710677
  %v3750 = vmul.f32 %v3716, 0.70710677
  %v3751 = vmul.f32 %v3718, 0.70710677
  %v3752 = vmul.f32 %v3736, %v3736
  %v3753 = vmin.f32 16.0, %v3752
  %v3754 = vmul.f32 %v3753, 2.1237322e-06
  %v3755 = vadd.f32 %v3754, 0.00028619796
  %v3756 = vmul.f32 %v3753, %v3755
  %v3757 = vadd.f32 %v3756, 0.0036580483
  %v3758 = vmul.f32 %v3753, %v3757
  %v3759 = vadd.f32 %v3758, 0.05243302
  %v3760 = vmul.f32 %v3753, %v3759
  %v3761 = vadd.f32 %v3760, 0.18741608
  %v3762 = vmul.f32 %v3753, %v3761
  %v3763 = vadd.f32 %v3762, 1.1283791
  %v3764 = vmul.f32 %v3736, %v3763
  %v3765 = vmul.f32 %v3753, 3.8918573e-05
  %v3766 = vadd.f32 %v3765, 0.001143296
  %v3767 = vmul.f32 %v3753, %v3766
  %v3768 = vadd.f32 %v3767, 0.014752088
  %v3769 = vmul.f32 %v3753, %v3768
  %v3770 = vadd.f32 %v3769, 0.112945676
  %v3771 = vmul.f32 %v3753, %v3770
  %v3772 = vadd.f32 %v3771, 0.4994258
  %v3773 = vmul.f32 %v3753, %v3772
  %v3774 = vadd.f32 %v3773, 1.0
  %v3775 = vrcp.pop %v3774
  %v3776 = vmul.f32 %v3774, %v3775
  %v3777 = vsub.f32 1.0, %v3776
  %v3778 = vmul.f32 %v3775, %v3777
  %v3779 = vadd.f32 %v3775, %v3778
  %vm3780 = vweird.f32 %v3774
  %vm3781 = vweird.f32 %v3775
  %vm3782 = vmor %vm3780, %vm3781
  %v3783 = vsel %vm3782, %v3775, %v3779
  %v3784 = vand.u32 2147483647, %v3774
  %vm3785 = vcmp.eq.f32.partialorder %v3784, 8.507059e+37
  %v3786 = vand.u32 %v3774, 2147483648
  %v3787 = vor.u32 1.1754944e-38, %v3786
  %v3788 = vsel %vm3785, %v3787, %v3783
  %v3789 = vmul.f32 %v3764, %v3788
  %v3790 = vmin.f32 %v3789, 1.0
  %v3791 = vmax.f32 %v3790, -1.0
  %v3792 = vmul.f32 %v3737, %v3737
  %v3793 = vmin.f32 16.0, %v3792
  %v3794 = vmul.f32 %v3793, 2.1237322e-06
  %v3795 = vadd.f32 %v3794, 0.00028619796
  %v3796 = vmul.f32 %v3793, %v3795
  %v3797 = vadd.f32 %v3796, 0.0036580483
  %v3798 = vmul.f32 %v3793, %v3797
  %v3799 = vadd.f32 %v3798, 0.05243302
  %v3800 = vmul.f32 %v3793, %v3799
  %v3801 = vadd.f32 %v3800, 0.18741608
  %v3802 = vmul.f32 %v3793, %v3801
  %v3803 = vadd.f32 %v3802, 1.1283791
  %v3804 = vmul.f32 %v3737, %v3803
  %v3805 = vmul.f32 %v3793, 3.8918573e-05
  %v3806 = vadd.f32 %v3805, 0.001143296
  %v3807 = vmul.f32 %v3793, %v3806
  %v3808 = vadd.f32 %v3807, 0.014752088
  %v3809 = vmul.f32 %v3793, %v3808
  %v3810 = vadd.f32 %v3809, 0.112945676
  %v3811 = vmul.f32 %v3793, %v3810
  %v3812 = vadd.f32 %v3811, 0.4994258
  %v3813 = vmul.f32 %v3793, %v3812
  %v3814 = vadd.f32 %v3813, 1.0
  %v3815 = vrcp.pop %v3814
  %v3816 = vmul.f32 %v3814, %v3815
  %v3817 = vsub.f32 1.0, %v3816
  %v3818 = vmul.f32 %v3815, %v3817
  %v3819 = vadd.f32 %v3815, %v3818
  %vm3820 = vweird.f32 %v3814
  %vm3821 = vweird.f32 %v3815
  %vm3822 = vmor %vm3820, %vm3821
  %v3823 = vsel %vm3822, %v3815, %v3819
  %v3824 = vand.u32 2147483647, %v3814
  %vm3825 = vcmp.eq.f32.partialorder %v3824, 8.507059e+37
  %v3826 = vand.u32 %v3814, 2147483648
  %v3827 = vor.u32 1.1754944e-38, %v3826
  %v3828 = vsel %vm3825, %v3827, %v3823
  %v3829 = vmul.f32 %v3804, %v3828
  %v3830 = vmin.f32 %v3829, 1.0
  %v3831 = vmax.f32 %v3830, -1.0
  %v3832 = vmul.f32 %v3738, %v3738
  %v3833 = vmin.f32 16.0, %v3832
  %v3834 = vmul.f32 %v3833, 2.1237322e-06
  %v3835 = vadd.f32 %v3834, 0.00028619796
  %v3836 = vmul.f32 %v3833, %v3835
  %v3837 = vadd.f32 %v3836, 0.0036580483
  %v3838 = vmul.f32 %v3833, %v3837
  %v3839 = vadd.f32 %v3838, 0.05243302
  %v3840 = vmul.f32 %v3833, %v3839
  %v3841 = vadd.f32 %v3840, 0.18741608
  %v3842 = vmul.f32 %v3833, %v3841
  %v3843 = vadd.f32 %v3842, 1.1283791
  %v3844 = vmul.f32 %v3738, %v3843
  %v3845 = vmul.f32 %v3833, 3.8918573e-05
  %v3846 = vadd.f32 %v3845, 0.001143296
  %v3847 = vmul.f32 %v3833, %v3846
  %v3848 = vadd.f32 %v3847, 0.014752088
  %v3849 = vmul.f32 %v3833, %v3848
  %v3850 = vadd.f32 %v3849, 0.112945676
  %v3851 = vmul.f32 %v3833, %v3850
  %v3852 = vadd.f32 %v3851, 0.4994258
  %v3853 = vmul.f32 %v3833, %v3852
  %v3854 = vadd.f32 %v3853, 1.0
  %v3855 = vrcp.pop %v3854
  %v3856 = vmul.f32 %v3854, %v3855
  %v3857 = vsub.f32 1.0, %v3856
  %v3858 = vmul.f32 %v3855, %v3857
  %v3859 = vadd.f32 %v3855, %v3858
  %vm3860 = vweird.f32 %v3854
  %vm3861 = vweird.f32 %v3855
  %vm3862 = vmor %vm3860, %vm3861
  %v3863 = vsel %vm3862, %v3855, %v3859
  %v3864 = vand.u32 2147483647, %v3854
  %vm3865 = vcmp.eq.f32.partialorder %v3864, 8.507059e+37
  %v3866 = vand.u32 %v3854, 2147483648
  %v3867 = vor.u32 1.1754944e-38, %v3866
  %v3868 = vsel %vm3865, %v3867, %v3863
  %v3869 = vmul.f32 %v3844, %v3868
  %v3870 = vmin.f32 %v3869, 1.0
  %v3871 = vmax.f32 %v3870, -1.0
  %v3872 = vmul.f32 %v3739, %v3739
  %v3873 = vmin.f32 16.0, %v3872
  %v3874 = vmul.f32 %v3873, 2.1237322e-06
  %v3875 = vadd.f32 %v3874, 0.00028619796
  %v3876 = vmul.f32 %v3873, %v3875
  %v3877 = vadd.f32 %v3876, 0.0036580483
  %v3878 = vmul.f32 %v3873, %v3877
  %v3879 = vadd.f32 %v3878, 0.05243302
  %v3880 = vmul.f32 %v3873, %v3879
  %v3881 = vadd.f32 %v3880, 0.18741608
  %v3882 = vmul.f32 %v3873, %v3881
  %v3883 = vadd.f32 %v3882, 1.1283791
  %v3884 = vmul.f32 %v3739, %v3883
  %v3885 = vmul.f32 %v3873, 3.8918573e-05
  %v3886 = vadd.f32 %v3885, 0.001143296
  %v3887 = vmul.f32 %v3873, %v3886
  %v3888 = vadd.f32 %v3887, 0.014752088
  %v3889 = vmul.f32 %v3873, %v3888
  %v3890 = vadd.f32 %v3889, 0.112945676
  %v3891 = vmul.f32 %v3873, %v3890
  %v3892 = vadd.f32 %v3891, 0.4994258
  %v3893 = vmul.f32 %v3873, %v3892
  %v3894 = vadd.f32 %v3893, 1.0
  %v3895 = vrcp.pop %v3894
  %v3896 = vmul.f32 %v3894, %v3895
  %v3897 = vsub.f32 1.0, %v3896
  %v3898 = vmul.f32 %v3895, %v3897
  %v3899 = vadd.f32 %v3895, %v3898
  %vm3900 = vweird.f32 %v3894
  %vm3901 = vweird.f32 %v3895
  %vm3902 = vmor %vm3900, %vm3901
  %v3903 = vsel %vm3902, %v3895, %v3899
  %v3904 = vand.u32 2147483647, %v3894
  %vm3905 = vcmp.eq.f32.partialorder %v3904, 8.507059e+37
  %v3906 = vand.u32 %v3894, 2147483648
  %v3907 = vor.u32 1.1754944e-38, %v3906
  %v3908 = vsel %vm3905, %v3907, %v3903
  %v3909 = vmul.f32 %v3884, %v3908
  %v3910 = vmin.f32 %v3909, 1.0
  %v3911 = vmax.f32 %v3910, -1.0
  %v3912 = vmul.f32 %v3740, %v3740
  %v3913 = vmin.f32 16.0, %v3912
  %v3914 = vmul.f32 %v3913, 2.1237322e-06
  %v3915 = vadd.f32 %v3914, 0.00028619796
  %v3916 = vmul.f32 %v3913, %v3915
  %v3917 = vadd.f32 %v3916, 0.0036580483
  %v3918 = vmul.f32 %v3913, %v3917
  %v3919 = vadd.f32 %v3918, 0.05243302
  %v3920 = vmul.f32 %v3913, %v3919
  %v3921 = vadd.f32 %v3920, 0.18741608
  %v3922 = vmul.f32 %v3913, %v3921
  %v3923 = vadd.f32 %v3922, 1.1283791
  %v3924 = vmul.f32 %v3740, %v3923
  %v3925 = vmul.f32 %v3913, 3.8918573e-05
  %v3926 = vadd.f32 %v3925, 0.001143296
  %v3927 = vmul.f32 %v3913, %v3926
  %v3928 = vadd.f32 %v3927, 0.014752088
  %v3929 = vmul.f32 %v3913, %v3928
  %v3930 = vadd.f32 %v3929, 0.112945676
  %v3931 = vmul.f32 %v3913, %v3930
  %v3932 = vadd.f32 %v3931, 0.4994258
  %v3933 = vmul.f32 %v3913, %v3932
  %v3934 = vadd.f32 %v3933, 1.0
  %v3935 = vrcp.pop %v3934
  %v3936 = vmul.f32 %v3934, %v3935
  %v3937 = vsub.f32 1.0, %v3936
  %v3938 = vmul.f32 %v3935, %v3937
  %v3939 = vadd.f32 %v3935, %v3938
  %vm3940 = vweird.f32 %v3934
  %vm3941 = vweird.f32 %v3935
  %vm3942 = vmor %vm3940, %vm3941
  %v3943 = vsel %vm3942, %v3935, %v3939
  %v3944 = vand.u32 2147483647, %v3934
  %vm3945 = vcmp.eq.f32.partialorder %v3944, 8.507059e+37
  %v3946 = vand.u32 %v3934, 2147483648
  %v3947 = vor.u32 1.1754944e-38, %v3946
  %v3948 = vsel %vm3945, %v3947, %v3943
  %v3949 = vmul.f32 %v3924, %v3948
  %v3950 = vmin.f32 %v3949, 1.0
  %v3951 = vmax.f32 %v3950, -1.0
  %v3952 = vmul.f32 %v3741, %v3741
  %v3953 = vmin.f32 16.0, %v3952
  %v3954 = vmul.f32 %v3953, 2.1237322e-06
  %v3955 = vadd.f32 %v3954, 0.00028619796
  %v3956 = vmul.f32 %v3953, %v3955
  %v3957 = vadd.f32 %v3956, 0.0036580483
  %v3958 = vmul.f32 %v3953, %v3957
  %v3959 = vadd.f32 %v3958, 0.05243302
  %v3960 = vmul.f32 %v3953, %v3959
  %v3961 = vadd.f32 %v3960, 0.18741608
  %v3962 = vmul.f32 %v3953, %v3961
  %v3963 = vadd.f32 %v3962, 1.1283791
  %v3964 = vmul.f32 %v3741, %v3963
  %v3965 = vmul.f32 %v3953, 3.8918573e-05
  %v3966 = vadd.f32 %v3965, 0.001143296
  %v3967 = vmul.f32 %v3953, %v3966
  %v3968 = vadd.f32 %v3967, 0.014752088
  %v3969 = vmul.f32 %v3953, %v3968
  %v3970 = vadd.f32 %v3969, 0.112945676
  %v3971 = vmul.f32 %v3953, %v3970
  %v3972 = vadd.f32 %v3971, 0.4994258
  %v3973 = vmul.f32 %v3953, %v3972
  %v3974 = vadd.f32 %v3973, 1.0
  %v3975 = vrcp.pop %v3974
  %v3976 = vmul.f32 %v3974, %v3975
  %v3977 = vsub.f32 1.0, %v3976
  %v3978 = vmul.f32 %v3975, %v3977
  %v3979 = vadd.f32 %v3975, %v3978
  %vm3980 = vweird.f32 %v3974
  %vm3981 = vweird.f32 %v3975
  %vm3982 = vmor %vm3980, %vm3981
  %v3983 = vsel %vm3982, %v3975, %v3979
  %v3984 = vand.u32 2147483647, %v3974
  %vm3985 = vcmp.eq.f32.partialorder %v3984, 8.507059e+37
  %v3986 = vand.u32 %v3974, 2147483648
  %v3987 = vor.u32 1.1754944e-38, %v3986
  %v3988 = vsel %vm3985, %v3987, %v3983
  %v3989 = vmul.f32 %v3964, %v3988
  %v3990 = vmin.f32 %v3989, 1.0
  %v3991 = vmax.f32 %v3990, -1.0
  %v3992 = vmul.f32 %v3742, %v3742
  %v3993 = vmin.f32 16.0, %v3992
  %v3994 = vmul.f32 %v3993, 2.1237322e-06
  %v3995 = vadd.f32 %v3994, 0.00028619796
  %v3996 = vmul.f32 %v3993, %v3995
  %v3997 = vadd.f32 %v3996, 0.0036580483
  %v3998 = vmul.f32 %v3993, %v3997
  %v3999 = vadd.f32 %v3998, 0.05243302
  %v4000 = vmul.f32 %v3993, %v3999
  %v4001 = vadd.f32 %v4000, 0.18741608
  %v4002 = vmul.f32 %v3993, %v4001
  %v4003 = vadd.f32 %v4002, 1.1283791
  %v4004 = vmul.f32 %v3742, %v4003
  %v4005 = vmul.f32 %v3993, 3.8918573e-05
  %v4006 = vadd.f32 %v4005, 0.001143296
  %v4007 = vmul.f32 %v3993, %v4006
  %v4008 = vadd.f32 %v4007, 0.014752088
  %v4009 = vmul.f32 %v3993, %v4008
  %v4010 = vadd.f32 %v4009, 0.112945676
  %v4011 = vmul.f32 %v3993, %v4010
  %v4012 = vadd.f32 %v4011, 0.4994258
  %v4013 = vmul.f32 %v3993, %v4012
  %v4014 = vadd.f32 %v4013, 1.0
  %v4015 = vrcp.pop %v4014
  %v4016 = vmul.f32 %v4014, %v4015
  %v4017 = vsub.f32 1.0, %v4016
  %v4018 = vmul.f32 %v4015, %v4017
  %v4019 = vadd.f32 %v4015, %v4018
  %vm4020 = vweird.f32 %v4014
  %vm4021 = vweird.f32 %v4015
  %vm4022 = vmor %vm4020, %vm4021
  %v4023 = vsel %vm4022, %v4015, %v4019
  %v4024 = vand.u32 2147483647, %v4014
  %vm4025 = vcmp.eq.f32.partialorder %v4024, 8.507059e+37
  %v4026 = vand.u32 %v4014, 2147483648
  %v4027 = vor.u32 1.1754944e-38, %v4026
  %v4028 = vsel %vm4025, %v4027, %v4023
  %v4029 = vmul.f32 %v4004, %v4028
  %v4030 = vmin.f32 %v4029, 1.0
  %v4031 = vmax.f32 %v4030, -1.0
  %v4032 = vmul.f32 %v3743, %v3743
  %v4033 = vmin.f32 16.0, %v4032
  %v4034 = vmul.f32 %v4033, 2.1237322e-06
  %v4035 = vadd.f32 %v4034, 0.00028619796
  %v4036 = vmul.f32 %v4033, %v4035
  %v4037 = vadd.f32 %v4036, 0.0036580483
  %v4038 = vmul.f32 %v4033, %v4037
  %v4039 = vadd.f32 %v4038, 0.05243302
  %v4040 = vmul.f32 %v4033, %v4039
  %v4041 = vadd.f32 %v4040, 0.18741608
  %v4042 = vmul.f32 %v4033, %v4041
  %v4043 = vadd.f32 %v4042, 1.1283791
  %v4044 = vmul.f32 %v3743, %v4043
  %v4045 = vmul.f32 %v4033, 3.8918573e-05
  %v4046 = vadd.f32 %v4045, 0.001143296
  %v4047 = vmul.f32 %v4033, %v4046
  %v4048 = vadd.f32 %v4047, 0.014752088
  %v4049 = vmul.f32 %v4033, %v4048
  %v4050 = vadd.f32 %v4049, 0.112945676
  %v4051 = vmul.f32 %v4033, %v4050
  %v4052 = vadd.f32 %v4051, 0.4994258
  %v4053 = vmul.f32 %v4033, %v4052
  %v4054 = vadd.f32 %v4053, 1.0
  %v4055 = vrcp.pop %v4054
  %v4056 = vmul.f32 %v4054, %v4055
  %v4057 = vsub.f32 1.0, %v4056
  %v4058 = vmul.f32 %v4055, %v4057
  %v4059 = vadd.f32 %v4055, %v4058
  %vm4060 = vweird.f32 %v4054
  %vm4061 = vweird.f32 %v4055
  %vm4062 = vmor %vm4060, %vm4061
  %v4063 = vsel %vm4062, %v4055, %v4059
  %v4064 = vand.u32 2147483647, %v4054
  %vm4065 = vcmp.eq.f32.partialorder %v4064, 8.507059e+37
  %v4066 = vand.u32 %v4054, 2147483648
  %v4067 = vor.u32 1.1754944e-38, %v4066
  %v4068 = vsel %vm4065, %v4067, %v4063
  %v4069 = vmul.f32 %v4044, %v4068
  %v4070 = vmin.f32 %v4069, 1.0
  %v4071 = vmax.f32 %v4070, -1.0
  %v4072 = vmul.f32 %v3744, %v3744
  %v4073 = vmin.f32 16.0, %v4072
  %v4074 = vmul.f32 %v4073, 2.1237322e-06
  %v4075 = vadd.f32 %v4074, 0.00028619796
  %v4076 = vmul.f32 %v4073, %v4075
  %v4077 = vadd.f32 %v4076, 0.0036580483
  %v4078 = vmul.f32 %v4073, %v4077
  %v4079 = vadd.f32 %v4078, 0.05243302
  %v4080 = vmul.f32 %v4073, %v4079
  %v4081 = vadd.f32 %v4080, 0.18741608
  %v4082 = vmul.f32 %v4073, %v4081
  %v4083 = vadd.f32 %v4082, 1.1283791
  %v4084 = vmul.f32 %v3744, %v4083
  %v4085 = vmul.f32 %v4073, 3.8918573e-05
  %v4086 = vadd.f32 %v4085, 0.001143296
  %v4087 = vmul.f32 %v4073, %v4086
  %v4088 = vadd.f32 %v4087, 0.014752088
  %v4089 = vmul.f32 %v4073, %v4088
  %v4090 = vadd.f32 %v4089, 0.112945676
  %v4091 = vmul.f32 %v4073, %v4090
  %v4092 = vadd.f32 %v4091, 0.4994258
  %v4093 = vmul.f32 %v4073, %v4092
  %v4094 = vadd.f32 %v4093, 1.0
  %v4095 = vrcp.pop %v4094
  %v4096 = vmul.f32 %v4094, %v4095
  %v4097 = vsub.f32 1.0, %v4096
  %v4098 = vmul.f32 %v4095, %v4097
  %v4099 = vadd.f32 %v4095, %v4098
  %vm4100 = vweird.f32 %v4094
  %vm4101 = vweird.f32 %v4095
  %vm4102 = vmor %vm4100, %vm4101
  %v4103 = vsel %vm4102, %v4095, %v4099
  %v4104 = vand.u32 2147483647, %v4094
  %vm4105 = vcmp.eq.f32.partialorder %v4104, 8.507059e+37
  %v4106 = vand.u32 %v4094, 2147483648
  %v4107 = vor.u32 1.1754944e-38, %v4106
  %v4108 = vsel %vm4105, %v4107, %v4103
  %v4109 = vmul.f32 %v4084, %v4108
  %v4110 = vmin.f32 %v4109, 1.0
  %v4111 = vmax.f32 %v4110, -1.0
  %v4112 = vmul.f32 %v3745, %v3745
  %v4113 = vmin.f32 16.0, %v4112
  %v4114 = vmul.f32 %v4113, 2.1237322e-06
  %v4115 = vadd.f32 %v4114, 0.00028619796
  %v4116 = vmul.f32 %v4113, %v4115
  %v4117 = vadd.f32 %v4116, 0.0036580483
  %v4118 = vmul.f32 %v4113, %v4117
  %v4119 = vadd.f32 %v4118, 0.05243302
  %v4120 = vmul.f32 %v4113, %v4119
  %v4121 = vadd.f32 %v4120, 0.18741608
  %v4122 = vmul.f32 %v4113, %v4121
  %v4123 = vadd.f32 %v4122, 1.1283791
  %v4124 = vmul.f32 %v3745, %v4123
  %v4125 = vmul.f32 %v4113, 3.8918573e-05
  %v4126 = vadd.f32 %v4125, 0.001143296
  %v4127 = vmul.f32 %v4113, %v4126
  %v4128 = vadd.f32 %v4127, 0.014752088
  %v4129 = vmul.f32 %v4113, %v4128
  %v4130 = vadd.f32 %v4129, 0.112945676
  %v4131 = vmul.f32 %v4113, %v4130
  %v4132 = vadd.f32 %v4131, 0.4994258
  %v4133 = vmul.f32 %v4113, %v4132
  %v4134 = vadd.f32 %v4133, 1.0
  %v4135 = vrcp.pop %v4134
  %v4136 = vmul.f32 %v4134, %v4135
  %v4137 = vsub.f32 1.0, %v4136
  %v4138 = vmul.f32 %v4135, %v4137
  %v4139 = vadd.f32 %v4135, %v4138
  %vm4140 = vweird.f32 %v4134
  %vm4141 = vweird.f32 %v4135
  %vm4142 = vmor %vm4140, %vm4141
  %v4143 = vsel %vm4142, %v4135, %v4139
  %v4144 = vand.u32 2147483647, %v4134
  %vm4145 = vcmp.eq.f32.partialorder %v4144, 8.507059e+37
  %v4146 = vand.u32 %v4134, 2147483648
  %v4147 = vor.u32 1.1754944e-38, %v4146
  %v4148 = vsel %vm4145, %v4147, %v4143
  %v4149 = vmul.f32 %v4124, %v4148
  %v4150 = vmin.f32 %v4149, 1.0
  %v4151 = vmax.f32 %v4150, -1.0
  %v4152 = vmul.f32 %v3746, %v3746
  %v4153 = vmin.f32 16.0, %v4152
  %v4154 = vmul.f32 %v4153, 2.1237322e-06
  %v4155 = vadd.f32 %v4154, 0.00028619796
  %v4156 = vmul.f32 %v4153, %v4155
  %v4157 = vadd.f32 %v4156, 0.0036580483
  %v4158 = vmul.f32 %v4153, %v4157
  %v4159 = vadd.f32 %v4158, 0.05243302
  %v4160 = vmul.f32 %v4153, %v4159
  %v4161 = vadd.f32 %v4160, 0.18741608
  %v4162 = vmul.f32 %v4153, %v4161
  %v4163 = vadd.f32 %v4162, 1.1283791
  %v4164 = vmul.f32 %v3746, %v4163
  %v4165 = vmul.f32 %v4153, 3.8918573e-05
  %v4166 = vadd.f32 %v4165, 0.001143296
  %v4167 = vmul.f32 %v4153, %v4166
  %v4168 = vadd.f32 %v4167, 0.014752088
  %v4169 = vmul.f32 %v4153, %v4168
  %v4170 = vadd.f32 %v4169, 0.112945676
  %v4171 = vmul.f32 %v4153, %v4170
  %v4172 = vadd.f32 %v4171, 0.4994258
  %v4173 = vmul.f32 %v4153, %v4172
  %v4174 = vadd.f32 %v4173, 1.0
  %v4175 = vrcp.pop %v4174
  %v4176 = vmul.f32 %v4174, %v4175
  %v4177 = vsub.f32 1.0, %v4176
  %v4178 = vmul.f32 %v4175, %v4177
  %v4179 = vadd.f32 %v4175, %v4178
  %vm4180 = vweird.f32 %v4174
  %vm4181 = vweird.f32 %v4175
  %vm4182 = vmor %vm4180, %vm4181
  %v4183 = vsel %vm4182, %v4175, %v4179
  %v4184 = vand.u32 2147483647, %v4174
  %vm4185 = vcmp.eq.f32.partialorder %v4184, 8.507059e+37
  %v4186 = vand.u32 %v4174, 2147483648
  %v4187 = vor.u32 1.1754944e-38, %v4186
  %v4188 = vsel %vm4185, %v4187, %v4183
  %v4189 = vmul.f32 %v4164, %v4188
  %v4190 = vmin.f32 %v4189, 1.0
  %v4191 = vmax.f32 %v4190, -1.0
  %v4192 = vmul.f32 %v3747, %v3747
  %v4193 = vmin.f32 16.0, %v4192
  %v4194 = vmul.f32 %v4193, 2.1237322e-06
  %v4195 = vadd.f32 %v4194, 0.00028619796
  %v4196 = vmul.f32 %v4193, %v4195
  %v4197 = vadd.f32 %v4196, 0.0036580483
  %v4198 = vmul.f32 %v4193, %v4197
  %v4199 = vadd.f32 %v4198, 0.05243302
  %v4200 = vmul.f32 %v4193, %v4199
  %v4201 = vadd.f32 %v4200, 0.18741608
  %v4202 = vmul.f32 %v4193, %v4201
  %v4203 = vadd.f32 %v4202, 1.1283791
  %v4204 = vmul.f32 %v3747, %v4203
  %v4205 = vmul.f32 %v4193, 3.8918573e-05
  %v4206 = vadd.f32 %v4205, 0.001143296
  %v4207 = vmul.f32 %v4193, %v4206
  %v4208 = vadd.f32 %v4207, 0.014752088
  %v4209 = vmul.f32 %v4193, %v4208
  %v4210 = vadd.f32 %v4209, 0.112945676
  %v4211 = vmul.f32 %v4193, %v4210
  %v4212 = vadd.f32 %v4211, 0.4994258
  %v4213 = vmul.f32 %v4193, %v4212
  %v4214 = vadd.f32 %v4213, 1.0
  %v4215 = vrcp.pop %v4214
  %v4216 = vmul.f32 %v4214, %v4215
  %v4217 = vsub.f32 1.0, %v4216
  %v4218 = vmul.f32 %v4215, %v4217
  %v4219 = vadd.f32 %v4215, %v4218
  %vm4220 = vweird.f32 %v4214
  %vm4221 = vweird.f32 %v4215
  %vm4222 = vmor %vm4220, %vm4221
  %v4223 = vsel %vm4222, %v4215, %v4219
  %v4224 = vand.u32 2147483647, %v4214
  %vm4225 = vcmp.eq.f32.partialorder %v4224, 8.507059e+37
  %v4226 = vand.u32 %v4214, 2147483648
  %v4227 = vor.u32 1.1754944e-38, %v4226
  %v4228 = vsel %vm4225, %v4227, %v4223
  %v4229 = vmul.f32 %v4204, %v4228
  %v4230 = vmin.f32 %v4229, 1.0
  %v4231 = vmax.f32 %v4230, -1.0
  %v4232 = vmul.f32 %v3748, %v3748
  %v4233 = vmin.f32 16.0, %v4232
  %v4234 = vmul.f32 %v4233, 2.1237322e-06
  %v4235 = vadd.f32 %v4234, 0.00028619796
  %v4236 = vmul.f32 %v4233, %v4235
  %v4237 = vadd.f32 %v4236, 0.0036580483
  %v4238 = vmul.f32 %v4233, %v4237
  %v4239 = vadd.f32 %v4238, 0.05243302
  %v4240 = vmul.f32 %v4233, %v4239
  %v4241 = vadd.f32 %v4240, 0.18741608
  %v4242 = vmul.f32 %v4233, %v4241
  %v4243 = vadd.f32 %v4242, 1.1283791
  %v4244 = vmul.f32 %v3748, %v4243
  %v4245 = vmul.f32 %v4233, 3.8918573e-05
  %v4246 = vadd.f32 %v4245, 0.001143296
  %v4247 = vmul.f32 %v4233, %v4246
  %v4248 = vadd.f32 %v4247, 0.014752088
  %v4249 = vmul.f32 %v4233, %v4248
  %v4250 = vadd.f32 %v4249, 0.112945676
  %v4251 = vmul.f32 %v4233, %v4250
  %v4252 = vadd.f32 %v4251, 0.4994258
  %v4253 = vmul.f32 %v4233, %v4252
  %v4254 = vadd.f32 %v4253, 1.0
  %v4255 = vrcp.pop %v4254
  %v4256 = vmul.f32 %v4254, %v4255
  %v4257 = vsub.f32 1.0, %v4256
  %v4258 = vmul.f32 %v4255, %v4257
  %v4259 = vadd.f32 %v4255, %v4258
  %vm4260 = vweird.f32 %v4254
  %vm4261 = vweird.f32 %v4255
  %vm4262 = vmor %vm4260, %vm4261
  %v4263 = vsel %vm4262, %v4255, %v4259
  %v4264 = vand.u32 2147483647, %v4254
  %vm4265 = vcmp.eq.f32.partialorder %v4264, 8.507059e+37
  %v4266 = vand.u32 %v4254, 2147483648
  %v4267 = vor.u32 1.1754944e-38, %v4266
  %v4268 = vsel %vm4265, %v4267, %v4263
  %v4269 = vmul.f32 %v4244, %v4268
  %v4270 = vmin.f32 %v4269, 1.0
  %v4271 = vmax.f32 %v4270, -1.0
  %v4272 = vmul.f32 %v3749, %v3749
  %v4273 = vmin.f32 16.0, %v4272
  %v4274 = vmul.f32 %v4273, 2.1237322e-06
  %v4275 = vadd.f32 %v4274, 0.00028619796
  %v4276 = vmul.f32 %v4273, %v4275
  %v4277 = vadd.f32 %v4276, 0.0036580483
  %v4278 = vmul.f32 %v4273, %v4277
  %v4279 = vadd.f32 %v4278, 0.05243302
  %v4280 = vmul.f32 %v4273, %v4279
  %v4281 = vadd.f32 %v4280, 0.18741608
  %v4282 = vmul.f32 %v4273, %v4281
  %v4283 = vadd.f32 %v4282, 1.1283791
  %v4284 = vmul.f32 %v3749, %v4283
  %v4285 = vmul.f32 %v4273, 3.8918573e-05
  %v4286 = vadd.f32 %v4285, 0.001143296
  %v4287 = vmul.f32 %v4273, %v4286
  %v4288 = vadd.f32 %v4287, 0.014752088
  %v4289 = vmul.f32 %v4273, %v4288
  %v4290 = vadd.f32 %v4289, 0.112945676
  %v4291 = vmul.f32 %v4273, %v4290
  %v4292 = vadd.f32 %v4291, 0.4994258
  %v4293 = vmul.f32 %v4273, %v4292
  %v4294 = vadd.f32 %v4293, 1.0
  %v4295 = vrcp.pop %v4294
  %v4296 = vmul.f32 %v4294, %v4295
  %v4297 = vsub.f32 1.0, %v4296
  %v4298 = vmul.f32 %v4295, %v4297
  %v4299 = vadd.f32 %v4295, %v4298
  %vm4300 = vweird.f32 %v4294
  %vm4301 = vweird.f32 %v4295
  %vm4302 = vmor %vm4300, %vm4301
  %v4303 = vsel %vm4302, %v4295, %v4299
  %v4304 = vand.u32 2147483647, %v4294
  %vm4305 = vcmp.eq.f32.partialorder %v4304, 8.507059e+37
  %v4306 = vand.u32 %v4294, 2147483648
  %v4307 = vor.u32 1.1754944e-38, %v4306
  %v4308 = vsel %vm4305, %v4307, %v4303
  %v4309 = vmul.f32 %v4284, %v4308
  %v4310 = vmin.f32 %v4309, 1.0
  %v4311 = vmax.f32 %v4310, -1.0
  %v4312 = vmul.f32 %v3750, %v3750
  %v4313 = vmin.f32 16.0, %v4312
  %v4314 = vmul.f32 %v4313, 2.1237322e-06
  %v4315 = vadd.f32 %v4314, 0.00028619796
  %v4316 = vmul.f32 %v4313, %v4315
  %v4317 = vadd.f32 %v4316, 0.0036580483
  %v4318 = vmul.f32 %v4313, %v4317
  %v4319 = vadd.f32 %v4318, 0.05243302
  %v4320 = vmul.f32 %v4313, %v4319
  %v4321 = vadd.f32 %v4320, 0.18741608
  %v4322 = vmul.f32 %v4313, %v4321
  %v4323 = vadd.f32 %v4322, 1.1283791
  %v4324 = vmul.f32 %v3750, %v4323
  %v4325 = vmul.f32 %v4313, 3.8918573e-05
  %v4326 = vadd.f32 %v4325, 0.001143296
  %v4327 = vmul.f32 %v4313, %v4326
  %v4328 = vadd.f32 %v4327, 0.014752088
  %v4329 = vmul.f32 %v4313, %v4328
  %v4330 = vadd.f32 %v4329, 0.112945676
  %v4331 = vmul.f32 %v4313, %v4330
  %v4332 = vadd.f32 %v4331, 0.4994258
  %v4333 = vmul.f32 %v4313, %v4332
  %v4334 = vadd.f32 %v4333, 1.0
  %v4335 = vrcp.pop %v4334
  %v4336 = vmul.f32 %v4334, %v4335
  %v4337 = vsub.f32 1.0, %v4336
  %v4338 = vmul.f32 %v4335, %v4337
  %v4339 = vadd.f32 %v4335, %v4338
  %vm4340 = vweird.f32 %v4334
  %vm4341 = vweird.f32 %v4335
  %vm4342 = vmor %vm4340, %vm4341
  %v4343 = vsel %vm4342, %v4335, %v4339
  %v4344 = vand.u32 2147483647, %v4334
  %vm4345 = vcmp.eq.f32.partialorder %v4344, 8.507059e+37
  %v4346 = vand.u32 %v4334, 2147483648
  %v4347 = vor.u32 1.1754944e-38, %v4346
  %v4348 = vsel %vm4345, %v4347, %v4343
  %v4349 = vmul.f32 %v4324, %v4348
  %v4350 = vmin.f32 %v4349, 1.0
  %v4351 = vmax.f32 %v4350, -1.0
  %v4352 = vmul.f32 %v3751, %v3751
  %v4353 = vmin.f32 16.0, %v4352
  %v4354 = vmul.f32 %v4353, 2.1237322e-06
  %v4355 = vadd.f32 %v4354, 0.00028619796
  %v4356 = vmul.f32 %v4353, %v4355
  %v4357 = vadd.f32 %v4356, 0.0036580483
  %v4358 = vmul.f32 %v4353, %v4357
  %v4359 = vadd.f32 %v4358, 0.05243302
  %v4360 = vmul.f32 %v4353, %v4359
  %v4361 = vadd.f32 %v4360, 0.18741608
  %v4362 = vmul.f32 %v4353, %v4361
  %v4363 = vadd.f32 %v4362, 1.1283791
  %v4364 = vmul.f32 %v3751, %v4363
  %v4365 = vmul.f32 %v4353, 3.8918573e-05
  %v4366 = vadd.f32 %v4365, 0.001143296
  %v4367 = vmul.f32 %v4353, %v4366
  %v4368 = vadd.f32 %v4367, 0.014752088
  %v4369 = vmul.f32 %v4353, %v4368
  %v4370 = vadd.f32 %v4369, 0.112945676
  %v4371 = vmul.f32 %v4353, %v4370
  %v4372 = vadd.f32 %v4371, 0.4994258
  %v4373 = vmul.f32 %v4353, %v4372
  %v4374 = vadd.f32 %v4373, 1.0
  %v4375 = vrcp.pop %v4374
  %v4376 = vmul.f32 %v4374, %v4375
  %v4377 = vsub.f32 1.0, %v4376
  %v4378 = vmul.f32 %v4375, %v4377
  %v4379 = vadd.f32 %v4375, %v4378
  %vm4380 = vweird.f32 %v4374
  %vm4381 = vweird.f32 %v4375
  %vm4382 = vmor %vm4380, %vm4381
  %v4383 = vsel %vm4382, %v4375, %v4379
  %v4384 = vand.u32 2147483647, %v4374
  %vm4385 = vcmp.eq.f32.partialorder %v4384, 8.507059e+37
  %v4386 = vand.u32 %v4374, 2147483648
  %v4387 = vor.u32 1.1754944e-38, %v4386
  %v4388 = vsel %vm4385, %v4387, %v4383
  %v4389 = vmul.f32 %v4364, %v4388
  %v4390 = vmin.f32 %v4389, 1.0
  %v4391 = vmax.f32 %v4390, -1.0
  %v4392 = vadd.f32 %v3791, 1.0
  %v4393 = vadd.f32 %v3831, 1.0
  %v4394 = vadd.f32 %v3871, 1.0
  %v4395 = vadd.f32 %v3911, 1.0
  %v4396 = vadd.f32 %v3951, 1.0
  %v4397 = vadd.f32 %v3991, 1.0
  %v4398 = vadd.f32 %v4031, 1.0
  %v4399 = vadd.f32 %v4071, 1.0
  %v4400 = vadd.f32 %v4111, 1.0
  %v4401 = vadd.f32 %v4151, 1.0
  %v4402 = vadd.f32 %v4191, 1.0
  %v4403 = vadd.f32 %v4231, 1.0
  %v4404 = vadd.f32 %v4271, 1.0
  %v4405 = vadd.f32 %v4311, 1.0
  %v4406 = vadd.f32 %v4351, 1.0
  %v4407 = vadd.f32 %v4391, 1.0
  %v4408 = vmul.f32 %v3720, %v4392
  %v4409 = vmul.f32 %v3721, %v4393
  %v4410 = vmul.f32 %v3722, %v4394
  %v4411 = vmul.f32 %v3723, %v4395
  %v4412 = vmul.f32 %v3724, %v4396
  %v4413 = vmul.f32 %v3725, %v4397
  %v4414 = vmul.f32 %v3726, %v4398
  %v4415 = vmul.f32 %v3727, %v4399
  %v4416 = vmul.f32 %v3728, %v4400
  %v4417 = vmul.f32 %v3729, %v4401
  %v4418 = vmul.f32 %v3730, %v4402
  %v4419 = vmul.f32 %v3731, %v4403
  %v4420 = vmul.f32 %v3732, %v4404
  %v4421 = vmul.f32 %v3733, %v4405
  %v4422 = vmul.f32 %v3734, %v4406
  %v4423 = vmul.f32 %v3735, %v4407
  %v4424 = vpack.c.bf16 %v4409, %v4408
  %v4425 = vpack.c.bf16 %v4411, %v4410
  %v4426 = vpack.c.bf16 %v4413, %v4412
  %v4427 = vpack.c.bf16 %v4415, %v4414
  %v4428 = vpack.c.bf16 %v4417, %v4416
  %v4429 = vpack.c.bf16 %v4419, %v4418
  %v4430 = vpack.c.bf16 %v4421, %v4420
  %v4431 = vpack.c.bf16 %v4423, %v4422
  %v4432 = vld [vmem:[%s11] sm:$0xf]
  %v4433 = vld [vmem:[%s11 + $0x4] sm:$0xf]
  %v4434 = vld [vmem:[%s11 + $0x8] sm:$0xf]
  %v4435 = vld [vmem:[%s11 + $0xc] sm:$0xf]
  %v4436 = vld [vmem:[%s11 + $0x10] sm:$0xf]
  %v4437 = vld [vmem:[%s11 + $0x14] sm:$0xf]
  %v4438 = vld [vmem:[%s11 + $0x18] sm:$0xf]
  %v4439 = vld [vmem:[%s11 + $0x1c] sm:$0xf]
  %v4440 = vld [vmem:[%s11 + $0x20] sm:$0xf]
  %v4441 = vld [vmem:[%s11 + $0x24] sm:$0xf]
  %v4442 = vld [vmem:[%s11 + $0x28] sm:$0xf]
  %v4443 = vld [vmem:[%s11 + $0x2c] sm:$0xf]
  %v4444 = vld [vmem:[%s11 + $0x30] sm:$0xf]
  %v4445 = vld [vmem:[%s11 + $0x34] sm:$0xf]
  %v4446 = vld [vmem:[%s11 + $0x38] sm:$0xf]
  %v4447 = vld [vmem:[%s11 + $0x3c] sm:$0xf]
  %v4448 = vld [vmem:[%s12] sm:$0x1]
  %v4450 = vperm.slane %v4448, 0
  %v4468 = vunpack.c.l.b16 %v4432
  %v4469 = vunpack.c.l.b16 %v4433
  %v4470 = vunpack.c.l.b16 %v4434
  %v4471 = vunpack.c.l.b16 %v4435
  %v4472 = vunpack.c.l.b16 %v4436
  %v4473 = vunpack.c.l.b16 %v4437
  %v4474 = vunpack.c.l.b16 %v4438
  %v4475 = vunpack.c.l.b16 %v4439
  %v4476 = vunpack.c.l.b16 %v4440
  %v4477 = vunpack.c.l.b16 %v4441
  %v4478 = vunpack.c.l.b16 %v4442
  %v4479 = vunpack.c.l.b16 %v4443
  %v4480 = vunpack.c.l.b16 %v4444
  %v4481 = vunpack.c.l.b16 %v4445
  %v4482 = vunpack.c.l.b16 %v4446
  %v4483 = vunpack.c.l.b16 %v4447
  %v4484 = vpack.c.b16 %v4469, %v4468
  %v4485 = vpack.c.b16 %v4471, %v4470
  %v4486 = vpack.c.b16 %v4473, %v4472
  %v4487 = vpack.c.b16 %v4475, %v4474
  %v4488 = vpack.c.b16 %v4477, %v4476
  %v4489 = vpack.c.b16 %v4479, %v4478
  %v4490 = vpack.c.b16 %v4481, %v4480
  %v4491 = vpack.c.b16 %v4483, %v4482
  %4500 = vmatpush.bf16.msra.mxu0 %v4491
  %4501 = vmatpush.bf16.msra.mxu0 %v4490
  %4502 = vmatpush.bf16.msra.mxu0 %v4489
  %4503 = vmatpush.bf16.msra.mxu0 %v4488
  %4504 = vmatpush.bf16.msra.mxu0 %v4487
  %4505 = vmatpush.bf16.msra.mxu0 %v4486
  %4506 = vmatpush.bf16.msra.mxu0 %v4485
  %4507 = vmatpush.bf16.msra.mxu0 %v4484
  %4508 = vmatmul.bf16.gmra.mxu0 %v4424
  %v4509 = vpop.f32.mrf.mxu0
  %v4510 = vadd.f32 %v4450, %v4509
  %v4511 = vpop.f32.mrf.mxu0
  %v4512 = vadd.f32 %v4450, %v4511
  %4513 = vmatmul.bf16.gmra.mxu0 %v4425
  %v4514 = vpop.f32.mrf.mxu0
  %v4515 = vadd.f32 %v4450, %v4514
  %v4516 = vpop.f32.mrf.mxu0
  %v4517 = vadd.f32 %v4450, %v4516
  %4518 = vmatmul.bf16.gmra.mxu0 %v4426
  %v4519 = vpop.f32.mrf.mxu0
  %v4520 = vadd.f32 %v4450, %v4519
  %v4521 = vpop.f32.mrf.mxu0
  %v4522 = vadd.f32 %v4450, %v4521
  %4523 = vmatmul.bf16.gmra.mxu0 %v4427
  %v4524 = vpop.f32.mrf.mxu0
  %v4525 = vadd.f32 %v4450, %v4524
  %v4526 = vpop.f32.mrf.mxu0
  %v4527 = vadd.f32 %v4450, %v4526
  %4528 = vmatmul.bf16.gmra.mxu0 %v4428
  %v4529 = vpop.f32.mrf.mxu0
  %v4530 = vadd.f32 %v4450, %v4529
  %v4531 = vpop.f32.mrf.mxu0
  %v4532 = vadd.f32 %v4450, %v4531
  %4533 = vmatmul.bf16.gmra.mxu0 %v4429
  %v4534 = vpop.f32.mrf.mxu0
  %v4535 = vadd.f32 %v4450, %v4534
  %v4536 = vpop.f32.mrf.mxu0
  %v4537 = vadd.f32 %v4450, %v4536
  %4538 = vmatmul.bf16.gmra.mxu0 %v4430
  %v4539 = vpop.f32.mrf.mxu0
  %v4540 = vadd.f32 %v4450, %v4539
  %v4541 = vpop.f32.mrf.mxu0
  %v4542 = vadd.f32 %v4450, %v4541
  %4543 = vmatmul.bf16.gmra.mxu0 %v4431
  %v4544 = vpop.f32.mrf.mxu0
  %v4545 = vadd.f32 %v4450, %v4544
  %v4546 = vpop.f32.mrf.mxu0
  %v4547 = vadd.f32 %v4450, %v4546
  %4548 = vdwg.mxu0
  %v4549 = vadd.f32 %v3211, %v4510
  %v4550 = vadd.f32 %v3212, %v4512
  %v4551 = vadd.f32 %v3213, %v4515
  %v4552 = vadd.f32 %v3214, %v4517
  %v4553 = vadd.f32 %v3215, %v4520
  %v4554 = vadd.f32 %v3216, %v4522
  %v4555 = vadd.f32 %v3217, %v4525
  %v4556 = vadd.f32 %v3218, %v4527
  %v4557 = vadd.f32 %v3219, %v4530
  %v4558 = vadd.f32 %v3220, %v4532
  %v4559 = vadd.f32 %v3221, %v4535
  %v4560 = vadd.f32 %v3222, %v4537
  %v4561 = vadd.f32 %v3223, %v4540
  %v4562 = vadd.f32 %v3224, %v4542
  %v4563 = vadd.f32 %v3225, %v4545
  %v4564 = vadd.f32 %v3226, %v4547
  %4565 = vst.msk [vmem:[%s13] sm:$0xff] %vm63, %v4549
  %4566 = vst.msk [vmem:[%s13 + $0x8] sm:$0xff] %vm63, %v4550
  %4567 = vst.msk [vmem:[%s13 + $0x10] sm:$0xff] %vm63, %v4551
  %4568 = vst.msk [vmem:[%s13 + $0x18] sm:$0xff] %vm63, %v4552
  %4569 = vst.msk [vmem:[%s13 + $0x20] sm:$0xff] %vm63, %v4553
  %4570 = vst.msk [vmem:[%s13 + $0x28] sm:$0xff] %vm63, %v4554
  %4571 = vst.msk [vmem:[%s13 + $0x30] sm:$0xff] %vm63, %v4555
  %4572 = vst.msk [vmem:[%s13 + $0x38] sm:$0xff] %vm63, %v4556
  %4573 = vst.msk [vmem:[%s13 + $0x40] sm:$0xff] %vm63, %v4557
  %4574 = vst.msk [vmem:[%s13 + $0x48] sm:$0xff] %vm63, %v4558
  %4575 = vst.msk [vmem:[%s13 + $0x50] sm:$0xff] %vm63, %v4559
  %4576 = vst.msk [vmem:[%s13 + $0x58] sm:$0xff] %vm63, %v4560
  %4577 = vst.msk [vmem:[%s13 + $0x60] sm:$0xff] %vm63, %v4561
  %4578 = vst.msk [vmem:[%s13 + $0x68] sm:$0xff] %vm63, %v4562
  %4579 = vst.msk [vmem:[%s13 + $0x70] sm:$0xff] %vm63, %v4563
  %4580 = vst.msk [vmem:[%s13 + $0x78] sm:$0xff] %vm63, %v4564
  // Predicated region
  $region54: #{tpu_custom_call.1} parent=0 // pred_check
    _
  $region55: #{tpu_custom_call.1} parent=0 // pred_check_branch
    %4582 = sbr.rel (0) target = $region57
  $region56: #{tpu_custom_call.1} parent=0 // pred_region
    _
  $region57: #{tpu_custom_call.1} parent=0 // pred_fallthru
    _
  // Predicated region
  $region58: #{tpu_custom_call.1} parent=0 // pred_check
    _
  $region59: #{tpu_custom_call.1} parent=0 // pred_check_branch
    %4584 = sbr.rel (0) target = $region61
  $region60: #{tpu_custom_call.1} parent=0 // pred_region
    _
  $region61: #{tpu_custom_call.1} parent=0 // pred_fallthru
    _

</llo_original>
